<compile_context>
chip_gen: v6e
topology: v6e:2x2x1
jax: 0.10.0
libtpu: 0.0.40
codegen_flags: <defaults>
</compile_context>

<pallas_src>
import functools

import jax
import jax.numpy as jnp
import numpy as np
from jax.experimental import pallas as pl
from jax.experimental.pallas import tpu as pltpu

_VMEM_LIMIT = 48 * 1024 * 1024  # leaves headroom under v7x's 64 MiB physical VMEM


def _round_up(x, m):
    return ((x + m - 1) // m) * m


def _pick_tile(dim, target, unit):
    """Largest multiple of `unit` that divides `dim` and is <= target (or dim)."""
    if dim <= target:
        return dim
    t = (min(target, dim) // unit) * unit
    while t > unit and dim % t:
        t -= unit
    return t


# -----------------------------------------------------------------------------
# Kernel 1: tiled (M, K) @ (K, N) + (1, N) with lane-dense output.
# Used only for the hoisted vocab projection.  x is f32 activations, w is bf16
# weights; operands are fed to the MXU in bf16 with f32 accumulation.
# -----------------------------------------------------------------------------
def _matmul_bias_kernel(x_ref, w_ref, b_ref, out_ref):
    out_ref[...] = (
        jnp.dot(x_ref[...].astype(jnp.bfloat16), w_ref[...],
                preferred_element_type=jnp.float32)
        + b_ref[...])


def matmul_bias_pallas(x, w, b, *, tm=256, tn=512):
    """x: (M, K) f32, w: (K, N) bf16, b: (1, N) f32 -> (M, N) f32."""
    M, K = x.shape
    N = w.shape[1]
    tm = _pick_tile(M, tm, 8)      # M is a multiple of 8 by construction
    tn = _pick_tile(N, tn, 128)    # N is a multiple of 128 by construction
    grid = (M // tm, N // tn)
    cost = pl.CostEstimate(
        flops=2 * M * K * N,
        transcendentals=0,
        bytes_accessed=4 * M * K + 2 * K * N + 4 * N + 4 * M * N)
    return pl.pallas_call(
        _matmul_bias_kernel,
        out_shape=jax.ShapeDtypeStruct((M, N), jnp.float32),
        grid=grid,
        in_specs=[
            pl.BlockSpec((tm, K), lambda i, j: (i, 0)),
            pl.BlockSpec((K, tn), lambda i, j: (0, j)),
            pl.BlockSpec((1, tn), lambda i, j: (0, j)),
        ],
        out_specs=pl.BlockSpec((tm, tn), lambda i, j: (i, j)),
        compiler_params=pltpu.CompilerParams(
            # Both axes independent -> Mosaic may shard across v7x's 2 TCs.
            dimension_semantics=("parallel", "parallel"),
            vmem_limit_bytes=_VMEM_LIMIT),
        cost_estimate=cost,
    )(x, w, b)


# -----------------------------------------------------------------------------
# Kernel 2: fused gate-input precompute + LSTM recurrence.
#   xg[t] = x_t @ W_ih^T + (b_ih + b_hh)   (one big GEMM, result stays in VMEM)
#   per step: gates = xg[t] + h @ W_hh^T, nonlinearities, write h_t.
# Single grid iteration; h/c state kept in VMEM scratch.
# -----------------------------------------------------------------------------
def _lstm_fused_kernel(x_ref, wih_ref, b_ref, whh_ref, hs_ref,
                       xg_scr, h_scr, c_scr, *, seq_len, hidden_pad):
    Hp = hidden_pad
    T, Bp, E = x_ref.shape

    # --- Fused GEMM #1 (hoisted off the serial path): gate inputs for all
    # time steps at once; never round-trips HBM.
    x_all = x_ref[...].reshape(T * Bp, E).astype(jnp.bfloat16)
    xg = jnp.dot(x_all, wih_ref[...], preferred_element_type=jnp.float32)
    xg_scr[...] = (xg + b_ref[...]).reshape(T, Bp, 4 * Hp)

    # --- Serial recurrence: only h @ W_hh^T + nonlinearities per step.
    h_scr[...] = jnp.zeros_like(h_scr)
    c_scr[...] = jnp.zeros_like(c_scr)

    def step(t, carry):
        h = h_scr[...]
        c = c_scr[...]
        # TODO(synk): stage W_hh^T in MXU weight regs across steps via
        # pltpu.matmul_push_rhs/matmul_acc_lhs once verified on target HW.
        gates = xg_scr[t] + jnp.dot(h.astype(jnp.bfloat16), whh_ref[...],
                                    preferred_element_type=jnp.float32)
        # Hp is a multiple of 128 -> every gate slice is lane-aligned.
        i_g = jax.nn.sigmoid(gates[:, 0 * Hp:1 * Hp])
        f_g = jax.nn.sigmoid(gates[:, 1 * Hp:2 * Hp])
        g_g = jnp.tanh(gates[:, 2 * Hp:3 * Hp])
        o_g = jax.nn.sigmoid(gates[:, 3 * Hp:4 * Hp])
        c_new = f_g * c + i_g * g_g
        h_new = o_g * jnp.tanh(c_new)
        c_scr[...] = c_new
        h_scr[...] = h_new
        hs_ref[t] = h_new
        return carry

    # Small static T -> fully unrolled, visible to the LLO scheduler.
    # TODO(synk): drop unroll=True and strip-mine the batch in 8-sublane
    # chunks once T / Bp grow beyond toy sizes.
    jax.lax.fori_loop(0, seq_len, step, 0, unroll=True)


def lstm_recurrence_pallas(inputs_tm, w_ih_t, b_all, w_hh_t):
    """inputs_tm: (T, Bp, E) f32, w_ih_t: (E, 4Hp) bf16, b_all: (1, 4Hp) f32,
    w_hh_t: (Hp, 4Hp) bf16 -> hs: (T, Bp, Hp) f32 (time-major)."""
    T, Bp, E = inputs_tm.shape
    Hp = w_hh_t.shape[0]
    G = 4 * Hp

    kernel = functools.partial(_lstm_fused_kernel, seq_len=T, hidden_pad=Hp)
    cost = pl.CostEstimate(
        flops=2 * T * Bp * E * G + 2 * T * Bp * Hp * G,
        transcendentals=5 * T * Bp * Hp,
        bytes_accessed=(4 * T * Bp * E + 2 * E * G + 4 * G + 2 * Hp * G
                        + 4 * T * Bp * Hp))

    return pl.pallas_call(
        kernel,
        out_shape=jax.ShapeDtypeStruct((T, Bp, Hp), jnp.float32),
        grid=(1,),  # whole sequence in one shot
        in_specs=[
            # TODO(synk): mark these grid=(1,) blocks pipeline_mode=pl.Buffered(1)
            # once verified on the target jax version (drops the unused double
            # buffers -> halves this kernel's VMEM footprint on v7x).
            pl.BlockSpec((T, Bp, E), lambda i: (0, 0, 0)),   # embedded inputs
            pl.BlockSpec((E, G), lambda i: (0, 0)),          # W_ih^T (bf16)
            pl.BlockSpec((1, G), lambda i: (0, 0)),          # b_ih + b_hh (f32)
            pl.BlockSpec((Hp, G), lambda i: (0, 0)),         # W_hh^T (bf16)
        ],
        out_specs=pl.BlockSpec((T, Bp, Hp), lambda i: (0, 0, 0)),
        scratch_shapes=[
            pltpu.VMEM((T, Bp, G), jnp.float32),   # precomputed gate inputs
            pltpu.VMEM((Bp, Hp), jnp.float32),     # h state
            pltpu.VMEM((Bp, Hp), jnp.float32),     # c state
        ],
        compiler_params=pltpu.CompilerParams(
            dimension_semantics=("arbitrary",),
            vmem_limit_bytes=_VMEM_LIMIT),
        cost_estimate=cost,
    )(inputs_tm, w_ih_t, b_all, w_hh_t)


# -----------------------------------------------------------------------------
# Forward pass (mirrors CaptioningModel.forward)
# -----------------------------------------------------------------------------
def captioning_forward(params, features, captions):
    """features: (B, E) f32, captions: (B, L) int32 -> logits (B, L, V) f32."""
    # TODO(synk): fold embedding gather + concat + pad/transpose into the
    # recurrence kernel via scalar-prefetched caption ids (low priority).
    emb = params["embedding"]                        # (V, E)
    cap = captions[:, :-1]                           # (B, L-1)
    embeds = emb[cap]                                # (B, L-1, E)  gather (plain JAX)
    inputs = jnp.concatenate([features[:, None, :], embeds], axis=1)  # (B, T, E)

    B, T, E = inputs.shape
    Hp = params["hidden_pad"]
    Vp = params["vocab_pad"]
    V = params["vocab_size"]
    Bp = _round_up(B, 8)                             # sublane-pad the batch

    inputs_p = jnp.pad(inputs, ((0, Bp - B), (0, 0), (0, 0)))
    inputs_tm = jnp.transpose(inputs_p, (1, 0, 2))   # (T, Bp, E), time-major

    # Fused kernel: in-VMEM gate-input precompute + serial recurrence.
    hs_tm = lstm_recurrence_pallas(
        inputs_tm, params["w_ih_t"], params["b_all"], params["w_hh_t"])  # (T,Bp,Hp)

    # Transpose the SMALL hidden-state tensor to batch-major before the vocab
    # GEMM so the large logits tensor never needs a post-GEMM transpose.
    hs_bm = jnp.transpose(hs_tm, (1, 0, 2)).reshape(Bp * T, Hp)

    # Tiled, bf16-fed vocab projection with lane-dense, batch-major output.
    logits = matmul_bias_pallas(hs_bm, params["w_lin_t"], params["b_lin"])
    logits = logits.reshape(Bp, T, Vp)[:B, :, :V]    # drop batch / vocab padding
    return logits


# -----------------------------------------------------------------------------
# Parameters (torch layout generated, then padded/transposed for the kernels)
# -----------------------------------------------------------------------------
def make_params(key, embed_size, hidden_size, vocab_size):
    ks = jax.random.split(key, 7)
    s = 0.1
    emb = s * jax.random.normal(ks[0], (vocab_size, embed_size), jnp.float32)
    w_ih = s * jax.random.normal(ks[1], (4 * hidden_size, embed_size), jnp.float32)
    w_hh = s * jax.random.normal(ks[2], (4 * hidden_size, hidden_size), jnp.float32)
    b_ih = s * jax.random.normal(ks[3], (4 * hidden_size,), jnp.float32)
    b_hh = s * jax.random.normal(ks[4], (4 * hidden_size,), jnp.float32)
    w_lin = s * jax.random.normal(ks[5], (vocab_size, hidden_size), jnp.float32)
    b_lin = s * jax.random.normal(ks[6], (vocab_size,), jnp.float32)

    # MXU weight operands are stored bf16 (MXU-native; halves weight DMA bytes
    # for the weight-read-bound vocab GEMM).  Biases / state / nonlinearities
    # stay f32.  The reference uses the same bf16-rounded values so only
    # activation rounding differs between kernel and reference.
    w_ih = w_ih.astype(jnp.bfloat16).astype(jnp.float32)
    w_hh = w_hh.astype(jnp.bfloat16).astype(jnp.float32)
    w_lin = w_lin.astype(jnp.bfloat16).astype(jnp.float32)

    H, V = hidden_size, vocab_size
    Hp = _round_up(H, 128)      # lane-aligned gates
    Vp = _round_up(V, 128)      # lane-dense logits output

    def pad_gate_cols(w_t):     # (rows, 4H) -> (rows, 4Hp), zero-pad each gate block
        r = w_t.shape[0]
        w4 = w_t.reshape(r, 4, H)
        w4 = jnp.pad(w4, ((0, 0), (0, 0), (0, Hp - H)))
        return w4.reshape(r, 4 * Hp)

    w_ih_t = pad_gate_cols(jnp.transpose(w_ih)).astype(jnp.bfloat16)      # (E, 4Hp)
    w_hh_t = jnp.pad(pad_gate_cols(jnp.transpose(w_hh)),
                     ((0, Hp - H), (0, 0))).astype(jnp.bfloat16)          # (Hp, 4Hp)
    b_all = pad_gate_cols((b_ih + b_hh)[None, :])                         # (1, 4Hp) f32
    w_lin_t = jnp.pad(jnp.transpose(w_lin),
                      ((0, Hp - H), (0, Vp - V))).astype(jnp.bfloat16)    # (Hp, Vp)
    b_lin_p = jnp.pad(b_lin[None, :], ((0, 0), (0, Vp - V)))              # (1, Vp) f32

    return {
        "embedding": emb,
        "w_ih_t": w_ih_t, "w_hh_t": w_hh_t, "b_all": b_all,
        "w_lin_t": w_lin_t, "b_lin": b_lin_p,
        "hidden_size": H, "hidden_pad": Hp,
        "vocab_size": V, "vocab_pad": Vp,
        # unpadded f32 copies (same bf16-rounded values) for the pure-JAX reference
        "raw_w_ih": w_ih, "raw_w_hh": w_hh, "raw_b_ih": b_ih, "raw_b_hh": b_hh,
        "raw_w_lin": w_lin, "raw_b_lin": b_lin,
    }


# -----------------------------------------------------------------------------
# Pure-JAX reference matching torch semantics (gate order i, f, g, o)
# -----------------------------------------------------------------------------
def reference_forward(params, features, captions):
    emb = params["embedding"]
    cap = captions[:, :-1]
    embeds = emb[cap]
    inputs = jnp.concatenate([features[:, None, :], embeds], axis=1)  # (B, T, E)
    B, T, E = inputs.shape
    H = params["hidden_size"]

    w_ih_t = jnp.transpose(params["raw_w_ih"])     # (E, 4H)
    w_hh_t = jnp.transpose(params["raw_w_hh"])     # (H, 4H)
    b = (params["raw_b_ih"] + params["raw_b_hh"])[None, :]
    w_lin_t = jnp.transpose(params["raw_w_lin"])   # (H, V)
    b_lin = params["raw_b_lin"][None, :]

    def step(carry, x_t):
        h, c = carry
        gates = x_t @ w_ih_t + h @ w_hh_t + b
        i_g = jax.nn.sigmoid(gates[:, 0 * H:1 * H])
        f_g = jax.nn.sigmoid(gates[:, 1 * H:2 * H])
        g_g = jnp.tanh(gates[:, 2 * H:3 * H])
        o_g = jax.nn.sigmoid(gates[:, 3 * H:4 * H])
        c_new = f_g * c + i_g * g_g
        h_new = o_g * jnp.tanh(c_new)
        return (h_new, c_new), h_new

    h0 = jnp.zeros((B, H), jnp.float32)
    c0 = jnp.zeros((B, H), jnp.float32)
    _, hs = jax.lax.scan(step, (h0, c0), jnp.transpose(inputs, (1, 0, 2)))
    hs = jnp.transpose(hs, (1, 0, 2))              # (B, T, H)
    return hs @ w_lin_t + b_lin


if __name__ == "__main__":
    embed_size, hidden_size, vocab_size = 32, 32, 64
    batch, cap_len = 2, 9                          # T = (cap_len-1) tokens + 1 feature = 9

    key = jax.random.PRNGKey(0)
    k_feat, k_cap, k_par = jax.random.split(key, 3)

    params = make_params(k_par, embed_size, hidden_size, vocab_size)
    features = jax.random.normal(k_feat, (batch, embed_size), jnp.float32)
    captions = jax.random.randint(k_cap, (batch, cap_len), 0, vocab_size, jnp.int32)

    out = captioning_forward(params, features, captions)
    out = jax.block_until_ready(out)

    ref = reference_forward(params, features, captions)
    assert out.shape == (batch, cap_len, vocab_size), out.shape
    # Tolerance loosened vs. the f32-only version because MXU operands are fed
    # in bf16 (weights identical; only activation rounding differs).
    np.testing.assert_allclose(np.asarray(out), np.asarray(ref), atol=2e-2, rtol=2e-2)

    # TODO(synk): on v7x, shard the (padded) batch of the recurrence across the
    # two TensorCores once B is non-trivial; at B=2 there is nothing to split.
    print("KERNEL_OK")
</pallas_src>

<mosaic_0001>
module attributes {stable_mosaic.version = 11 : i64} {
  func.func @_lstm_fused_kernel(%arg0: i32, %arg1: memref<9x8x32xf32, #tpu.memory_space<vmem>>, %arg2: memref<32x512xbf16, #tpu.memory_space<vmem>>, %arg3: memref<1x512xf32, #tpu.memory_space<vmem>>, %arg4: memref<128x512xbf16, #tpu.memory_space<vmem>>, %arg5: memref<9x8x128xf32, #tpu.memory_space<vmem>>, %arg6: memref<9x8x512xf32, #tpu.memory_space<vmem>>, %arg7: memref<8x128xf32, #tpu.memory_space<vmem>>, %arg8: memref<8x128xf32, #tpu.memory_space<vmem>>) attributes {dimension_semantics = [#tpu.dimension_semantics<arbitrary>], iteration_bounds = array<i64: 1>, scalar_prefetch = 0 : i64, scratch_operands = 3 : i64, tpu.core_type = #tpu.core_type<tc>, window_params = [{pipeline_mode = #tpu.pipeline_mode<synchronous>, transform_indices = @transform_0, window_bounds = array<i64: 9, 8, 32>}, {pipeline_mode = #tpu.pipeline_mode<synchronous>, transform_indices = @transform_1, window_bounds = array<i64: 32, 512>}, {pipeline_mode = #tpu.pipeline_mode<synchronous>, transform_indices = @transform_2, window_bounds = array<i64: 1, 512>}, {pipeline_mode = #tpu.pipeline_mode<synchronous>, transform_indices = @transform_3, window_bounds = array<i64: 128, 512>}, {pipeline_mode = #tpu.pipeline_mode<synchronous>, transform_indices = @transform_4, window_bounds = array<i64: 9, 8, 128>}]} {
    %c0 = arith.constant 0 : index
    %c0_0 = arith.constant 0 : index
    %c0_1 = arith.constant 0 : index
    %0 = vector.load %arg1[%c0, %c0_0, %c0_1] : memref<9x8x32xf32, #tpu.memory_space<vmem>>, vector<9x8x32xf32>
    %1 = vector.shape_cast %0 : vector<9x8x32xf32> to vector<72x32xf32>
    %2 = arith.truncf %1 : vector<72x32xf32> to vector<72x32xbf16>
    %c0_2 = arith.constant 0 : index
    %c0_3 = arith.constant 0 : index
    %3 = vector.load %arg2[%c0_2, %c0_3] : memref<32x512xbf16, #tpu.memory_space<vmem>>, vector<32x512xbf16>
    %cst = arith.constant dense<0.000000e+00> : vector<72x512xf32>
    %4 = tpu.matmul %2, %3, %cst {dimension_numbers = #tpu.dot_dimension_numbers<[1], [0], [0], [1], [0, 0, 1, 1], [], []>} : vector<72x32xbf16>, vector<32x512xbf16>, vector<72x512xf32> -> vector<72x512xf32>
    %c0_4 = arith.constant 0 : index
    %c0_5 = arith.constant 0 : index
    %5 = vector.load %arg3[%c0_4, %c0_5] : memref<1x512xf32, #tpu.memory_space<vmem>>, vector<1x512xf32>
    %6 = vector.broadcast %5 : vector<1x512xf32> to vector<72x512xf32>
    %7 = arith.addf %4, %6 : vector<72x512xf32>
    %8 = vector.shape_cast %7 : vector<72x512xf32> to vector<9x8x512xf32>
    %c0_6 = arith.constant 0 : index
    %c0_7 = arith.constant 0 : index
    %c0_8 = arith.constant 0 : index
    %9 = vector.load %arg6[%c0_6, %c0_7, %c0_8] : memref<9x8x512xf32, #tpu.memory_space<vmem>>, vector<9x8x512xf32>
    tpu.vector_store %arg6[%c0_6, %c0_7, %c0_8], %8 {strides = array<i32>} : memref<9x8x512xf32, #tpu.memory_space<vmem>>, vector<9x8x512xf32>,
    %cst_9 = arith.constant 0.000000e+00 : f32
    %10 = vector.broadcast %cst_9 : f32 to vector<8x128xf32>
    %c0_10 = arith.constant 0 : index
    %c0_11 = arith.constant 0 : index
    %11 = vector.load %arg7[%c0_10, %c0_11] : memref<8x128xf32, #tpu.memory_space<vmem>>, vector<8x128xf32>
    tpu.vector_store %arg7[%c0_10, %c0_11], %10 {strides = array<i32>} : memref<8x128xf32, #tpu.memory_space<vmem>>, vector<8x128xf32>,
    %cst_12 = arith.constant 0.000000e+00 : f32
    %12 = vector.broadcast %cst_12 : f32 to vector<8x128xf32>
    %c0_13 = arith.constant 0 : index
    %c0_14 = arith.constant 0 : index
    %13 = vector.load %arg8[%c0_13, %c0_14] : memref<8x128xf32, #tpu.memory_space<vmem>>, vector<8x128xf32>
    tpu.vector_store %arg8[%c0_13, %c0_14], %12 {strides = array<i32>} : memref<8x128xf32, #tpu.memory_space<vmem>>, vector<8x128xf32>,
    %c0_i32 = arith.constant 0 : i32
    %c0_15 = arith.constant 0 : index
    %c0_16 = arith.constant 0 : index
    %14 = vector.load %arg7[%c0_15, %c0_16] : memref<8x128xf32, #tpu.memory_space<vmem>>, vector<8x128xf32>
    %c0_17 = arith.constant 0 : index
    %c0_18 = arith.constant 0 : index
    %15 = vector.load %arg8[%c0_17, %c0_18] : memref<8x128xf32, #tpu.memory_space<vmem>>, vector<8x128xf32>
    %16 = arith.index_cast %c0_i32 : i32 to index
    %c0_19 = arith.constant 0 : index
    %c0_20 = arith.constant 0 : index
    %17 = vector.load %arg6[%16, %c0_19, %c0_20] : memref<9x8x512xf32, #tpu.memory_space<vmem>>, vector<1x8x512xf32>
    %18 = vector.shape_cast %17 : vector<1x8x512xf32> to vector<8x512xf32>
    %19 = arith.truncf %14 : vector<8x128xf32> to vector<8x128xbf16>
    %c0_21 = arith.constant 0 : index
    %c0_22 = arith.constant 0 : index
    %20 = vector.load %arg4[%c0_21, %c0_22] : memref<128x512xbf16, #tpu.memory_space<vmem>>, vector<128x512xbf16>
    %cst_23 = arith.constant dense<0.000000e+00> : vector<8x512xf32>
    %21 = tpu.matmul %19, %20, %cst_23 {dimension_numbers = #tpu.dot_dimension_numbers<[1], [0], [0], [1], [0, 0, 1, 1], [], []>} : vector<8x128xbf16>, vector<128x512xbf16>, vector<8x512xf32> -> vector<8x512xf32>
    %22 = arith.addf %18, %21 : vector<8x512xf32>
    %23 = vector.extract_strided_slice %22 {offsets = [0, 0], sizes = [8, 128], strides = [1, 1]} : vector<8x512xf32> to vector<8x128xf32>
    %24 = arith.negf %23 : vector<8x128xf32>
    %25 = math.exp %24 : vector<8x128xf32>
    %cst_24 = arith.constant 1.000000e+00 : f32
    %26 = vector.broadcast %cst_24 : f32 to vector<8x128xf32>
    %27 = arith.addf %26, %25 : vector<8x128xf32>
    %28 = arith.divf %26, %27 : vector<8x128xf32>
    %29 = vector.extract_strided_slice %22 {offsets = [0, 128], sizes = [8, 128], strides = [1, 1]} : vector<8x512xf32> to vector<8x128xf32>
    %30 = arith.negf %29 : vector<8x128xf32>
    %31 = math.exp %30 : vector<8x128xf32>
    %cst_25 = arith.constant 1.000000e+00 : f32
    %32 = vector.broadcast %cst_25 : f32 to vector<8x128xf32>
    %33 = arith.addf %32, %31 : vector<8x128xf32>
    %34 = arith.divf %32, %33 : vector<8x128xf32>
    %35 = vector.extract_strided_slice %22 {offsets = [0, 256], sizes = [8, 128], strides = [1, 1]} : vector<8x512xf32> to vector<8x128xf32>
    %36 = math.tanh %35 : vector<8x128xf32>
    %37 = vector.extract_strided_slice %22 {offsets = [0, 384], sizes = [8, 128], strides = [1, 1]} : vector<8x512xf32> to vector<8x128xf32>
    %38 = arith.negf %37 : vector<8x128xf32>
    %39 = math.exp %38 : vector<8x128xf32>
    %cst_26 = arith.constant 1.000000e+00 : f32
    %40 = vector.broadcast %cst_26 : f32 to vector<8x128xf32>
    %41 = arith.addf %40, %39 : vector<8x128xf32>
    %42 = arith.divf %40, %41 : vector<8x128xf32>
    %43 = arith.mulf %34, %15 : vector<8x128xf32>
    %44 = arith.mulf %28, %36 : vector<8x128xf32>
    %45 = arith.addf %43, %44 : vector<8x128xf32>
    %46 = math.tanh %45 : vector<8x128xf32>
    %47 = arith.mulf %42, %46 : vector<8x128xf32>
    %c0_27 = arith.constant 0 : index
    %c0_28 = arith.constant 0 : index
    %48 = vector.load %arg8[%c0_27, %c0_28] : memref<8x128xf32, #tpu.memory_space<vmem>>, vector<8x128xf32>
    tpu.vector_store %arg8[%c0_27, %c0_28], %45 {strides = array<i32>} : memref<8x128xf32, #tpu.memory_space<vmem>>, vector<8x128xf32>,
    %c0_29 = arith.constant 0 : index
    %c0_30 = arith.constant 0 : index
    %49 = vector.load %arg7[%c0_29, %c0_30] : memref<8x128xf32, #tpu.memory_space<vmem>>, vector<8x128xf32>
    tpu.vector_store %arg7[%c0_29, %c0_30], %47 {strides = array<i32>} : memref<8x128xf32, #tpu.memory_space<vmem>>, vector<8x128xf32>,
    %50 = arith.index_cast %c0_i32 : i32 to index
    %c0_31 = arith.constant 0 : index
    %c0_32 = arith.constant 0 : index
    %51 = vector.load %arg5[%50, %c0_31, %c0_32] : memref<9x8x128xf32, #tpu.memory_space<vmem>>, vector<1x8x128xf32>
    %52 = vector.shape_cast %51 : vector<1x8x128xf32> to vector<8x128xf32>
    %53 = vector.shape_cast %47 : vector<8x128xf32> to vector<1x8x128xf32>
    tpu.vector_store %arg5[%50, %c0_31, %c0_32], %53 {strides = array<i32>} : memref<9x8x128xf32, #tpu.memory_space<vmem>>, vector<1x8x128xf32>,
    %c1_i32 = arith.constant 1 : i32
    %c0_33 = arith.constant 0 : index
    %c0_34 = arith.constant 0 : index
    %54 = vector.load %arg7[%c0_33, %c0_34] : memref<8x128xf32, #tpu.memory_space<vmem>>, vector<8x128xf32>
    %c0_35 = arith.constant 0 : index
    %c0_36 = arith.constant 0 : index
    %55 = vector.load %arg8[%c0_35, %c0_36] : memref<8x128xf32, #tpu.memory_space<vmem>>, vector<8x128xf32>
    %56 = arith.index_cast %c1_i32 : i32 to index
    %c0_37 = arith.constant 0 : index
    %c0_38 = arith.constant 0 : index
    %57 = vector.load %arg6[%56, %c0_37, %c0_38] : memref<9x8x512xf32, #tpu.memory_space<vmem>>, vector<1x8x512xf32>
    %58 = vector.shape_cast %57 : vector<1x8x512xf32> to vector<8x512xf32>
    %59 = arith.truncf %54 : vector<8x128xf32> to vector<8x128xbf16>
    %c0_39 = arith.constant 0 : index
    %c0_40 = arith.constant 0 : index
    %60 = vector.load %arg4[%c0_39, %c0_40] : memref<128x512xbf16, #tpu.memory_space<vmem>>, vector<128x512xbf16>
    %cst_41 = arith.constant dense<0.000000e+00> : vector<8x512xf32>
    %61 = tpu.matmul %59, %60, %cst_41 {dimension_numbers = #tpu.dot_dimension_numbers<[1], [0], [0], [1], [0, 0, 1, 1], [], []>} : vector<8x128xbf16>, vector<128x512xbf16>, vector<8x512xf32> -> vector<8x512xf32>
    %62 = arith.addf %58, %61 : vector<8x512xf32>
    %63 = vector.extract_strided_slice %62 {offsets = [0, 0], sizes = [8, 128], strides = [1, 1]} : vector<8x512xf32> to vector<8x128xf32>
    %64 = arith.negf %63 : vector<8x128xf32>
    %65 = math.exp %64 : vector<8x128xf32>
    %cst_42 = arith.constant 1.000000e+00 : f32
    %66 = vector.broadcast %cst_42 : f32 to vector<8x128xf32>
    %67 = arith.addf %66, %65 : vector<8x128xf32>
    %68 = arith.divf %66, %67 : vector<8x128xf32>
    %69 = vector.extract_strided_slice %62 {offsets = [0, 128], sizes = [8, 128], strides = [1, 1]} : vector<8x512xf32> to vector<8x128xf32>
    %70 = arith.negf %69 : vector<8x128xf32>
    %71 = math.exp %70 : vector<8x128xf32>
    %cst_43 = arith.constant 1.000000e+00 : f32
    %72 = vector.broadcast %cst_43 : f32 to vector<8x128xf32>
    %73 = arith.addf %72, %71 : vector<8x128xf32>
    %74 = arith.divf %72, %73 : vector<8x128xf32>
    %75 = vector.extract_strided_slice %62 {offsets = [0, 256], sizes = [8, 128], strides = [1, 1]} : vector<8x512xf32> to vector<8x128xf32>
    %76 = math.tanh %75 : vector<8x128xf32>
    %77 = vector.extract_strided_slice %62 {offsets = [0, 384], sizes = [8, 128], strides = [1, 1]} : vector<8x512xf32> to vector<8x128xf32>
    %78 = arith.negf %77 : vector<8x128xf32>
    %79 = math.exp %78 : vector<8x128xf32>
    %cst_44 = arith.constant 1.000000e+00 : f32
    %80 = vector.broadcast %cst_44 : f32 to vector<8x128xf32>
    %81 = arith.addf %80, %79 : vector<8x128xf32>
    %82 = arith.divf %80, %81 : vector<8x128xf32>
    %83 = arith.mulf %74, %55 : vector<8x128xf32>
    %84 = arith.mulf %68, %76 : vector<8x128xf32>
    %85 = arith.addf %83, %84 : vector<8x128xf32>
    %86 = math.tanh %85 : vector<8x128xf32>
    %87 = arith.mulf %82, %86 : vector<8x128xf32>
    %c0_45 = arith.constant 0 : index
    %c0_46 = arith.constant 0 : index
    %88 = vector.load %arg8[%c0_45, %c0_46] : memref<8x128xf32, #tpu.memory_space<vmem>>, vector<8x128xf32>
    tpu.vector_store %arg8[%c0_45, %c0_46], %85 {strides = array<i32>} : memref<8x128xf32, #tpu.memory_space<vmem>>, vector<8x128xf32>,
    %c0_47 = arith.constant 0 : index
    %c0_48 = arith.constant 0 : index
    %89 = vector.load %arg7[%c0_47, %c0_48] : memref<8x128xf32, #tpu.memory_space<vmem>>, vector<8x128xf32>
    tpu.vector_store %arg7[%c0_47, %c0_48], %87 {strides = array<i32>} : memref<8x128xf32, #tpu.memory_space<vmem>>, vector<8x128xf32>,
    %90 = arith.index_cast %c1_i32 : i32 to index
    %c0_49 = arith.constant 0 : index
    %c0_50 = arith.constant 0 : index
    %91 = vector.load %arg5[%90, %c0_49, %c0_50] : memref<9x8x128xf32, #tpu.memory_space<vmem>>, vector<1x8x128xf32>
    %92 = vector.shape_cast %91 : vector<1x8x128xf32> to vector<8x128xf32>
    %93 = vector.shape_cast %87 : vector<8x128xf32> to vector<1x8x128xf32>
    tpu.vector_store %arg5[%90, %c0_49, %c0_50], %93 {strides = array<i32>} : memref<9x8x128xf32, #tpu.memory_space<vmem>>, vector<1x8x128xf32>,
    %c2_i32 = arith.constant 2 : i32
    %c0_51 = arith.constant 0 : index
    %c0_52 = arith.constant 0 : index
    %94 = vector.load %arg7[%c0_51, %c0_52] : memref<8x128xf32, #tpu.memory_space<vmem>>, vector<8x128xf32>
    %c0_53 = arith.constant 0 : index
    %c0_54 = arith.constant 0 : index
    %95 = vector.load %arg8[%c0_53, %c0_54] : memref<8x128xf32, #tpu.memory_space<vmem>>, vector<8x128xf32>
    %96 = arith.index_cast %c2_i32 : i32 to index
    %c0_55 = arith.constant 0 : index
    %c0_56 = arith.constant 0 : index
    %97 = vector.load %arg6[%96, %c0_55, %c0_56] : memref<9x8x512xf32, #tpu.memory_space<vmem>>, vector<1x8x512xf32>
    %98 = vector.shape_cast %97 : vector<1x8x512xf32> to vector<8x512xf32>
    %99 = arith.truncf %94 : vector<8x128xf32> to vector<8x128xbf16>
    %c0_57 = arith.constant 0 : index
    %c0_58 = arith.constant 0 : index
    %100 = vector.load %arg4[%c0_57, %c0_58] : memref<128x512xbf16, #tpu.memory_space<vmem>>, vector<128x512xbf16>
    %cst_59 = arith.constant dense<0.000000e+00> : vector<8x512xf32>
    %101 = tpu.matmul %99, %100, %cst_59 {dimension_numbers = #tpu.dot_dimension_numbers<[1], [0], [0], [1], [0, 0, 1, 1], [], []>} : vector<8x128xbf16>, vector<128x512xbf16>, vector<8x512xf32> -> vector<8x512xf32>
    %102 = arith.addf %98, %101 : vector<8x512xf32>
    %103 = vector.extract_strided_slice %102 {offsets = [0, 0], sizes = [8, 128], strides = [1, 1]} : vector<8x512xf32> to vector<8x128xf32>
    %104 = arith.negf %103 : vector<8x128xf32>
    %105 = math.exp %104 : vector<8x128xf32>
    %cst_60 = arith.constant 1.000000e+00 : f32
    %106 = vector.broadcast %cst_60 : f32 to vector<8x128xf32>
    %107 = arith.addf %106, %105 : vector<8x128xf32>
    %108 = arith.divf %106, %107 : vector<8x128xf32>
    %109 = vector.extract_strided_slice %102 {offsets = [0, 128], sizes = [8, 128], strides = [1, 1]} : vector<8x512xf32> to vector<8x128xf32>
    %110 = arith.negf %109 : vector<8x128xf32>
    %111 = math.exp %110 : vector<8x128xf32>
    %cst_61 = arith.constant 1.000000e+00 : f32
    %112 = vector.broadcast %cst_61 : f32 to vector<8x128xf32>
    %113 = arith.addf %112, %111 : vector<8x128xf32>
    %114 = arith.divf %112, %113 : vector<8x128xf32>
    %115 = vector.extract_strided_slice %102 {offsets = [0, 256], sizes = [8, 128], strides = [1, 1]} : vector<8x512xf32> to vector<8x128xf32>
    %116 = math.tanh %115 : vector<8x128xf32>
    %117 = vector.extract_strided_slice %102 {offsets = [0, 384], sizes = [8, 128], strides = [1, 1]} : vector<8x512xf32> to vector<8x128xf32>
    %118 = arith.negf %117 : vector<8x128xf32>
    %119 = math.exp %118 : vector<8x128xf32>
    %cst_62 = arith.constant 1.000000e+00 : f32
    %120 = vector.broadcast %cst_62 : f32 to vector<8x128xf32>
    %121 = arith.addf %120, %119 : vector<8x128xf32>
    %122 = arith.divf %120, %121 : vector<8x128xf32>
    %123 = arith.mulf %114, %95 : vector<8x128xf32>
    %124 = arith.mulf %108, %116 : vector<8x128xf32>
    %125 = arith.addf %123, %124 : vector<8x128xf32>
    %126 = math.tanh %125 : vector<8x128xf32>
    %127 = arith.mulf %122, %126 : vector<8x128xf32>
    %c0_63 = arith.constant 0 : index
    %c0_64 = arith.constant 0 : index
    %128 = vector.load %arg8[%c0_63, %c0_64] : memref<8x128xf32, #tpu.memory_space<vmem>>, vector<8x128xf32>
    tpu.vector_store %arg8[%c0_63, %c0_64], %125 {strides = array<i32>} : memref<8x128xf32, #tpu.memory_space<vmem>>, vector<8x128xf32>,
    %c0_65 = arith.constant 0 : index
    %c0_66 = arith.constant 0 : index
    %129 = vector.load %arg7[%c0_65, %c0_66] : memref<8x128xf32, #tpu.memory_space<vmem>>, vector<8x128xf32>
    tpu.vector_store %arg7[%c0_65, %c0_66], %127 {strides = array<i32>} : memref<8x128xf32, #tpu.memory_space<vmem>>, vector<8x128xf32>,
    %130 = arith.index_cast %c2_i32 : i32 to index
    %c0_67 = arith.constant 0 : index
    %c0_68 = arith.constant 0 : index
    %131 = vector.load %arg5[%130, %c0_67, %c0_68] : memref<9x8x128xf32, #tpu.memory_space<vmem>>, vector<1x8x128xf32>
    %132 = vector.shape_cast %131 : vector<1x8x128xf32> to vector<8x128xf32>
    %133 = vector.shape_cast %127 : vector<8x128xf32> to vector<1x8x128xf32>
    tpu.vector_store %arg5[%130, %c0_67, %c0_68], %133 {strides = array<i32>} : memref<9x8x128xf32, #tpu.memory_space<vmem>>, vector<1x8x128xf32>,
    %c3_i32 = arith.constant 3 : i32
    %c0_69 = arith.constant 0 : index
    %c0_70 = arith.constant 0 : index
    %134 = vector.load %arg7[%c0_69, %c0_70] : memref<8x128xf32, #tpu.memory_space<vmem>>, vector<8x128xf32>
    %c0_71 = arith.constant 0 : index
    %c0_72 = arith.constant 0 : index
    %135 = vector.load %arg8[%c0_71, %c0_72] : memref<8x128xf32, #tpu.memory_space<vmem>>, vector<8x128xf32>
    %136 = arith.index_cast %c3_i32 : i32 to index
    %c0_73 = arith.constant 0 : index
    %c0_74 = arith.constant 0 : index
    %137 = vector.load %arg6[%136, %c0_73, %c0_74] : memref<9x8x512xf32, #tpu.memory_space<vmem>>, vector<1x8x512xf32>
    %138 = vector.shape_cast %137 : vector<1x8x512xf32> to vector<8x512xf32>
    %139 = arith.truncf %134 : vector<8x128xf32> to vector<8x128xbf16>
    %c0_75 = arith.constant 0 : index
    %c0_76 = arith.constant 0 : index
    %140 = vector.load %arg4[%c0_75, %c0_76] : memref<128x512xbf16, #tpu.memory_space<vmem>>, vector<128x512xbf16>
    %cst_77 = arith.constant dense<0.000000e+00> : vector<8x512xf32>
    %141 = tpu.matmul %139, %140, %cst_77 {dimension_numbers = #tpu.dot_dimension_numbers<[1], [0], [0], [1], [0, 0, 1, 1], [], []>} : vector<8x128xbf16>, vector<128x512xbf16>, vector<8x512xf32> -> vector<8x512xf32>
    %142 = arith.addf %138, %141 : vector<8x512xf32>
    %143 = vector.extract_strided_slice %142 {offsets = [0, 0], sizes = [8, 128], strides = [1, 1]} : vector<8x512xf32> to vector<8x128xf32>
    %144 = arith.negf %143 : vector<8x128xf32>
    %145 = math.exp %144 : vector<8x128xf32>
    %cst_78 = arith.constant 1.000000e+00 : f32
    %146 = vector.broadcast %cst_78 : f32 to vector<8x128xf32>
    %147 = arith.addf %146, %145 : vector<8x128xf32>
    %148 = arith.divf %146, %147 : vector<8x128xf32>
    %149 = vector.extract_strided_slice %142 {offsets = [0, 128], sizes = [8, 128], strides = [1, 1]} : vector<8x512xf32> to vector<8x128xf32>
    %150 = arith.negf %149 : vector<8x128xf32>
    %151 = math.exp %150 : vector<8x128xf32>
    %cst_79 = arith.constant 1.000000e+00 : f32
    %152 = vector.broadcast %cst_79 : f32 to vector<8x128xf32>
    %153 = arith.addf %152, %151 : vector<8x128xf32>
    %154 = arith.divf %152, %153 : vector<8x128xf32>
    %155 = vector.extract_strided_slice %142 {offsets = [0, 256], sizes = [8, 128], strides = [1, 1]} : vector<8x512xf32> to vector<8x128xf32>
    %156 = math.tanh %155 : vector<8x128xf32>
    %157 = vector.extract_strided_slice %142 {offsets = [0, 384], sizes = [8, 128], strides = [1, 1]} : vector<8x512xf32> to vector<8x128xf32>
    %158 = arith.negf %157 : vector<8x128xf32>
    %159 = math.exp %158 : vector<8x128xf32>
    %cst_80 = arith.constant 1.000000e+00 : f32
    %160 = vector.broadcast %cst_80 : f32 to vector<8x128xf32>
    %161 = arith.addf %160, %159 : vector<8x128xf32>
    %162 = arith.divf %160, %161 : vector<8x128xf32>
    %163 = arith.mulf %154, %135 : vector<8x128xf32>
    %164 = arith.mulf %148, %156 : vector<8x128xf32>
    %165 = arith.addf %163, %164 : vector<8x128xf32>
    %166 = math.tanh %165 : vector<8x128xf32>
    %167 = arith.mulf %162, %166 : vector<8x128xf32>
    %c0_81 = arith.constant 0 : index
    %c0_82 = arith.constant 0 : index
    %168 = vector.load %arg8[%c0_81, %c0_82] : memref<8x128xf32, #tpu.memory_space<vmem>>, vector<8x128xf32>
    tpu.vector_store %arg8[%c0_81, %c0_82], %165 {strides = array<i32>} : memref<8x128xf32, #tpu.memory_space<vmem>>, vector<8x128xf32>,
    %c0_83 = arith.constant 0 : index
    %c0_84 = arith.constant 0 : index
    %169 = vector.load %arg7[%c0_83, %c0_84] : memref<8x128xf32, #tpu.memory_space<vmem>>, vector<8x128xf32>
    tpu.vector_store %arg7[%c0_83, %c0_84], %167 {strides = array<i32>} : memref<8x128xf32, #tpu.memory_space<vmem>>, vector<8x128xf32>,
    %170 = arith.index_cast %c3_i32 : i32 to index
    %c0_85 = arith.constant 0 : index
    %c0_86 = arith.constant 0 : index
    %171 = vector.load %arg5[%170, %c0_85, %c0_86] : memref<9x8x128xf32, #tpu.memory_space<vmem>>, vector<1x8x128xf32>
    %172 = vector.shape_cast %171 : vector<1x8x128xf32> to vector<8x128xf32>
    %173 = vector.shape_cast %167 : vector<8x128xf32> to vector<1x8x128xf32>
    tpu.vector_store %arg5[%170, %c0_85, %c0_86], %173 {strides = array<i32>} : memref<9x8x128xf32, #tpu.memory_space<vmem>>, vector<1x8x128xf32>,
    %c4_i32 = arith.constant 4 : i32
    %c0_87 = arith.constant 0 : index
    %c0_88 = arith.constant 0 : index
    %174 = vector.load %arg7[%c0_87, %c0_88] : memref<8x128xf32, #tpu.memory_space<vmem>>, vector<8x128xf32>
    %c0_89 = arith.constant 0 : index
    %c0_90 = arith.constant 0 : index
    %175 = vector.load %arg8[%c0_89, %c0_90] : memref<8x128xf32, #tpu.memory_space<vmem>>, vector<8x128xf32>
    %176 = arith.index_cast %c4_i32 : i32 to index
    %c0_91 = arith.constant 0 : index
    %c0_92 = arith.constant 0 : index
    %177 = vector.load %arg6[%176, %c0_91, %c0_92] : memref<9x8x512xf32, #tpu.memory_space<vmem>>, vector<1x8x512xf32>
    %178 = vector.shape_cast %177 : vector<1x8x512xf32> to vector<8x512xf32>
    %179 = arith.truncf %174 : vector<8x128xf32> to vector<8x128xbf16>
    %c0_93 = arith.constant 0 : index
    %c0_94 = arith.constant 0 : index
    %180 = vector.load %arg4[%c0_93, %c0_94] : memref<128x512xbf16, #tpu.memory_space<vmem>>, vector<128x512xbf16>
    %cst_95 = arith.constant dense<0.000000e+00> : vector<8x512xf32>
    %181 = tpu.matmul %179, %180, %cst_95 {dimension_numbers = #tpu.dot_dimension_numbers<[1], [0], [0], [1], [0, 0, 1, 1], [], []>} : vector<8x128xbf16>, vector<128x512xbf16>, vector<8x512xf32> -> vector<8x512xf32>
    %182 = arith.addf %178, %181 : vector<8x512xf32>
    %183 = vector.extract_strided_slice %182 {offsets = [0, 0], sizes = [8, 128], strides = [1, 1]} : vector<8x512xf32> to vector<8x128xf32>
    %184 = arith.negf %183 : vector<8x128xf32>
    %185 = math.exp %184 : vector<8x128xf32>
    %cst_96 = arith.constant 1.000000e+00 : f32
    %186 = vector.broadcast %cst_96 : f32 to vector<8x128xf32>
    %187 = arith.addf %186, %185 : vector<8x128xf32>
    %188 = arith.divf %186, %187 : vector<8x128xf32>
    %189 = vector.extract_strided_slice %182 {offsets = [0, 128], sizes = [8, 128], strides = [1, 1]} : vector<8x512xf32> to vector<8x128xf32>
    %190 = arith.negf %189 : vector<8x128xf32>
    %191 = math.exp %190 : vector<8x128xf32>
    %cst_97 = arith.constant 1.000000e+00 : f32
    %192 = vector.broadcast %cst_97 : f32 to vector<8x128xf32>
    %193 = arith.addf %192, %191 : vector<8x128xf32>
    %194 = arith.divf %192, %193 : vector<8x128xf32>
    %195 = vector.extract_strided_slice %182 {offsets = [0, 256], sizes = [8, 128], strides = [1, 1]} : vector<8x512xf32> to vector<8x128xf32>
    %196 = math.tanh %195 : vector<8x128xf32>
    %197 = vector.extract_strided_slice %182 {offsets = [0, 384], sizes = [8, 128], strides = [1, 1]} : vector<8x512xf32> to vector<8x128xf32>
    %198 = arith.negf %197 : vector<8x128xf32>
    %199 = math.exp %198 : vector<8x128xf32>
    %cst_98 = arith.constant 1.000000e+00 : f32
    %200 = vector.broadcast %cst_98 : f32 to vector<8x128xf32>
    %201 = arith.addf %200, %199 : vector<8x128xf32>
    %202 = arith.divf %200, %201 : vector<8x128xf32>
    %203 = arith.mulf %194, %175 : vector<8x128xf32>
    %204 = arith.mulf %188, %196 : vector<8x128xf32>
    %205 = arith.addf %203, %204 : vector<8x128xf32>
    %206 = math.tanh %205 : vector<8x128xf32>
    %207 = arith.mulf %202, %206 : vector<8x128xf32>
    %c0_99 = arith.constant 0 : index
    %c0_100 = arith.constant 0 : index
    %208 = vector.load %arg8[%c0_99, %c0_100] : memref<8x128xf32, #tpu.memory_space<vmem>>, vector<8x128xf32>
    tpu.vector_store %arg8[%c0_99, %c0_100], %205 {strides = array<i32>} : memref<8x128xf32, #tpu.memory_space<vmem>>, vector<8x128xf32>,
    %c0_101 = arith.constant 0 : index
    %c0_102 = arith.constant 0 : index
    %209 = vector.load %arg7[%c0_101, %c0_102] : memref<8x128xf32, #tpu.memory_space<vmem>>, vector<8x128xf32>
    tpu.vector_store %arg7[%c0_101, %c0_102], %207 {strides = array<i32>} : memref<8x128xf32, #tpu.memory_space<vmem>>, vector<8x128xf32>,
    %210 = arith.index_cast %c4_i32 : i32 to index
    %c0_103 = arith.constant 0 : index
    %c0_104 = arith.constant 0 : index
    %211 = vector.load %arg5[%210, %c0_103, %c0_104] : memref<9x8x128xf32, #tpu.memory_space<vmem>>, vector<1x8x128xf32>
    %212 = vector.shape_cast %211 : vector<1x8x128xf32> to vector<8x128xf32>
    %213 = vector.shape_cast %207 : vector<8x128xf32> to vector<1x8x128xf32>
    tpu.vector_store %arg5[%210, %c0_103, %c0_104], %213 {strides = array<i32>} : memref<9x8x128xf32, #tpu.memory_space<vmem>>, vector<1x8x128xf32>,
    %c5_i32 = arith.constant 5 : i32
    %c0_105 = arith.constant 0 : index
    %c0_106 = arith.constant 0 : index
    %214 = vector.load %arg7[%c0_105, %c0_106] : memref<8x128xf32, #tpu.memory_space<vmem>>, vector<8x128xf32>
    %c0_107 = arith.constant 0 : index
    %c0_108 = arith.constant 0 : index
    %215 = vector.load %arg8[%c0_107, %c0_108] : memref<8x128xf32, #tpu.memory_space<vmem>>, vector<8x128xf32>
    %216 = arith.index_cast %c5_i32 : i32 to index
    %c0_109 = arith.constant 0 : index
    %c0_110 = arith.constant 0 : index
    %217 = vector.load %arg6[%216, %c0_109, %c0_110] : memref<9x8x512xf32, #tpu.memory_space<vmem>>, vector<1x8x512xf32>
    %218 = vector.shape_cast %217 : vector<1x8x512xf32> to vector<8x512xf32>
    %219 = arith.truncf %214 : vector<8x128xf32> to vector<8x128xbf16>
    %c0_111 = arith.constant 0 : index
    %c0_112 = arith.constant 0 : index
    %220 = vector.load %arg4[%c0_111, %c0_112] : memref<128x512xbf16, #tpu.memory_space<vmem>>, vector<128x512xbf16>
    %cst_113 = arith.constant dense<0.000000e+00> : vector<8x512xf32>
    %221 = tpu.matmul %219, %220, %cst_113 {dimension_numbers = #tpu.dot_dimension_numbers<[1], [0], [0], [1], [0, 0, 1, 1], [], []>} : vector<8x128xbf16>, vector<128x512xbf16>, vector<8x512xf32> -> vector<8x512xf32>
    %222 = arith.addf %218, %221 : vector<8x512xf32>
    %223 = vector.extract_strided_slice %222 {offsets = [0, 0], sizes = [8, 128], strides = [1, 1]} : vector<8x512xf32> to vector<8x128xf32>
    %224 = arith.negf %223 : vector<8x128xf32>
    %225 = math.exp %224 : vector<8x128xf32>
    %cst_114 = arith.constant 1.000000e+00 : f32
    %226 = vector.broadcast %cst_114 : f32 to vector<8x128xf32>
    %227 = arith.addf %226, %225 : vector<8x128xf32>
    %228 = arith.divf %226, %227 : vector<8x128xf32>
    %229 = vector.extract_strided_slice %222 {offsets = [0, 128], sizes = [8, 128], strides = [1, 1]} : vector<8x512xf32> to vector<8x128xf32>
    %230 = arith.negf %229 : vector<8x128xf32>
    %231 = math.exp %230 : vector<8x128xf32>
    %cst_115 = arith.constant 1.000000e+00 : f32
    %232 = vector.broadcast %cst_115 : f32 to vector<8x128xf32>
    %233 = arith.addf %232, %231 : vector<8x128xf32>
    %234 = arith.divf %232, %233 : vector<8x128xf32>
    %235 = vector.extract_strided_slice %222 {offsets = [0, 256], sizes = [8, 128], strides = [1, 1]} : vector<8x512xf32> to vector<8x128xf32>
    %236 = math.tanh %235 : vector<8x128xf32>
    %237 = vector.extract_strided_slice %222 {offsets = [0, 384], sizes = [8, 128], strides = [1, 1]} : vector<8x512xf32> to vector<8x128xf32>
    %238 = arith.negf %237 : vector<8x128xf32>
    %239 = math.exp %238 : vector<8x128xf32>
    %cst_116 = arith.constant 1.000000e+00 : f32
    %240 = vector.broadcast %cst_116 : f32 to vector<8x128xf32>
    %241 = arith.addf %240, %239 : vector<8x128xf32>
    %242 = arith.divf %240, %241 : vector<8x128xf32>
    %243 = arith.mulf %234, %215 : vector<8x128xf32>
    %244 = arith.mulf %228, %236 : vector<8x128xf32>
    %245 = arith.addf %243, %244 : vector<8x128xf32>
    %246 = math.tanh %245 : vector<8x128xf32>
    %247 = arith.mulf %242, %246 : vector<8x128xf32>
    %c0_117 = arith.constant 0 : index
    %c0_118 = arith.constant 0 : index
    %248 = vector.load %arg8[%c0_117, %c0_118] : memref<8x128xf32, #tpu.memory_space<vmem>>, vector<8x128xf32>
    tpu.vector_store %arg8[%c0_117, %c0_118], %245 {strides = array<i32>} : memref<8x128xf32, #tpu.memory_space<vmem>>, vector<8x128xf32>,
    %c0_119 = arith.constant 0 : index
    %c0_120 = arith.constant 0 : index
    %249 = vector.load %arg7[%c0_119, %c0_120] : memref<8x128xf32, #tpu.memory_space<vmem>>, vector<8x128xf32>
    tpu.vector_store %arg7[%c0_119, %c0_120], %247 {strides = array<i32>} : memref<8x128xf32, #tpu.memory_space<vmem>>, vector<8x128xf32>,
    %250 = arith.index_cast %c5_i32 : i32 to index
    %c0_121 = arith.constant 0 : index
    %c0_122 = arith.constant 0 : index
    %251 = vector.load %arg5[%250, %c0_121, %c0_122] : memref<9x8x128xf32, #tpu.memory_space<vmem>>, vector<1x8x128xf32>
    %252 = vector.shape_cast %251 : vector<1x8x128xf32> to vector<8x128xf32>
    %253 = vector.shape_cast %247 : vector<8x128xf32> to vector<1x8x128xf32>
    tpu.vector_store %arg5[%250, %c0_121, %c0_122], %253 {strides = array<i32>} : memref<9x8x128xf32, #tpu.memory_space<vmem>>, vector<1x8x128xf32>,
    %c6_i32 = arith.constant 6 : i32
    %c0_123 = arith.constant 0 : index
    %c0_124 = arith.constant 0 : index
    %254 = vector.load %arg7[%c0_123, %c0_124] : memref<8x128xf32, #tpu.memory_space<vmem>>, vector<8x128xf32>
    %c0_125 = arith.constant 0 : index
    %c0_126 = arith.constant 0 : index
    %255 = vector.load %arg8[%c0_125, %c0_126] : memref<8x128xf32, #tpu.memory_space<vmem>>, vector<8x128xf32>
    %256 = arith.index_cast %c6_i32 : i32 to index
    %c0_127 = arith.constant 0 : index
    %c0_128 = arith.constant 0 : index
    %257 = vector.load %arg6[%256, %c0_127, %c0_128] : memref<9x8x512xf32, #tpu.memory_space<vmem>>, vector<1x8x512xf32>
    %258 = vector.shape_cast %257 : vector<1x8x512xf32> to vector<8x512xf32>
    %259 = arith.truncf %254 : vector<8x128xf32> to vector<8x128xbf16>
    %c0_129 = arith.constant 0 : index
    %c0_130 = arith.constant 0 : index
    %260 = vector.load %arg4[%c0_129, %c0_130] : memref<128x512xbf16, #tpu.memory_space<vmem>>, vector<128x512xbf16>
    %cst_131 = arith.constant dense<0.000000e+00> : vector<8x512xf32>
    %261 = tpu.matmul %259, %260, %cst_131 {dimension_numbers = #tpu.dot_dimension_numbers<[1], [0], [0], [1], [0, 0, 1, 1], [], []>} : vector<8x128xbf16>, vector<128x512xbf16>, vector<8x512xf32> -> vector<8x512xf32>
    %262 = arith.addf %258, %261 : vector<8x512xf32>
    %263 = vector.extract_strided_slice %262 {offsets = [0, 0], sizes = [8, 128], strides = [1, 1]} : vector<8x512xf32> to vector<8x128xf32>
    %264 = arith.negf %263 : vector<8x128xf32>
    %265 = math.exp %264 : vector<8x128xf32>
    %cst_132 = arith.constant 1.000000e+00 : f32
    %266 = vector.broadcast %cst_132 : f32 to vector<8x128xf32>
    %267 = arith.addf %266, %265 : vector<8x128xf32>
    %268 = arith.divf %266, %267 : vector<8x128xf32>
    %269 = vector.extract_strided_slice %262 {offsets = [0, 128], sizes = [8, 128], strides = [1, 1]} : vector<8x512xf32> to vector<8x128xf32>
    %270 = arith.negf %269 : vector<8x128xf32>
    %271 = math.exp %270 : vector<8x128xf32>
    %cst_133 = arith.constant 1.000000e+00 : f32
    %272 = vector.broadcast %cst_133 : f32 to vector<8x128xf32>
    %273 = arith.addf %272, %271 : vector<8x128xf32>
    %274 = arith.divf %272, %273 : vector<8x128xf32>
    %275 = vector.extract_strided_slice %262 {offsets = [0, 256], sizes = [8, 128], strides = [1, 1]} : vector<8x512xf32> to vector<8x128xf32>
    %276 = math.tanh %275 : vector<8x128xf32>
    %277 = vector.extract_strided_slice %262 {offsets = [0, 384], sizes = [8, 128], strides = [1, 1]} : vector<8x512xf32> to vector<8x128xf32>
    %278 = arith.negf %277 : vector<8x128xf32>
    %279 = math.exp %278 : vector<8x128xf32>
    %cst_134 = arith.constant 1.000000e+00 : f32
    %280 = vector.broadcast %cst_134 : f32 to vector<8x128xf32>
    %281 = arith.addf %280, %279 : vector<8x128xf32>
    %282 = arith.divf %280, %281 : vector<8x128xf32>
    %283 = arith.mulf %274, %255 : vector<8x128xf32>
    %284 = arith.mulf %268, %276 : vector<8x128xf32>
    %285 = arith.addf %283, %284 : vector<8x128xf32>
    %286 = math.tanh %285 : vector<8x128xf32>
    %287 = arith.mulf %282, %286 : vector<8x128xf32>
    %c0_135 = arith.constant 0 : index
    %c0_136 = arith.constant 0 : index
    %288 = vector.load %arg8[%c0_135, %c0_136] : memref<8x128xf32, #tpu.memory_space<vmem>>, vector<8x128xf32>
    tpu.vector_store %arg8[%c0_135, %c0_136], %285 {strides = array<i32>} : memref<8x128xf32, #tpu.memory_space<vmem>>, vector<8x128xf32>,
    %c0_137 = arith.constant 0 : index
    %c0_138 = arith.constant 0 : index
    %289 = vector.load %arg7[%c0_137, %c0_138] : memref<8x128xf32, #tpu.memory_space<vmem>>, vector<8x128xf32>
    tpu.vector_store %arg7[%c0_137, %c0_138], %287 {strides = array<i32>} : memref<8x128xf32, #tpu.memory_space<vmem>>, vector<8x128xf32>,
    %290 = arith.index_cast %c6_i32 : i32 to index
    %c0_139 = arith.constant 0 : index
    %c0_140 = arith.constant 0 : index
    %291 = vector.load %arg5[%290, %c0_139, %c0_140] : memref<9x8x128xf32, #tpu.memory_space<vmem>>, vector<1x8x128xf32>
    %292 = vector.shape_cast %291 : vector<1x8x128xf32> to vector<8x128xf32>
    %293 = vector.shape_cast %287 : vector<8x128xf32> to vector<1x8x128xf32>
    tpu.vector_store %arg5[%290, %c0_139, %c0_140], %293 {strides = array<i32>} : memref<9x8x128xf32, #tpu.memory_space<vmem>>, vector<1x8x128xf32>,
    %c7_i32 = arith.constant 7 : i32
    %c0_141 = arith.constant 0 : index
    %c0_142 = arith.constant 0 : index
    %294 = vector.load %arg7[%c0_141, %c0_142] : memref<8x128xf32, #tpu.memory_space<vmem>>, vector<8x128xf32>
    %c0_143 = arith.constant 0 : index
    %c0_144 = arith.constant 0 : index
    %295 = vector.load %arg8[%c0_143, %c0_144] : memref<8x128xf32, #tpu.memory_space<vmem>>, vector<8x128xf32>
    %296 = arith.index_cast %c7_i32 : i32 to index
    %c0_145 = arith.constant 0 : index
    %c0_146 = arith.constant 0 : index
    %297 = vector.load %arg6[%296, %c0_145, %c0_146] : memref<9x8x512xf32, #tpu.memory_space<vmem>>, vector<1x8x512xf32>
    %298 = vector.shape_cast %297 : vector<1x8x512xf32> to vector<8x512xf32>
    %299 = arith.truncf %294 : vector<8x128xf32> to vector<8x128xbf16>
    %c0_147 = arith.constant 0 : index
    %c0_148 = arith.constant 0 : index
    %300 = vector.load %arg4[%c0_147, %c0_148] : memref<128x512xbf16, #tpu.memory_space<vmem>>, vector<128x512xbf16>
    %cst_149 = arith.constant dense<0.000000e+00> : vector<8x512xf32>
    %301 = tpu.matmul %299, %300, %cst_149 {dimension_numbers = #tpu.dot_dimension_numbers<[1], [0], [0], [1], [0, 0, 1, 1], [], []>} : vector<8x128xbf16>, vector<128x512xbf16>, vector<8x512xf32> -> vector<8x512xf32>
    %302 = arith.addf %298, %301 : vector<8x512xf32>
    %303 = vector.extract_strided_slice %302 {offsets = [0, 0], sizes = [8, 128], strides = [1, 1]} : vector<8x512xf32> to vector<8x128xf32>
    %304 = arith.negf %303 : vector<8x128xf32>
    %305 = math.exp %304 : vector<8x128xf32>
    %cst_150 = arith.constant 1.000000e+00 : f32
    %306 = vector.broadcast %cst_150 : f32 to vector<8x128xf32>
    %307 = arith.addf %306, %305 : vector<8x128xf32>
    %308 = arith.divf %306, %307 : vector<8x128xf32>
    %309 = vector.extract_strided_slice %302 {offsets = [0, 128], sizes = [8, 128], strides = [1, 1]} : vector<8x512xf32> to vector<8x128xf32>
    %310 = arith.negf %309 : vector<8x128xf32>
    %311 = math.exp %310 : vector<8x128xf32>
    %cst_151 = arith.constant 1.000000e+00 : f32
    %312 = vector.broadcast %cst_151 : f32 to vector<8x128xf32>
    %313 = arith.addf %312, %311 : vector<8x128xf32>
    %314 = arith.divf %312, %313 : vector<8x128xf32>
    %315 = vector.extract_strided_slice %302 {offsets = [0, 256], sizes = [8, 128], strides = [1, 1]} : vector<8x512xf32> to vector<8x128xf32>
    %316 = math.tanh %315 : vector<8x128xf32>
    %317 = vector.extract_strided_slice %302 {offsets = [0, 384], sizes = [8, 128], strides = [1, 1]} : vector<8x512xf32> to vector<8x128xf32>
    %318 = arith.negf %317 : vector<8x128xf32>
    %319 = math.exp %318 : vector<8x128xf32>
    %cst_152 = arith.constant 1.000000e+00 : f32
    %320 = vector.broadcast %cst_152 : f32 to vector<8x128xf32>
    %321 = arith.addf %320, %319 : vector<8x128xf32>
    %322 = arith.divf %320, %321 : vector<8x128xf32>
    %323 = arith.mulf %314, %295 : vector<8x128xf32>
    %324 = arith.mulf %308, %316 : vector<8x128xf32>
    %325 = arith.addf %323, %324 : vector<8x128xf32>
    %326 = math.tanh %325 : vector<8x128xf32>
    %327 = arith.mulf %322, %326 : vector<8x128xf32>
    %c0_153 = arith.constant 0 : index
    %c0_154 = arith.constant 0 : index
    %328 = vector.load %arg8[%c0_153, %c0_154] : memref<8x128xf32, #tpu.memory_space<vmem>>, vector<8x128xf32>
    tpu.vector_store %arg8[%c0_153, %c0_154], %325 {strides = array<i32>} : memref<8x128xf32, #tpu.memory_space<vmem>>, vector<8x128xf32>,
    %c0_155 = arith.constant 0 : index
    %c0_156 = arith.constant 0 : index
    %329 = vector.load %arg7[%c0_155, %c0_156] : memref<8x128xf32, #tpu.memory_space<vmem>>, vector<8x128xf32>
    tpu.vector_store %arg7[%c0_155, %c0_156], %327 {strides = array<i32>} : memref<8x128xf32, #tpu.memory_space<vmem>>, vector<8x128xf32>,
    %330 = arith.index_cast %c7_i32 : i32 to index
    %c0_157 = arith.constant 0 : index
    %c0_158 = arith.constant 0 : index
    %331 = vector.load %arg5[%330, %c0_157, %c0_158] : memref<9x8x128xf32, #tpu.memory_space<vmem>>, vector<1x8x128xf32>
    %332 = vector.shape_cast %331 : vector<1x8x128xf32> to vector<8x128xf32>
    %333 = vector.shape_cast %327 : vector<8x128xf32> to vector<1x8x128xf32>
    tpu.vector_store %arg5[%330, %c0_157, %c0_158], %333 {strides = array<i32>} : memref<9x8x128xf32, #tpu.memory_space<vmem>>, vector<1x8x128xf32>,
    %c8_i32 = arith.constant 8 : i32
    %c0_159 = arith.constant 0 : index
    %c0_160 = arith.constant 0 : index
    %334 = vector.load %arg7[%c0_159, %c0_160] : memref<8x128xf32, #tpu.memory_space<vmem>>, vector<8x128xf32>
    %c0_161 = arith.constant 0 : index
    %c0_162 = arith.constant 0 : index
    %335 = vector.load %arg8[%c0_161, %c0_162] : memref<8x128xf32, #tpu.memory_space<vmem>>, vector<8x128xf32>
    %336 = arith.index_cast %c8_i32 : i32 to index
    %c0_163 = arith.constant 0 : index
    %c0_164 = arith.constant 0 : index
    %337 = vector.load %arg6[%336, %c0_163, %c0_164] : memref<9x8x512xf32, #tpu.memory_space<vmem>>, vector<1x8x512xf32>
    %338 = vector.shape_cast %337 : vector<1x8x512xf32> to vector<8x512xf32>
    %339 = arith.truncf %334 : vector<8x128xf32> to vector<8x128xbf16>
    %c0_165 = arith.constant 0 : index
    %c0_166 = arith.constant 0 : index
    %340 = vector.load %arg4[%c0_165, %c0_166] : memref<128x512xbf16, #tpu.memory_space<vmem>>, vector<128x512xbf16>
    %cst_167 = arith.constant dense<0.000000e+00> : vector<8x512xf32>
    %341 = tpu.matmul %339, %340, %cst_167 {dimension_numbers = #tpu.dot_dimension_numbers<[1], [0], [0], [1], [0, 0, 1, 1], [], []>} : vector<8x128xbf16>, vector<128x512xbf16>, vector<8x512xf32> -> vector<8x512xf32>
    %342 = arith.addf %338, %341 : vector<8x512xf32>
    %343 = vector.extract_strided_slice %342 {offsets = [0, 0], sizes = [8, 128], strides = [1, 1]} : vector<8x512xf32> to vector<8x128xf32>
    %344 = arith.negf %343 : vector<8x128xf32>
    %345 = math.exp %344 : vector<8x128xf32>
    %cst_168 = arith.constant 1.000000e+00 : f32
    %346 = vector.broadcast %cst_168 : f32 to vector<8x128xf32>
    %347 = arith.addf %346, %345 : vector<8x128xf32>
    %348 = arith.divf %346, %347 : vector<8x128xf32>
    %349 = vector.extract_strided_slice %342 {offsets = [0, 128], sizes = [8, 128], strides = [1, 1]} : vector<8x512xf32> to vector<8x128xf32>
    %350 = arith.negf %349 : vector<8x128xf32>
    %351 = math.exp %350 : vector<8x128xf32>
    %cst_169 = arith.constant 1.000000e+00 : f32
    %352 = vector.broadcast %cst_169 : f32 to vector<8x128xf32>
    %353 = arith.addf %352, %351 : vector<8x128xf32>
    %354 = arith.divf %352, %353 : vector<8x128xf32>
    %355 = vector.extract_strided_slice %342 {offsets = [0, 256], sizes = [8, 128], strides = [1, 1]} : vector<8x512xf32> to vector<8x128xf32>
    %356 = math.tanh %355 : vector<8x128xf32>
    %357 = vector.extract_strided_slice %342 {offsets = [0, 384], sizes = [8, 128], strides = [1, 1]} : vector<8x512xf32> to vector<8x128xf32>
    %358 = arith.negf %357 : vector<8x128xf32>
    %359 = math.exp %358 : vector<8x128xf32>
    %cst_170 = arith.constant 1.000000e+00 : f32
    %360 = vector.broadcast %cst_170 : f32 to vector<8x128xf32>
    %361 = arith.addf %360, %359 : vector<8x128xf32>
    %362 = arith.divf %360, %361 : vector<8x128xf32>
    %363 = arith.mulf %354, %335 : vector<8x128xf32>
    %364 = arith.mulf %348, %356 : vector<8x128xf32>
    %365 = arith.addf %363, %364 : vector<8x128xf32>
    %366 = math.tanh %365 : vector<8x128xf32>
    %367 = arith.mulf %362, %366 : vector<8x128xf32>
    %c0_171 = arith.constant 0 : index
    %c0_172 = arith.constant 0 : index
    %368 = vector.load %arg8[%c0_171, %c0_172] : memref<8x128xf32, #tpu.memory_space<vmem>>, vector<8x128xf32>
    tpu.vector_store %arg8[%c0_171, %c0_172], %365 {strides = array<i32>} : memref<8x128xf32, #tpu.memory_space<vmem>>, vector<8x128xf32>,
    %c0_173 = arith.constant 0 : index
    %c0_174 = arith.constant 0 : index
    %369 = vector.load %arg7[%c0_173, %c0_174] : memref<8x128xf32, #tpu.memory_space<vmem>>, vector<8x128xf32>
    tpu.vector_store %arg7[%c0_173, %c0_174], %367 {strides = array<i32>} : memref<8x128xf32, #tpu.memory_space<vmem>>, vector<8x128xf32>,
    %370 = arith.index_cast %c8_i32 : i32 to index
    %c0_175 = arith.constant 0 : index
    %c0_176 = arith.constant 0 : index
    %371 = vector.load %arg5[%370, %c0_175, %c0_176] : memref<9x8x128xf32, #tpu.memory_space<vmem>>, vector<1x8x128xf32>
    %372 = vector.shape_cast %371 : vector<1x8x128xf32> to vector<8x128xf32>
    %373 = vector.shape_cast %367 : vector<8x128xf32> to vector<1x8x128xf32>
    tpu.vector_store %arg5[%370, %c0_175, %c0_176], %373 {strides = array<i32>} : memref<9x8x128xf32, #tpu.memory_space<vmem>>, vector<1x8x128xf32>,
    %c9_i32 = arith.constant 9 : i32
    return
  }
  func.func @transform_0(%arg0: i32) -> (i32, i32, i32) {
    %c0_i32 = arith.constant 0 : i32
    %c0_i32_0 = arith.constant 0 : i32
    %c0_i32_1 = arith.constant 0 : i32
    %c0_i32_2 = arith.constant 0 : i32
    return %c0_i32, %c0_i32_0, %c0_i32_1 : i32, i32, i32
  }
  func.func @transform_1(%arg0: i32) -> (i32, i32) {
    %c0_i32 = arith.constant 0 : i32
    %c0_i32_0 = arith.constant 0 : i32
    %c0_i32_1 = arith.constant 0 : i32
    return %c0_i32, %c0_i32_0 : i32, i32
  }
  func.func @transform_2(%arg0: i32) -> (i32, i32) {
    %c0_i32 = arith.constant 0 : i32
    %c0_i32_0 = arith.constant 0 : i32
    %c0_i32_1 = arith.constant 0 : i32
    return %c0_i32, %c0_i32_0 : i32, i32
  }
  func.func @transform_3(%arg0: i32) -> (i32, i32) {
    %c0_i32 = arith.constant 0 : i32
    %c0_i32_0 = arith.constant 0 : i32
    %c0_i32_1 = arith.constant 0 : i32
    return %c0_i32, %c0_i32_0 : i32, i32
  }
  func.func @transform_4(%arg0: i32) -> (i32, i32, i32) {
    %c0_i32 = arith.constant 0 : i32
    %c0_i32_0 = arith.constant 0 : i32
    %c0_i32_1 = arith.constant 0 : i32
    %c0_i32_2 = arith.constant 0 : i32
    return %c0_i32, %c0_i32_0, %c0_i32_1 : i32, i32, i32
  }
}

</mosaic_0001>

<llo_original>
// kernel: tpu_custom_call.1
$region0: #{tpu_custom_call.1}
  #allocation0 [shape = 'u32[]', space=smem, size = 0x4, offset = 0x4, fixed_abs, tag = 'smem constant byte address 0x4 - core index']
  #allocation1 [shape = 'u32[144,128]{1,0:T(1,128)}', space=vmem, size = 0x12000, scoped, tag = 'internal scratch']
  #allocation2 [shape = 'f32[9,8,512]{2,1,0:T(8,128)}', space=vmem, size = 0x24000, scoped, tag = 'scratch operand']
  #allocation3 [shape = 'f32[8,128]{1,0:T(8,128)}', space=vmem, size = 0x1000, scoped, tag = 'scratch operand']
  #allocation4 [shape = 'f32[8,128]{1,0:T(8,128)}', space=vmem, size = 0x1000, scoped, tag = 'scratch operand']
  %s0 = inlined_call_operand.hbm [shape: f32[9,8,32], index: 0, kind: input, shape index: {}]
  %s1 = inlined_call_operand.hbm [shape: bf16[32,512], index: 1, kind: input, shape index: {}]
  %s2 = inlined_call_operand.hbm [shape: f32[1,512], index: 2, kind: input, shape index: {}]
  %s3 = inlined_call_operand.hbm [shape: bf16[128,512], index: 3, kind: input, shape index: {}]
  %s4 = inlined_call_operand.hbm [shape: f32[9,8,128], index: 4, kind: output, shape index: {}]
  %s5 = sld [smem:[#allocation0]]
  $region42: #{tpu_custom_call.1} parent=0
    _
  %s7 = ssub.s32 1, %s5
  %s8 = scalar_select 0, %s7, %s5
  $region1: #{tpu_custom_call.1} parent=0
    #allocation5 [shape = 'u8[36864]{0}', space=vmem, size = 0x9000, scoped, tag = 'input window, operand 0, single buffered']
    #allocation6 [shape = 's32[1]{0}', space=sflag, size = 0x4, scoped, tag = 'scoped memory for tpu_custom_call.1']
    #allocation7 [shape = 's32[1]{0}', space=sflag, size = 0x4, scoped, tag = 'scoped memory for tpu_custom_call.1']
    #allocation8 [shape = 'u8[32768]{0}', space=vmem, size = 0x8000, scoped, tag = 'input window, operand 1, single buffered']
    #allocation9 [shape = 's32[1]{0}', space=sflag, size = 0x4, scoped, tag = 'scoped memory for tpu_custom_call.1']
    #allocation10 [shape = 'u8[2048]{0}', space=vmem, size = 0x800, scoped, tag = 'input window, operand 2, single buffered']
    #allocation11 [shape = 'u8[131072]{0}', space=vmem, size = 0x20000, scoped, tag = 'input window, operand 3, single buffered']
    #allocation12 [shape = 's32[1]{0}', space=sflag, size = 0x4, scoped, tag = 'scoped memory for tpu_custom_call.1']
    #allocation13 [shape = 'u8[36864]{0}', space=vmem, size = 0x9000, scoped, tag = 'output window, operand 0, single buffered']
    %9 = vsyncpa [#allocation6], 0
    %10 = vsyncpa [#allocation9], 0
    %11 = vsyncpa [#allocation12], 0
    %12 = vsyncpa [#allocation7], 0
    // Predicated region
    $region2: #{tpu_custom_call.1} parent=1 // pred_check
      _
    $region3: #{tpu_custom_call.1} parent=1 // pred_check_branch
      %14 = sbr.rel (0) target = $region5
    $region4: #{tpu_custom_call.1} parent=1 // pred_region
      %s16 = ssub.s32 1152, 1152
      %17 = vsyncadd [#allocation6], %s16
      %s18 = sshll.u32 [#allocation5], 4
      %s19 = int_to_ptr.vmem [resolvable:$true] %s18
      %24 = dma.hbm_to_vmem [thread:$0]  %s0, 1152, %s19, [#allocation6], 128, 128, 8
    $region5: #{tpu_custom_call.1} parent=1 // pred_fallthru
      _
    // Predicated region
    $region6: #{tpu_custom_call.1} parent=1 // pred_check
      _
    $region7: #{tpu_custom_call.1} parent=1 // pred_check_branch
      %26 = sbr.rel (0) target = $region9
    $region8: #{tpu_custom_call.1} parent=1 // pred_region
      %s28 = ssub.s32 1024, 1024
      %29 = vsyncadd [#allocation9], %s28
      %s30 = sshll.u32 [#allocation8], 4
      %s31 = int_to_ptr.vmem [resolvable:$true] %s30
      %36 = dma.hbm_to_vmem [thread:$0]  %s1, 1024, %s31, [#allocation9], 256, 256, 16
    $region9: #{tpu_custom_call.1} parent=1 // pred_fallthru
      _
    // Predicated region
    $region10: #{tpu_custom_call.1} parent=1 // pred_check
      _
    $region11: #{tpu_custom_call.1} parent=1 // pred_check_branch
      %38 = sbr.rel (0) target = $region13
    $region12: #{tpu_custom_call.1} parent=1 // pred_region
      %s40 = ssub.s32 64, 64
      %41 = vsyncadd [#allocation9], %s40
      %s43 = sshll.u32 [#allocation10], 4
      %s44 = int_to_ptr.vmem [resolvable:$true] %s43
      %46 = dma.hbm_to_vmem [thread:$0]  %s2, 64, %s44, [#allocation9]
    $region13: #{tpu_custom_call.1} parent=1 // pred_fallthru
      _
    // Predicated region
    $region14: #{tpu_custom_call.1} parent=1 // pred_check
      _
    $region15: #{tpu_custom_call.1} parent=1 // pred_check_branch
      %48 = sbr.rel (0) target = $region17
    $region16: #{tpu_custom_call.1} parent=1 // pred_region
      %s50 = ssub.s32 4096, 4096
      %51 = vsyncadd [#allocation12], %s50
      %s52 = sshll.u32 [#allocation11], 4
      %s53 = int_to_ptr.vmem [resolvable:$true] %s52
      %58 = dma.hbm_to_vmem [thread:$0]  %s3, 4096, %s53, [#allocation12], 256, 256, 16
    $region17: #{tpu_custom_call.1} parent=1 // pred_fallthru
      _
    // Predicated region
    $region18: #{tpu_custom_call.1} parent=1 // pred_check
      _
    $region19: #{tpu_custom_call.1} parent=1 // pred_check_branch
      %60 = sbr.rel (0) target = $region21
    $region20: #{tpu_custom_call.1} parent=1 // pred_region
      %61 = dma.done [#allocation6], 1152
    $region21: #{tpu_custom_call.1} parent=1 // pred_fallthru
      _
    // Predicated region
    $region22: #{tpu_custom_call.1} parent=1 // pred_check
      _
    $region23: #{tpu_custom_call.1} parent=1 // pred_check_branch
      %63 = sbr.rel (0) target = $region25
    $region24: #{tpu_custom_call.1} parent=1 // pred_region
      %64 = dma.done [#allocation9], 1024
    $region25: #{tpu_custom_call.1} parent=1 // pred_fallthru
      _
    // Predicated region
    $region26: #{tpu_custom_call.1} parent=1 // pred_check
      _
    $region27: #{tpu_custom_call.1} parent=1 // pred_check_branch
      %66 = sbr.rel (0) target = $region29
    $region28: #{tpu_custom_call.1} parent=1 // pred_region
      %67 = dma.done [#allocation9], 64
    $region29: #{tpu_custom_call.1} parent=1 // pred_fallthru
      _
    // Predicated region
    $region30: #{tpu_custom_call.1} parent=1 // pred_check
      _
    $region31: #{tpu_custom_call.1} parent=1 // pred_check_branch
      %69 = sbr.rel (0) target = $region33
    $region32: #{tpu_custom_call.1} parent=1 // pred_region
      %70 = dma.done [#allocation12], 4096
    $region33: #{tpu_custom_call.1} parent=1 // pred_fallthru
      _
    %v72 = vld [vmem:[#allocation5] sm:$0xff]
    %v73 = vld [vmem:[#allocation5 + $0x8] sm:$0xff]
    %v74 = vld [vmem:[#allocation5 + $0x10] sm:$0xff]
    %v75 = vld [vmem:[#allocation5 + $0x18] sm:$0xff]
    %v76 = vld [vmem:[#allocation5 + $0x20] sm:$0xff]
    %v77 = vld [vmem:[#allocation5 + $0x28] sm:$0xff]
    %v78 = vld [vmem:[#allocation5 + $0x30] sm:$0xff]
    %v79 = vld [vmem:[#allocation5 + $0x38] sm:$0xff]
    %v80 = vld [vmem:[#allocation5 + $0x40] sm:$0xff]
    %v81 = vpack.c.bf16 %v73, %v72
    %v82 = vpack.c.bf16 %v75, %v74
    %v83 = vpack.c.bf16 %v77, %v76
    %v84 = vpack.c.bf16 %v79, %v78
    %v85 = vpack.c.bf16 %v80, %v80
    %v86 = vld [vmem:[#allocation8] sm:$0xff]
    %v87 = vld [vmem:[#allocation8 + $0x8] sm:$0xff]
    %v88 = vld [vmem:[#allocation8 + $0x10] sm:$0xff]
    %v89 = vld [vmem:[#allocation8 + $0x18] sm:$0xff]
    %v90 = vld [vmem:[#allocation8 + $0x20] sm:$0xff]
    %v91 = vld [vmem:[#allocation8 + $0x28] sm:$0xff]
    %v92 = vld [vmem:[#allocation8 + $0x30] sm:$0xff]
    %v93 = vld [vmem:[#allocation8 + $0x38] sm:$0xff]
    %v94 = vld [vmem:[#allocation10] sm:$0xf]
    %v96 = vlaneseq
    %v97 = vshrl.u32 %v96, 7
    %v98 = vsub.s32 0, %v97
    %v99 = vrot.slane %v94, %v98
    %v100 = vlaneseq
    %v101 = vshrl.u32 %v100, 7
    %v102 = vsub.s32 1, %v101
    %v103 = vrot.slane %v94, %v102
    %v104 = vlaneseq
    %v105 = vshrl.u32 %v104, 7
    %v106 = vsub.s32 2, %v105
    %v107 = vrot.slane %v94, %v106
    %v108 = vlaneseq
    %v109 = vshrl.u32 %v108, 7
    %v110 = vsub.s32 3, %v109
    %v111 = vrot.slane %v94, %v110
    %v124 = vunpack.c.l.b16 %v86
    %v125 = vunpack.c.h.b16 %v86
    %v126 = vunpack.c.l.b16 %v87
    %v127 = vunpack.c.h.b16 %v87
    %v128 = vunpack.c.l.b16 %v88
    %v129 = vunpack.c.h.b16 %v88
    %v130 = vunpack.c.l.b16 %v89
    %v131 = vunpack.c.h.b16 %v89
    %v132 = vunpack.c.l.b16 %v90
    %v133 = vunpack.c.h.b16 %v90
    %v134 = vunpack.c.l.b16 %v91
    %v135 = vunpack.c.h.b16 %v91
    %v136 = vunpack.c.l.b16 %v92
    %v137 = vunpack.c.h.b16 %v92
    %v138 = vunpack.c.l.b16 %v93
    %v139 = vunpack.c.h.b16 %v93
    %v140 = vpack.c.b16 %v128, %v124
    %v141 = vpack.c.b16 %v129, %v125
    %v142 = vpack.c.b16 %v130, %v126
    %v143 = vpack.c.b16 %v131, %v127
    %v144 = vpack.c.b16 %v136, %v132
    %v145 = vpack.c.b16 %v137, %v133
    %v146 = vpack.c.b16 %v138, %v134
    %v147 = vpack.c.b16 %v139, %v135
    %vm156 = vcmask 261120
    %v158 = vsel %vm156, %v81, 0
    %v161 = vsel %vm156, %v82, 0
    %v164 = vsel %vm156, %v83, 0
    %v167 = vsel %vm156, %v84, 0
    %v170 = vsel %vm156, %v85, 0
    %172 = vmatprep.subr.bf16.mxu0 0
    %173 = vmatpush1.bf16.msra.mxu0 0
    %174 = vmatprep.subr.bf16.mxu0 0
    %175 = vmatpush1.bf16.msra.mxu0 0
    %176 = vmatprep.subr.bf16.mxu0 0
    %177 = vmatpush1.bf16.msra.mxu0 0
    %178 = vmatprep.subr.bf16.mxu0 0
    %179 = vmatpush1.bf16.msra.mxu0 0
    %180 = vmatprep.subr.bf16.mxu0 0
    %181 = vmatpush1.bf16.msra.mxu0 0
    %182 = vmatprep.subr.bf16.mxu0 0
    %183 = vmatpush1.bf16.msra.mxu0 0
    %184 = vmatprep.subr.bf16.mxu0 %v145
    %185 = vmatpush1.bf16.msra.mxu0 %v144
    %186 = vmatprep.subr.bf16.mxu0 %v141
    %187 = vmatpush1.bf16.msra.mxu0 %v140
    %188 = vmatprep.subr.bf16.mxu0 0
    %189 = vmatpush2.bf16.msra.mxu0 0
    %190 = vmatprep.subr.bf16.mxu0 0
    %191 = vmatpush2.bf16.msra.mxu0 0
    %192 = vmatprep.subr.bf16.mxu0 0
    %193 = vmatpush2.bf16.msra.mxu0 0
    %194 = vmatprep.subr.bf16.mxu0 0
    %195 = vmatpush2.bf16.msra.mxu0 0
    %196 = vmatprep.subr.bf16.mxu0 0
    %197 = vmatpush2.bf16.msra.mxu0 0
    %198 = vmatprep.subr.bf16.mxu0 0
    %199 = vmatpush2.bf16.msra.mxu0 0
    %200 = vmatprep.subr.bf16.mxu0 0
    %201 = vmatpush2.bf16.msra.mxu0 0
    %202 = vmatprep.subr.bf16.mxu0 0
    %203 = vmatpush2.bf16.msra.mxu0 0
    %204 = vmatprep.mubr.bf16.mxu0 0
    %205 = vmatmul.mubr.bf16.gmra.mxu0 %v158
    %v206 = vpop.f32.mrf.mxu0
    %v207 = vadd.f32 %v99, %v206
    %v208 = vpop.f32.mrf.mxu0
    %v209 = vadd.f32 %v103, %v208
    %v210 = vpop.f32.mrf.mxu0
    %v211 = vadd.f32 %v99, %v210
    %v212 = vpop.f32.mrf.mxu0
    %v213 = vadd.f32 %v103, %v212
    %214 = vmatprep.mubr.bf16.mxu0 0
    %215 = vmatmul.mubr.bf16.gmra.mxu0 %v161
    %v216 = vpop.f32.mrf.mxu0
    %v217 = vadd.f32 %v99, %v216
    %v218 = vpop.f32.mrf.mxu0
    %v219 = vadd.f32 %v103, %v218
    %v220 = vpop.f32.mrf.mxu0
    %v221 = vadd.f32 %v99, %v220
    %v222 = vpop.f32.mrf.mxu0
    %v223 = vadd.f32 %v103, %v222
    %224 = vmatprep.mubr.bf16.mxu0 0
    %225 = vmatmul.mubr.bf16.gmra.mxu0 %v164
    %v226 = vpop.f32.mrf.mxu0
    %v227 = vadd.f32 %v99, %v226
    %v228 = vpop.f32.mrf.mxu0
    %v229 = vadd.f32 %v103, %v228
    %v230 = vpop.f32.mrf.mxu0
    %v231 = vadd.f32 %v99, %v230
    %v232 = vpop.f32.mrf.mxu0
    %v233 = vadd.f32 %v103, %v232
    %234 = vmatprep.mubr.bf16.mxu0 0
    %235 = vmatmul.mubr.bf16.gmra.mxu0 %v167
    %v236 = vpop.f32.mrf.mxu0
    %v237 = vadd.f32 %v99, %v236
    %v238 = vpop.f32.mrf.mxu0
    %v239 = vadd.f32 %v103, %v238
    %v240 = vpop.f32.mrf.mxu0
    %v241 = vadd.f32 %v99, %v240
    %v242 = vpop.f32.mrf.mxu0
    %v243 = vadd.f32 %v103, %v242
    %244 = vmatprep.mubr.bf16.mxu0 0
    %245 = vmatmul.mubr.bf16.gmra.mxu0 %v170
    %v246 = vpop.f32.mrf.mxu0
    %v247 = vadd.f32 %v99, %v246
    %v248 = vpop.f32.mrf.mxu0
    %v249 = vadd.f32 %v103, %v248
    %v250 = vpop.f32.mrf.mxu0
    %v251 = vpop.f32.mrf.mxu0
    %252 = vdwg.mxu0
    %253 = vmatprep.subr.bf16.mxu0 0
    %254 = vmatpush1.bf16.msra.mxu0 0
    %255 = vmatprep.subr.bf16.mxu0 0
    %256 = vmatpush1.bf16.msra.mxu0 0
    %257 = vmatprep.subr.bf16.mxu0 0
    %258 = vmatpush1.bf16.msra.mxu0 0
    %259 = vmatprep.subr.bf16.mxu0 0
    %260 = vmatpush1.bf16.msra.mxu0 0
    %261 = vmatprep.subr.bf16.mxu0 0
    %262 = vmatpush1.bf16.msra.mxu0 0
    %263 = vmatprep.subr.bf16.mxu0 0
    %264 = vmatpush1.bf16.msra.mxu0 0
    %265 = vmatprep.subr.bf16.mxu0 %v147
    %266 = vmatpush1.bf16.msra.mxu0 %v146
    %267 = vmatprep.subr.bf16.mxu0 %v143
    %268 = vmatpush1.bf16.msra.mxu0 %v142
    %269 = vmatprep.subr.bf16.mxu0 0
    %270 = vmatpush2.bf16.msra.mxu0 0
    %271 = vmatprep.subr.bf16.mxu0 0
    %272 = vmatpush2.bf16.msra.mxu0 0
    %273 = vmatprep.subr.bf16.mxu0 0
    %274 = vmatpush2.bf16.msra.mxu0 0
    %275 = vmatprep.subr.bf16.mxu0 0
    %276 = vmatpush2.bf16.msra.mxu0 0
    %277 = vmatprep.subr.bf16.mxu0 0
    %278 = vmatpush2.bf16.msra.mxu0 0
    %279 = vmatprep.subr.bf16.mxu0 0
    %280 = vmatpush2.bf16.msra.mxu0 0
    %281 = vmatprep.subr.bf16.mxu0 0
    %282 = vmatpush2.bf16.msra.mxu0 0
    %283 = vmatprep.subr.bf16.mxu0 0
    %284 = vmatpush2.bf16.msra.mxu0 0
    %285 = vmatprep.mubr.bf16.mxu0 0
    %286 = vmatmul.mubr.bf16.gmra.mxu0 %v158
    %v287 = vpop.f32.mrf.mxu0
    %v288 = vadd.f32 %v107, %v287
    %v289 = vpop.f32.mrf.mxu0
    %v290 = vadd.f32 %v111, %v289
    %v291 = vpop.f32.mrf.mxu0
    %v292 = vadd.f32 %v107, %v291
    %v293 = vpop.f32.mrf.mxu0
    %v294 = vadd.f32 %v111, %v293
    %295 = vmatprep.mubr.bf16.mxu0 0
    %296 = vmatmul.mubr.bf16.gmra.mxu0 %v161
    %v297 = vpop.f32.mrf.mxu0
    %v298 = vadd.f32 %v107, %v297
    %v299 = vpop.f32.mrf.mxu0
    %v300 = vadd.f32 %v111, %v299
    %v301 = vpop.f32.mrf.mxu0
    %v302 = vadd.f32 %v107, %v301
    %v303 = vpop.f32.mrf.mxu0
    %v304 = vadd.f32 %v111, %v303
    %305 = vmatprep.mubr.bf16.mxu0 0
    %306 = vmatmul.mubr.bf16.gmra.mxu0 %v164
    %v307 = vpop.f32.mrf.mxu0
    %v308 = vadd.f32 %v107, %v307
    %v309 = vpop.f32.mrf.mxu0
    %v310 = vadd.f32 %v111, %v309
    %v311 = vpop.f32.mrf.mxu0
    %v312 = vadd.f32 %v107, %v311
    %v313 = vpop.f32.mrf.mxu0
    %v314 = vadd.f32 %v111, %v313
    %315 = vmatprep.mubr.bf16.mxu0 0
    %316 = vmatmul.mubr.bf16.gmra.mxu0 %v167
    %v317 = vpop.f32.mrf.mxu0
    %v318 = vadd.f32 %v107, %v317
    %v319 = vpop.f32.mrf.mxu0
    %v320 = vadd.f32 %v111, %v319
    %v321 = vpop.f32.mrf.mxu0
    %v322 = vadd.f32 %v107, %v321
    %v323 = vpop.f32.mrf.mxu0
    %v324 = vadd.f32 %v111, %v323
    %325 = vmatprep.mubr.bf16.mxu0 0
    %326 = vmatmul.mubr.bf16.gmra.mxu0 %v170
    %v327 = vpop.f32.mrf.mxu0
    %v328 = vadd.f32 %v107, %v327
    %v329 = vpop.f32.mrf.mxu0
    %v330 = vadd.f32 %v111, %v329
    %v331 = vpop.f32.mrf.mxu0
    %v332 = vpop.f32.mrf.mxu0
    %333 = vdwg.mxu0
    %334 = vst [vmem:[#allocation2] sm:$0xff] %v207
    %335 = vst [vmem:[#allocation2 + $0x8] sm:$0xff] %v209
    %336 = vst [vmem:[#allocation2 + $0x10] sm:$0xff] %v288
    %337 = vst [vmem:[#allocation2 + $0x18] sm:$0xff] %v290
    %338 = vst [vmem:[#allocation2 + $0x20] sm:$0xff] %v211
    %339 = vst [vmem:[#allocation2 + $0x28] sm:$0xff] %v213
    %340 = vst [vmem:[#allocation2 + $0x30] sm:$0xff] %v292
    %341 = vst [vmem:[#allocation2 + $0x38] sm:$0xff] %v294
    %342 = vst [vmem:[#allocation2 + $0x40] sm:$0xff] %v217
    %343 = vst [vmem:[#allocation2 + $0x48] sm:$0xff] %v219
    %344 = vst [vmem:[#allocation2 + $0x50] sm:$0xff] %v298
    %345 = vst [vmem:[#allocation2 + $0x58] sm:$0xff] %v300
    %346 = vst [vmem:[#allocation2 + $0x60] sm:$0xff] %v221
    %347 = vst [vmem:[#allocation2 + $0x68] sm:$0xff] %v223
    %348 = vst [vmem:[#allocation2 + $0x70] sm:$0xff] %v302
    %349 = vst [vmem:[#allocation2 + $0x78] sm:$0xff] %v304
    %350 = vst [vmem:[#allocation2 + $0x80] sm:$0xff] %v227
    %351 = vst [vmem:[#allocation2 + $0x88] sm:$0xff] %v229
    %352 = vst [vmem:[#allocation2 + $0x90] sm:$0xff] %v308
    %353 = vst [vmem:[#allocation2 + $0x98] sm:$0xff] %v310
    %354 = vst [vmem:[#allocation2 + $0xa0] sm:$0xff] %v231
    %355 = vst [vmem:[#allocation2 + $0xa8] sm:$0xff] %v233
    %356 = vst [vmem:[#allocation2 + $0xb0] sm:$0xff] %v312
    %357 = vst [vmem:[#allocation2 + $0xb8] sm:$0xff] %v314
    %358 = vst [vmem:[#allocation2 + $0xc0] sm:$0xff] %v237
    %359 = vst [vmem:[#allocation2 + $0xc8] sm:$0xff] %v239
    %360 = vst [vmem:[#allocation2 + $0xd0] sm:$0xff] %v318
    %361 = vst [vmem:[#allocation2 + $0xd8] sm:$0xff] %v320
    %362 = vst [vmem:[#allocation2 + $0xe0] sm:$0xff] %v241
    %363 = vst [vmem:[#allocation2 + $0xe8] sm:$0xff] %v243
    %364 = vst [vmem:[#allocation2 + $0xf0] sm:$0xff] %v322
    %365 = vst [vmem:[#allocation2 + $0xf8] sm:$0xff] %v324
    %366 = vst [vmem:[#allocation2 + $0x100] sm:$0xff] %v247
    %367 = vst [vmem:[#allocation2 + $0x108] sm:$0xff] %v249
    %368 = vst [vmem:[#allocation2 + $0x110] sm:$0xff] %v328
    %369 = vst [vmem:[#allocation2 + $0x118] sm:$0xff] %v330
    %370 = vst [vmem:[#allocation3] sm:$0xff] 0.0
    %371 = vst [vmem:[#allocation4] sm:$0xff] 0.0
    %v372 = vld [vmem:[#allocation3] sm:$0xff]
    %v373 = vld [vmem:[#allocation4] sm:$0xff]
    %v374 = vld [vmem:[#allocation2] sm:$0xff]
    %v375 = vld [vmem:[#allocation2 + $0x8] sm:$0xff]
    %v376 = vld [vmem:[#allocation2 + $0x10] sm:$0xff]
    %v377 = vld [vmem:[#allocation2 + $0x18] sm:$0xff]
    %v378 = vpack.c.bf16 %v372, %v372
    %v379 = vld [vmem:[#allocation11] sm:$0xff]
    %v380 = vld [vmem:[#allocation11 + $0x8] sm:$0xff]
    %v381 = vld [vmem:[#allocation11 + $0x10] sm:$0xff]
    %v382 = vld [vmem:[#allocation11 + $0x18] sm:$0xff]
    %v383 = vld [vmem:[#allocation11 + $0x20] sm:$0xff]
    %v384 = vld [vmem:[#allocation11 + $0x28] sm:$0xff]
    %v385 = vld [vmem:[#allocation11 + $0x30] sm:$0xff]
    %v386 = vld [vmem:[#allocation11 + $0x38] sm:$0xff]
    %v387 = vld [vmem:[#allocation11 + $0x40] sm:$0xff]
    %v388 = vld [vmem:[#allocation11 + $0x48] sm:$0xff]
    %v389 = vld [vmem:[#allocation11 + $0x50] sm:$0xff]
    %v390 = vld [vmem:[#allocation11 + $0x58] sm:$0xff]
    %v391 = vld [vmem:[#allocation11 + $0x60] sm:$0xff]
    %v392 = vld [vmem:[#allocation11 + $0x68] sm:$0xff]
    %v393 = vld [vmem:[#allocation11 + $0x70] sm:$0xff]
    %v394 = vld [vmem:[#allocation11 + $0x78] sm:$0xff]
    %v395 = vld [vmem:[#allocation11 + $0x80] sm:$0xff]
    %v396 = vld [vmem:[#allocation11 + $0x88] sm:$0xff]
    %v397 = vld [vmem:[#allocation11 + $0x90] sm:$0xff]
    %v398 = vld [vmem:[#allocation11 + $0x98] sm:$0xff]
    %v399 = vld [vmem:[#allocation11 + $0xa0] sm:$0xff]
    %v400 = vld [vmem:[#allocation11 + $0xa8] sm:$0xff]
    %v401 = vld [vmem:[#allocation11 + $0xb0] sm:$0xff]
    %v402 = vld [vmem:[#allocation11 + $0xb8] sm:$0xff]
    %v403 = vld [vmem:[#allocation11 + $0xc0] sm:$0xff]
    %v404 = vld [vmem:[#allocation11 + $0xc8] sm:$0xff]
    %v405 = vld [vmem:[#allocation11 + $0xd0] sm:$0xff]
    %v406 = vld [vmem:[#allocation11 + $0xd8] sm:$0xff]
    %v407 = vld [vmem:[#allocation11 + $0xe0] sm:$0xff]
    %v408 = vld [vmem:[#allocation11 + $0xe8] sm:$0xff]
    %v409 = vld [vmem:[#allocation11 + $0xf0] sm:$0xff]
    %v410 = vld [vmem:[#allocation11 + $0xf8] sm:$0xff]
    %v443 = vunpack.c.l.b16 %v379
    %v444 = vunpack.c.h.b16 %v379
    %v445 = vunpack.c.l.b16 %v380
    %v446 = vunpack.c.h.b16 %v380
    %v447 = vunpack.c.l.b16 %v381
    %v448 = vunpack.c.h.b16 %v381
    %v449 = vunpack.c.l.b16 %v382
    %v450 = vunpack.c.h.b16 %v382
    %v451 = vunpack.c.l.b16 %v383
    %v452 = vunpack.c.h.b16 %v383
    %v453 = vunpack.c.l.b16 %v384
    %v454 = vunpack.c.h.b16 %v384
    %v455 = vunpack.c.l.b16 %v385
    %v456 = vunpack.c.h.b16 %v385
    %v457 = vunpack.c.l.b16 %v386
    %v458 = vunpack.c.h.b16 %v386
    %v459 = vunpack.c.l.b16 %v387
    %v460 = vunpack.c.h.b16 %v387
    %v461 = vunpack.c.l.b16 %v388
    %v462 = vunpack.c.h.b16 %v388
    %v463 = vunpack.c.l.b16 %v389
    %v464 = vunpack.c.h.b16 %v389
    %v465 = vunpack.c.l.b16 %v390
    %v466 = vunpack.c.h.b16 %v390
    %v467 = vunpack.c.l.b16 %v391
    %v468 = vunpack.c.h.b16 %v391
    %v469 = vunpack.c.l.b16 %v392
    %v470 = vunpack.c.h.b16 %v392
    %v471 = vunpack.c.l.b16 %v393
    %v472 = vunpack.c.h.b16 %v393
    %v473 = vunpack.c.l.b16 %v394
    %v474 = vunpack.c.h.b16 %v394
    %v475 = vunpack.c.l.b16 %v395
    %v476 = vunpack.c.h.b16 %v395
    %v477 = vunpack.c.l.b16 %v396
    %v478 = vunpack.c.h.b16 %v396
    %v479 = vunpack.c.l.b16 %v397
    %v480 = vunpack.c.h.b16 %v397
    %v481 = vunpack.c.l.b16 %v398
    %v482 = vunpack.c.h.b16 %v398
    %v483 = vunpack.c.l.b16 %v399
    %v484 = vunpack.c.h.b16 %v399
    %v485 = vunpack.c.l.b16 %v400
    %v486 = vunpack.c.h.b16 %v400
    %v487 = vunpack.c.l.b16 %v401
    %v488 = vunpack.c.h.b16 %v401
    %v489 = vunpack.c.l.b16 %v402
    %v490 = vunpack.c.h.b16 %v402
    %v491 = vunpack.c.l.b16 %v403
    %v492 = vunpack.c.h.b16 %v403
    %v493 = vunpack.c.l.b16 %v404
    %v494 = vunpack.c.h.b16 %v404
    %v495 = vunpack.c.l.b16 %v405
    %v496 = vunpack.c.h.b16 %v405
    %v497 = vunpack.c.l.b16 %v406
    %v498 = vunpack.c.h.b16 %v406
    %v499 = vunpack.c.l.b16 %v407
    %v500 = vunpack.c.h.b16 %v407
    %v501 = vunpack.c.l.b16 %v408
    %v502 = vunpack.c.h.b16 %v408
    %v503 = vunpack.c.l.b16 %v409
    %v504 = vunpack.c.h.b16 %v409
    %v505 = vunpack.c.l.b16 %v410
    %v506 = vunpack.c.h.b16 %v410
    %v507 = vpack.c.b16 %v447, %v443
    %v508 = vpack.c.b16 %v448, %v444
    %v509 = vpack.c.b16 %v449, %v445
    %v510 = vpack.c.b16 %v450, %v446
    %v511 = vpack.c.b16 %v455, %v451
    %v512 = vpack.c.b16 %v456, %v452
    %v513 = vpack.c.b16 %v457, %v453
    %v514 = vpack.c.b16 %v458, %v454
    %v515 = vpack.c.b16 %v463, %v459
    %v516 = vpack.c.b16 %v464, %v460
    %v517 = vpack.c.b16 %v465, %v461
    %v518 = vpack.c.b16 %v466, %v462
    %v519 = vpack.c.b16 %v471, %v467
    %v520 = vpack.c.b16 %v472, %v468
    %v521 = vpack.c.b16 %v473, %v469
    %v522 = vpack.c.b16 %v474, %v470
    %v523 = vpack.c.b16 %v479, %v475
    %v524 = vpack.c.b16 %v480, %v476
    %v525 = vpack.c.b16 %v481, %v477
    %v526 = vpack.c.b16 %v482, %v478
    %v527 = vpack.c.b16 %v487, %v483
    %v528 = vpack.c.b16 %v488, %v484
    %v529 = vpack.c.b16 %v489, %v485
    %v530 = vpack.c.b16 %v490, %v486
    %v531 = vpack.c.b16 %v495, %v491
    %v532 = vpack.c.b16 %v496, %v492
    %v533 = vpack.c.b16 %v497, %v493
    %v534 = vpack.c.b16 %v498, %v494
    %v535 = vpack.c.b16 %v503, %v499
    %v536 = vpack.c.b16 %v504, %v500
    %v537 = vpack.c.b16 %v505, %v501
    %v538 = vpack.c.b16 %v506, %v502
    %571 = vmatprep.subr.bf16.mxu0 %v536
    %572 = vmatpush1.bf16.msra.mxu0 %v535
    %573 = vmatprep.subr.bf16.mxu0 %v532
    %574 = vmatpush1.bf16.msra.mxu0 %v531
    %575 = vmatprep.subr.bf16.mxu0 %v528
    %576 = vmatpush1.bf16.msra.mxu0 %v527
    %577 = vmatprep.subr.bf16.mxu0 %v524
    %578 = vmatpush1.bf16.msra.mxu0 %v523
    %579 = vmatprep.subr.bf16.mxu0 %v520
    %580 = vmatpush1.bf16.msra.mxu0 %v519
    %581 = vmatprep.subr.bf16.mxu0 %v516
    %582 = vmatpush1.bf16.msra.mxu0 %v515
    %583 = vmatprep.subr.bf16.mxu0 %v512
    %584 = vmatpush1.bf16.msra.mxu0 %v511
    %585 = vmatprep.subr.bf16.mxu0 %v508
    %586 = vmatpush1.bf16.msra.mxu0 %v507
    %587 = vmatprep.subr.bf16.mxu0 0
    %588 = vmatpush2.bf16.msra.mxu0 0
    %589 = vmatprep.subr.bf16.mxu0 0
    %590 = vmatpush2.bf16.msra.mxu0 0
    %591 = vmatprep.subr.bf16.mxu0 0
    %592 = vmatpush2.bf16.msra.mxu0 0
    %593 = vmatprep.subr.bf16.mxu0 0
    %594 = vmatpush2.bf16.msra.mxu0 0
    %595 = vmatprep.subr.bf16.mxu0 0
    %596 = vmatpush2.bf16.msra.mxu0 0
    %597 = vmatprep.subr.bf16.mxu0 0
    %598 = vmatpush2.bf16.msra.mxu0 0
    %599 = vmatprep.subr.bf16.mxu0 0
    %600 = vmatpush2.bf16.msra.mxu0 0
    %601 = vmatprep.subr.bf16.mxu0 0
    %602 = vmatpush2.bf16.msra.mxu0 0
    %603 = vmatprep.mubr.bf16.mxu0 0
    %604 = vmatmul.mubr.bf16.gmra.mxu0 %v378
    %v605 = vpop.f32.mrf.mxu0
    %v606 = vadd.f32 0.0, %v605
    %v607 = vpop.f32.mrf.mxu0
    %v608 = vadd.f32 0.0, %v607
    %v609 = vpop.f32.mrf.mxu0
    %v610 = vpop.f32.mrf.mxu0
    %611 = vdwg.mxu0
    %612 = vmatprep.subr.bf16.mxu0 %v538
    %613 = vmatpush1.bf16.msra.mxu0 %v537
    %614 = vmatprep.subr.bf16.mxu0 %v534
    %615 = vmatpush1.bf16.msra.mxu0 %v533
    %616 = vmatprep.subr.bf16.mxu0 %v530
    %617 = vmatpush1.bf16.msra.mxu0 %v529
    %618 = vmatprep.subr.bf16.mxu0 %v526
    %619 = vmatpush1.bf16.msra.mxu0 %v525
    %620 = vmatprep.subr.bf16.mxu0 %v522
    %621 = vmatpush1.bf16.msra.mxu0 %v521
    %622 = vmatprep.subr.bf16.mxu0 %v518
    %623 = vmatpush1.bf16.msra.mxu0 %v517
    %624 = vmatprep.subr.bf16.mxu0 %v514
    %625 = vmatpush1.bf16.msra.mxu0 %v513
    %626 = vmatprep.subr.bf16.mxu0 %v510
    %627 = vmatpush1.bf16.msra.mxu0 %v509
    %628 = vmatprep.subr.bf16.mxu0 0
    %629 = vmatpush2.bf16.msra.mxu0 0
    %630 = vmatprep.subr.bf16.mxu0 0
    %631 = vmatpush2.bf16.msra.mxu0 0
    %632 = vmatprep.subr.bf16.mxu0 0
    %633 = vmatpush2.bf16.msra.mxu0 0
    %634 = vmatprep.subr.bf16.mxu0 0
    %635 = vmatpush2.bf16.msra.mxu0 0
    %636 = vmatprep.subr.bf16.mxu0 0
    %637 = vmatpush2.bf16.msra.mxu0 0
    %638 = vmatprep.subr.bf16.mxu0 0
    %639 = vmatpush2.bf16.msra.mxu0 0
    %640 = vmatprep.subr.bf16.mxu0 0
    %641 = vmatpush2.bf16.msra.mxu0 0
    %642 = vmatprep.subr.bf16.mxu0 0
    %643 = vmatpush2.bf16.msra.mxu0 0
    %644 = vmatprep.mubr.bf16.mxu0 0
    %645 = vmatmul.mubr.bf16.gmra.mxu0 %v378
    %v646 = vpop.f32.mrf.mxu0
    %v647 = vadd.f32 0.0, %v646
    %v648 = vpop.f32.mrf.mxu0
    %v649 = vadd.f32 0.0, %v648
    %v650 = vpop.f32.mrf.mxu0
    %v651 = vpop.f32.mrf.mxu0
    %652 = vdwg.mxu0
    %v653 = vadd.f32 %v374, %v606
    %v654 = vadd.f32 %v375, %v608
    %v655 = vadd.f32 %v376, %v647
    %v656 = vadd.f32 %v377, %v649
    %v657 = vxor.u32 %v653, 2147483648
    %v658 = vmul.f32 %v657, 1.442695
    %v659 = vpow.pop %v658
    %v660 = vadd.f32 %v659, 1.0
    %v661 = vrcp.pop %v660
    %v662 = vmul.f32 1.0, %v661
    %v663 = vxor.u32 %v654, 2147483648
    %v664 = vmul.f32 %v663, 1.442695
    %v665 = vpow.pop %v664
    %v666 = vadd.f32 %v665, 1.0
    %v667 = vrcp.pop %v666
    %v668 = vmul.f32 1.0, %v667
    %v669 = vtanh.pop %v655
    %v670 = vxor.u32 %v656, 2147483648
    %v671 = vmul.f32 %v670, 1.442695
    %v672 = vpow.pop %v671
    %v673 = vadd.f32 %v672, 1.0
    %v674 = vrcp.pop %v673
    %v675 = vmul.f32 1.0, %v674
    %v676 = vmul.f32 %v668, %v373
    %v677 = vmul.f32 %v662, %v669
    %v678 = vadd.f32 %v676, %v677
    %v679 = vtanh.pop %v678
    %v680 = vmul.f32 %v675, %v679
    %681 = vst [vmem:[#allocation4] sm:$0xff] %v678
    %682 = vst [vmem:[#allocation3] sm:$0xff] %v680
    %683 = vst [vmem:[#allocation13] sm:$0xff] %v680
    %v684 = vld [vmem:[#allocation3] sm:$0xff]
    %v685 = vld [vmem:[#allocation4] sm:$0xff]
    %s686 = scalar_lea.vmem [#allocation2], 32
    %v687 = vld [vmem:[%s686] sm:$0xff]
    %v688 = vld [vmem:[%s686 + $0x8] sm:$0xff]
    %v689 = vld [vmem:[%s686 + $0x10] sm:$0xff]
    %v690 = vld [vmem:[%s686 + $0x18] sm:$0xff]
    %v691 = vpack.c.bf16 %v684, %v684
    %v692 = vld [vmem:[#allocation11] sm:$0xff]
    %v693 = vld [vmem:[#allocation11 + $0x8] sm:$0xff]
    %v694 = vld [vmem:[#allocation11 + $0x10] sm:$0xff]
    %v695 = vld [vmem:[#allocation11 + $0x18] sm:$0xff]
    %v696 = vld [vmem:[#allocation11 + $0x20] sm:$0xff]
    %v697 = vld [vmem:[#allocation11 + $0x28] sm:$0xff]
    %v698 = vld [vmem:[#allocation11 + $0x30] sm:$0xff]
    %v699 = vld [vmem:[#allocation11 + $0x38] sm:$0xff]
    %v700 = vld [vmem:[#allocation11 + $0x40] sm:$0xff]
    %v701 = vld [vmem:[#allocation11 + $0x48] sm:$0xff]
    %v702 = vld [vmem:[#allocation11 + $0x50] sm:$0xff]
    %v703 = vld [vmem:[#allocation11 + $0x58] sm:$0xff]
    %v704 = vld [vmem:[#allocation11 + $0x60] sm:$0xff]
    %v705 = vld [vmem:[#allocation11 + $0x68] sm:$0xff]
    %v706 = vld [vmem:[#allocation11 + $0x70] sm:$0xff]
    %v707 = vld [vmem:[#allocation11 + $0x78] sm:$0xff]
    %v708 = vld [vmem:[#allocation11 + $0x80] sm:$0xff]
    %v709 = vld [vmem:[#allocation11 + $0x88] sm:$0xff]
    %v710 = vld [vmem:[#allocation11 + $0x90] sm:$0xff]
    %v711 = vld [vmem:[#allocation11 + $0x98] sm:$0xff]
    %v712 = vld [vmem:[#allocation11 + $0xa0] sm:$0xff]
    %v713 = vld [vmem:[#allocation11 + $0xa8] sm:$0xff]
    %v714 = vld [vmem:[#allocation11 + $0xb0] sm:$0xff]
    %v715 = vld [vmem:[#allocation11 + $0xb8] sm:$0xff]
    %v716 = vld [vmem:[#allocation11 + $0xc0] sm:$0xff]
    %v717 = vld [vmem:[#allocation11 + $0xc8] sm:$0xff]
    %v718 = vld [vmem:[#allocation11 + $0xd0] sm:$0xff]
    %v719 = vld [vmem:[#allocation11 + $0xd8] sm:$0xff]
    %v720 = vld [vmem:[#allocation11 + $0xe0] sm:$0xff]
    %v721 = vld [vmem:[#allocation11 + $0xe8] sm:$0xff]
    %v722 = vld [vmem:[#allocation11 + $0xf0] sm:$0xff]
    %v723 = vld [vmem:[#allocation11 + $0xf8] sm:$0xff]
    %v756 = vunpack.c.l.b16 %v692
    %v757 = vunpack.c.h.b16 %v692
    %v758 = vunpack.c.l.b16 %v693
    %v759 = vunpack.c.h.b16 %v693
    %v760 = vunpack.c.l.b16 %v694
    %v761 = vunpack.c.h.b16 %v694
    %v762 = vunpack.c.l.b16 %v695
    %v763 = vunpack.c.h.b16 %v695
    %v764 = vunpack.c.l.b16 %v696
    %v765 = vunpack.c.h.b16 %v696
    %v766 = vunpack.c.l.b16 %v697
    %v767 = vunpack.c.h.b16 %v697
    %v768 = vunpack.c.l.b16 %v698
    %v769 = vunpack.c.h.b16 %v698
    %v770 = vunpack.c.l.b16 %v699
    %v771 = vunpack.c.h.b16 %v699
    %v772 = vunpack.c.l.b16 %v700
    %v773 = vunpack.c.h.b16 %v700
    %v774 = vunpack.c.l.b16 %v701
    %v775 = vunpack.c.h.b16 %v701
    %v776 = vunpack.c.l.b16 %v702
    %v777 = vunpack.c.h.b16 %v702
    %v778 = vunpack.c.l.b16 %v703
    %v779 = vunpack.c.h.b16 %v703
    %v780 = vunpack.c.l.b16 %v704
    %v781 = vunpack.c.h.b16 %v704
    %v782 = vunpack.c.l.b16 %v705
    %v783 = vunpack.c.h.b16 %v705
    %v784 = vunpack.c.l.b16 %v706
    %v785 = vunpack.c.h.b16 %v706
    %v786 = vunpack.c.l.b16 %v707
    %v787 = vunpack.c.h.b16 %v707
    %v788 = vunpack.c.l.b16 %v708
    %v789 = vunpack.c.h.b16 %v708
    %v790 = vunpack.c.l.b16 %v709
    %v791 = vunpack.c.h.b16 %v709
    %v792 = vunpack.c.l.b16 %v710
    %v793 = vunpack.c.h.b16 %v710
    %v794 = vunpack.c.l.b16 %v711
    %v795 = vunpack.c.h.b16 %v711
    %v796 = vunpack.c.l.b16 %v712
    %v797 = vunpack.c.h.b16 %v712
    %v798 = vunpack.c.l.b16 %v713
    %v799 = vunpack.c.h.b16 %v713
    %v800 = vunpack.c.l.b16 %v714
    %v801 = vunpack.c.h.b16 %v714
    %v802 = vunpack.c.l.b16 %v715
    %v803 = vunpack.c.h.b16 %v715
    %v804 = vunpack.c.l.b16 %v716
    %v805 = vunpack.c.h.b16 %v716
    %v806 = vunpack.c.l.b16 %v717
    %v807 = vunpack.c.h.b16 %v717
    %v808 = vunpack.c.l.b16 %v718
    %v809 = vunpack.c.h.b16 %v718
    %v810 = vunpack.c.l.b16 %v719
    %v811 = vunpack.c.h.b16 %v719
    %v812 = vunpack.c.l.b16 %v720
    %v813 = vunpack.c.h.b16 %v720
    %v814 = vunpack.c.l.b16 %v721
    %v815 = vunpack.c.h.b16 %v721
    %v816 = vunpack.c.l.b16 %v722
    %v817 = vunpack.c.h.b16 %v722
    %v818 = vunpack.c.l.b16 %v723
    %v819 = vunpack.c.h.b16 %v723
    %v820 = vpack.c.b16 %v760, %v756
    %v821 = vpack.c.b16 %v761, %v757
    %v822 = vpack.c.b16 %v762, %v758
    %v823 = vpack.c.b16 %v763, %v759
    %v824 = vpack.c.b16 %v768, %v764
    %v825 = vpack.c.b16 %v769, %v765
    %v826 = vpack.c.b16 %v770, %v766
    %v827 = vpack.c.b16 %v771, %v767
    %v828 = vpack.c.b16 %v776, %v772
    %v829 = vpack.c.b16 %v777, %v773
    %v830 = vpack.c.b16 %v778, %v774
    %v831 = vpack.c.b16 %v779, %v775
    %v832 = vpack.c.b16 %v784, %v780
    %v833 = vpack.c.b16 %v785, %v781
    %v834 = vpack.c.b16 %v786, %v782
    %v835 = vpack.c.b16 %v787, %v783
    %v836 = vpack.c.b16 %v792, %v788
    %v837 = vpack.c.b16 %v793, %v789
    %v838 = vpack.c.b16 %v794, %v790
    %v839 = vpack.c.b16 %v795, %v791
    %v840 = vpack.c.b16 %v800, %v796
    %v841 = vpack.c.b16 %v801, %v797
    %v842 = vpack.c.b16 %v802, %v798
    %v843 = vpack.c.b16 %v803, %v799
    %v844 = vpack.c.b16 %v808, %v804
    %v845 = vpack.c.b16 %v809, %v805
    %v846 = vpack.c.b16 %v810, %v806
    %v847 = vpack.c.b16 %v811, %v807
    %v848 = vpack.c.b16 %v816, %v812
    %v849 = vpack.c.b16 %v817, %v813
    %v850 = vpack.c.b16 %v818, %v814
    %v851 = vpack.c.b16 %v819, %v815
    %884 = vmatprep.subr.bf16.mxu0 %v849
    %885 = vmatpush1.bf16.msra.mxu0 %v848
    %886 = vmatprep.subr.bf16.mxu0 %v845
    %887 = vmatpush1.bf16.msra.mxu0 %v844
    %888 = vmatprep.subr.bf16.mxu0 %v841
    %889 = vmatpush1.bf16.msra.mxu0 %v840
    %890 = vmatprep.subr.bf16.mxu0 %v837
    %891 = vmatpush1.bf16.msra.mxu0 %v836
    %892 = vmatprep.subr.bf16.mxu0 %v833
    %893 = vmatpush1.bf16.msra.mxu0 %v832
    %894 = vmatprep.subr.bf16.mxu0 %v829
    %895 = vmatpush1.bf16.msra.mxu0 %v828
    %896 = vmatprep.subr.bf16.mxu0 %v825
    %897 = vmatpush1.bf16.msra.mxu0 %v824
    %898 = vmatprep.subr.bf16.mxu0 %v821
    %899 = vmatpush1.bf16.msra.mxu0 %v820
    %900 = vmatprep.subr.bf16.mxu0 0
    %901 = vmatpush2.bf16.msra.mxu0 0
    %902 = vmatprep.subr.bf16.mxu0 0
    %903 = vmatpush2.bf16.msra.mxu0 0
    %904 = vmatprep.subr.bf16.mxu0 0
    %905 = vmatpush2.bf16.msra.mxu0 0
    %906 = vmatprep.subr.bf16.mxu0 0
    %907 = vmatpush2.bf16.msra.mxu0 0
    %908 = vmatprep.subr.bf16.mxu0 0
    %909 = vmatpush2.bf16.msra.mxu0 0
    %910 = vmatprep.subr.bf16.mxu0 0
    %911 = vmatpush2.bf16.msra.mxu0 0
    %912 = vmatprep.subr.bf16.mxu0 0
    %913 = vmatpush2.bf16.msra.mxu0 0
    %914 = vmatprep.subr.bf16.mxu0 0
    %915 = vmatpush2.bf16.msra.mxu0 0
    %916 = vmatprep.mubr.bf16.mxu0 0
    %917 = vmatmul.mubr.bf16.gmra.mxu0 %v691
    %v918 = vpop.f32.mrf.mxu0
    %v919 = vadd.f32 0.0, %v918
    %v920 = vpop.f32.mrf.mxu0
    %v921 = vadd.f32 0.0, %v920
    %v922 = vpop.f32.mrf.mxu0
    %v923 = vpop.f32.mrf.mxu0
    %924 = vdwg.mxu0
    %925 = vmatprep.subr.bf16.mxu0 %v851
    %926 = vmatpush1.bf16.msra.mxu0 %v850
    %927 = vmatprep.subr.bf16.mxu0 %v847
    %928 = vmatpush1.bf16.msra.mxu0 %v846
    %929 = vmatprep.subr.bf16.mxu0 %v843
    %930 = vmatpush1.bf16.msra.mxu0 %v842
    %931 = vmatprep.subr.bf16.mxu0 %v839
    %932 = vmatpush1.bf16.msra.mxu0 %v838
    %933 = vmatprep.subr.bf16.mxu0 %v835
    %934 = vmatpush1.bf16.msra.mxu0 %v834
    %935 = vmatprep.subr.bf16.mxu0 %v831
    %936 = vmatpush1.bf16.msra.mxu0 %v830
    %937 = vmatprep.subr.bf16.mxu0 %v827
    %938 = vmatpush1.bf16.msra.mxu0 %v826
    %939 = vmatprep.subr.bf16.mxu0 %v823
    %940 = vmatpush1.bf16.msra.mxu0 %v822
    %941 = vmatprep.subr.bf16.mxu0 0
    %942 = vmatpush2.bf16.msra.mxu0 0
    %943 = vmatprep.subr.bf16.mxu0 0
    %944 = vmatpush2.bf16.msra.mxu0 0
    %945 = vmatprep.subr.bf16.mxu0 0
    %946 = vmatpush2.bf16.msra.mxu0 0
    %947 = vmatprep.subr.bf16.mxu0 0
    %948 = vmatpush2.bf16.msra.mxu0 0
    %949 = vmatprep.subr.bf16.mxu0 0
    %950 = vmatpush2.bf16.msra.mxu0 0
    %951 = vmatprep.subr.bf16.mxu0 0
    %952 = vmatpush2.bf16.msra.mxu0 0
    %953 = vmatprep.subr.bf16.mxu0 0
    %954 = vmatpush2.bf16.msra.mxu0 0
    %955 = vmatprep.subr.bf16.mxu0 0
    %956 = vmatpush2.bf16.msra.mxu0 0
    %957 = vmatprep.mubr.bf16.mxu0 0
    %958 = vmatmul.mubr.bf16.gmra.mxu0 %v691
    %v959 = vpop.f32.mrf.mxu0
    %v960 = vadd.f32 0.0, %v959
    %v961 = vpop.f32.mrf.mxu0
    %v962 = vadd.f32 0.0, %v961
    %v963 = vpop.f32.mrf.mxu0
    %v964 = vpop.f32.mrf.mxu0
    %965 = vdwg.mxu0
    %v966 = vadd.f32 %v687, %v919
    %v967 = vadd.f32 %v688, %v921
    %v968 = vadd.f32 %v689, %v960
    %v969 = vadd.f32 %v690, %v962
    %v970 = vxor.u32 %v966, 2147483648
    %v971 = vmul.f32 %v970, 1.442695
    %v972 = vpow.pop %v971
    %v973 = vadd.f32 %v972, 1.0
    %v974 = vrcp.pop %v973
    %v975 = vmul.f32 1.0, %v974
    %v976 = vxor.u32 %v967, 2147483648
    %v977 = vmul.f32 %v976, 1.442695
    %v978 = vpow.pop %v977
    %v979 = vadd.f32 %v978, 1.0
    %v980 = vrcp.pop %v979
    %v981 = vmul.f32 1.0, %v980
    %v982 = vtanh.pop %v968
    %v983 = vxor.u32 %v969, 2147483648
    %v984 = vmul.f32 %v983, 1.442695
    %v985 = vpow.pop %v984
    %v986 = vadd.f32 %v985, 1.0
    %v987 = vrcp.pop %v986
    %v988 = vmul.f32 1.0, %v987
    %v989 = vmul.f32 %v981, %v685
    %v990 = vmul.f32 %v975, %v982
    %v991 = vadd.f32 %v989, %v990
    %v992 = vtanh.pop %v991
    %v993 = vmul.f32 %v988, %v992
    %994 = vst [vmem:[#allocation4] sm:$0xff] %v991
    %995 = vst [vmem:[#allocation3] sm:$0xff] %v993
    %s996 = scalar_lea.vmem [#allocation13], 8
    %997 = vst [vmem:[%s996] sm:$0xff] %v993
    %v998 = vld [vmem:[#allocation3] sm:$0xff]
    %v999 = vld [vmem:[#allocation4] sm:$0xff]
    %s1000 = scalar_lea.vmem [#allocation2], 64
    %v1001 = vld [vmem:[%s1000] sm:$0xff]
    %v1002 = vld [vmem:[%s1000 + $0x8] sm:$0xff]
    %v1003 = vld [vmem:[%s1000 + $0x10] sm:$0xff]
    %v1004 = vld [vmem:[%s1000 + $0x18] sm:$0xff]
    %v1005 = vpack.c.bf16 %v998, %v998
    %v1006 = vld [vmem:[#allocation11] sm:$0xff]
    %v1007 = vld [vmem:[#allocation11 + $0x8] sm:$0xff]
    %v1008 = vld [vmem:[#allocation11 + $0x10] sm:$0xff]
    %v1009 = vld [vmem:[#allocation11 + $0x18] sm:$0xff]
    %v1010 = vld [vmem:[#allocation11 + $0x20] sm:$0xff]
    %v1011 = vld [vmem:[#allocation11 + $0x28] sm:$0xff]
    %v1012 = vld [vmem:[#allocation11 + $0x30] sm:$0xff]
    %v1013 = vld [vmem:[#allocation11 + $0x38] sm:$0xff]
    %v1014 = vld [vmem:[#allocation11 + $0x40] sm:$0xff]
    %v1015 = vld [vmem:[#allocation11 + $0x48] sm:$0xff]
    %v1016 = vld [vmem:[#allocation11 + $0x50] sm:$0xff]
    %v1017 = vld [vmem:[#allocation11 + $0x58] sm:$0xff]
    %v1018 = vld [vmem:[#allocation11 + $0x60] sm:$0xff]
    %v1019 = vld [vmem:[#allocation11 + $0x68] sm:$0xff]
    %v1020 = vld [vmem:[#allocation11 + $0x70] sm:$0xff]
    %v1021 = vld [vmem:[#allocation11 + $0x78] sm:$0xff]
    %v1022 = vld [vmem:[#allocation11 + $0x80] sm:$0xff]
    %v1023 = vld [vmem:[#allocation11 + $0x88] sm:$0xff]
    %v1024 = vld [vmem:[#allocation11 + $0x90] sm:$0xff]
    %v1025 = vld [vmem:[#allocation11 + $0x98] sm:$0xff]
    %v1026 = vld [vmem:[#allocation11 + $0xa0] sm:$0xff]
    %v1027 = vld [vmem:[#allocation11 + $0xa8] sm:$0xff]
    %v1028 = vld [vmem:[#allocation11 + $0xb0] sm:$0xff]
    %v1029 = vld [vmem:[#allocation11 + $0xb8] sm:$0xff]
    %v1030 = vld [vmem:[#allocation11 + $0xc0] sm:$0xff]
    %v1031 = vld [vmem:[#allocation11 + $0xc8] sm:$0xff]
    %v1032 = vld [vmem:[#allocation11 + $0xd0] sm:$0xff]
    %v1033 = vld [vmem:[#allocation11 + $0xd8] sm:$0xff]
    %v1034 = vld [vmem:[#allocation11 + $0xe0] sm:$0xff]
    %v1035 = vld [vmem:[#allocation11 + $0xe8] sm:$0xff]
    %v1036 = vld [vmem:[#allocation11 + $0xf0] sm:$0xff]
    %v1037 = vld [vmem:[#allocation11 + $0xf8] sm:$0xff]
    %v1070 = vunpack.c.l.b16 %v1006
    %v1071 = vunpack.c.h.b16 %v1006
    %v1072 = vunpack.c.l.b16 %v1007
    %v1073 = vunpack.c.h.b16 %v1007
    %v1074 = vunpack.c.l.b16 %v1008
    %v1075 = vunpack.c.h.b16 %v1008
    %v1076 = vunpack.c.l.b16 %v1009
    %v1077 = vunpack.c.h.b16 %v1009
    %v1078 = vunpack.c.l.b16 %v1010
    %v1079 = vunpack.c.h.b16 %v1010
    %v1080 = vunpack.c.l.b16 %v1011
    %v1081 = vunpack.c.h.b16 %v1011
    %v1082 = vunpack.c.l.b16 %v1012
    %v1083 = vunpack.c.h.b16 %v1012
    %v1084 = vunpack.c.l.b16 %v1013
    %v1085 = vunpack.c.h.b16 %v1013
    %v1086 = vunpack.c.l.b16 %v1014
    %v1087 = vunpack.c.h.b16 %v1014
    %v1088 = vunpack.c.l.b16 %v1015
    %v1089 = vunpack.c.h.b16 %v1015
    %v1090 = vunpack.c.l.b16 %v1016
    %v1091 = vunpack.c.h.b16 %v1016
    %v1092 = vunpack.c.l.b16 %v1017
    %v1093 = vunpack.c.h.b16 %v1017
    %v1094 = vunpack.c.l.b16 %v1018
    %v1095 = vunpack.c.h.b16 %v1018
    %v1096 = vunpack.c.l.b16 %v1019
    %v1097 = vunpack.c.h.b16 %v1019
    %v1098 = vunpack.c.l.b16 %v1020
    %v1099 = vunpack.c.h.b16 %v1020
    %v1100 = vunpack.c.l.b16 %v1021
    %v1101 = vunpack.c.h.b16 %v1021
    %v1102 = vunpack.c.l.b16 %v1022
    %v1103 = vunpack.c.h.b16 %v1022
    %v1104 = vunpack.c.l.b16 %v1023
    %v1105 = vunpack.c.h.b16 %v1023
    %v1106 = vunpack.c.l.b16 %v1024
    %v1107 = vunpack.c.h.b16 %v1024
    %v1108 = vunpack.c.l.b16 %v1025
    %v1109 = vunpack.c.h.b16 %v1025
    %v1110 = vunpack.c.l.b16 %v1026
    %v1111 = vunpack.c.h.b16 %v1026
    %v1112 = vunpack.c.l.b16 %v1027
    %v1113 = vunpack.c.h.b16 %v1027
    %v1114 = vunpack.c.l.b16 %v1028
    %v1115 = vunpack.c.h.b16 %v1028
    %v1116 = vunpack.c.l.b16 %v1029
    %v1117 = vunpack.c.h.b16 %v1029
    %v1118 = vunpack.c.l.b16 %v1030
    %v1119 = vunpack.c.h.b16 %v1030
    %v1120 = vunpack.c.l.b16 %v1031
    %v1121 = vunpack.c.h.b16 %v1031
    %v1122 = vunpack.c.l.b16 %v1032
    %v1123 = vunpack.c.h.b16 %v1032
    %v1124 = vunpack.c.l.b16 %v1033
    %v1125 = vunpack.c.h.b16 %v1033
    %v1126 = vunpack.c.l.b16 %v1034
    %v1127 = vunpack.c.h.b16 %v1034
    %v1128 = vunpack.c.l.b16 %v1035
    %v1129 = vunpack.c.h.b16 %v1035
    %v1130 = vunpack.c.l.b16 %v1036
    %v1131 = vunpack.c.h.b16 %v1036
    %v1132 = vunpack.c.l.b16 %v1037
    %v1133 = vunpack.c.h.b16 %v1037
    %v1134 = vpack.c.b16 %v1074, %v1070
    %v1135 = vpack.c.b16 %v1075, %v1071
    %v1136 = vpack.c.b16 %v1076, %v1072
    %v1137 = vpack.c.b16 %v1077, %v1073
    %v1138 = vpack.c.b16 %v1082, %v1078
    %v1139 = vpack.c.b16 %v1083, %v1079
    %v1140 = vpack.c.b16 %v1084, %v1080
    %v1141 = vpack.c.b16 %v1085, %v1081
    %v1142 = vpack.c.b16 %v1090, %v1086
    %v1143 = vpack.c.b16 %v1091, %v1087
    %v1144 = vpack.c.b16 %v1092, %v1088
    %v1145 = vpack.c.b16 %v1093, %v1089
    %v1146 = vpack.c.b16 %v1098, %v1094
    %v1147 = vpack.c.b16 %v1099, %v1095
    %v1148 = vpack.c.b16 %v1100, %v1096
    %v1149 = vpack.c.b16 %v1101, %v1097
    %v1150 = vpack.c.b16 %v1106, %v1102
    %v1151 = vpack.c.b16 %v1107, %v1103
    %v1152 = vpack.c.b16 %v1108, %v1104
    %v1153 = vpack.c.b16 %v1109, %v1105
    %v1154 = vpack.c.b16 %v1114, %v1110
    %v1155 = vpack.c.b16 %v1115, %v1111
    %v1156 = vpack.c.b16 %v1116, %v1112
    %v1157 = vpack.c.b16 %v1117, %v1113
    %v1158 = vpack.c.b16 %v1122, %v1118
    %v1159 = vpack.c.b16 %v1123, %v1119
    %v1160 = vpack.c.b16 %v1124, %v1120
    %v1161 = vpack.c.b16 %v1125, %v1121
    %v1162 = vpack.c.b16 %v1130, %v1126
    %v1163 = vpack.c.b16 %v1131, %v1127
    %v1164 = vpack.c.b16 %v1132, %v1128
    %v1165 = vpack.c.b16 %v1133, %v1129
    %1198 = vmatprep.subr.bf16.mxu0 %v1163
    %1199 = vmatpush1.bf16.msra.mxu0 %v1162
    %1200 = vmatprep.subr.bf16.mxu0 %v1159
    %1201 = vmatpush1.bf16.msra.mxu0 %v1158
    %1202 = vmatprep.subr.bf16.mxu0 %v1155
    %1203 = vmatpush1.bf16.msra.mxu0 %v1154
    %1204 = vmatprep.subr.bf16.mxu0 %v1151
    %1205 = vmatpush1.bf16.msra.mxu0 %v1150
    %1206 = vmatprep.subr.bf16.mxu0 %v1147
    %1207 = vmatpush1.bf16.msra.mxu0 %v1146
    %1208 = vmatprep.subr.bf16.mxu0 %v1143
    %1209 = vmatpush1.bf16.msra.mxu0 %v1142
    %1210 = vmatprep.subr.bf16.mxu0 %v1139
    %1211 = vmatpush1.bf16.msra.mxu0 %v1138
    %1212 = vmatprep.subr.bf16.mxu0 %v1135
    %1213 = vmatpush1.bf16.msra.mxu0 %v1134
    %1214 = vmatprep.subr.bf16.mxu0 0
    %1215 = vmatpush2.bf16.msra.mxu0 0
    %1216 = vmatprep.subr.bf16.mxu0 0
    %1217 = vmatpush2.bf16.msra.mxu0 0
    %1218 = vmatprep.subr.bf16.mxu0 0
    %1219 = vmatpush2.bf16.msra.mxu0 0
    %1220 = vmatprep.subr.bf16.mxu0 0
    %1221 = vmatpush2.bf16.msra.mxu0 0
    %1222 = vmatprep.subr.bf16.mxu0 0
    %1223 = vmatpush2.bf16.msra.mxu0 0
    %1224 = vmatprep.subr.bf16.mxu0 0
    %1225 = vmatpush2.bf16.msra.mxu0 0
    %1226 = vmatprep.subr.bf16.mxu0 0
    %1227 = vmatpush2.bf16.msra.mxu0 0
    %1228 = vmatprep.subr.bf16.mxu0 0
    %1229 = vmatpush2.bf16.msra.mxu0 0
    %1230 = vmatprep.mubr.bf16.mxu0 0
    %1231 = vmatmul.mubr.bf16.gmra.mxu0 %v1005
    %v1232 = vpop.f32.mrf.mxu0
    %v1233 = vadd.f32 0.0, %v1232
    %v1234 = vpop.f32.mrf.mxu0
    %v1235 = vadd.f32 0.0, %v1234
    %v1236 = vpop.f32.mrf.mxu0
    %v1237 = vpop.f32.mrf.mxu0
    %1238 = vdwg.mxu0
    %1239 = vmatprep.subr.bf16.mxu0 %v1165
    %1240 = vmatpush1.bf16.msra.mxu0 %v1164
    %1241 = vmatprep.subr.bf16.mxu0 %v1161
    %1242 = vmatpush1.bf16.msra.mxu0 %v1160
    %1243 = vmatprep.subr.bf16.mxu0 %v1157
    %1244 = vmatpush1.bf16.msra.mxu0 %v1156
    %1245 = vmatprep.subr.bf16.mxu0 %v1153
    %1246 = vmatpush1.bf16.msra.mxu0 %v1152
    %1247 = vmatprep.subr.bf16.mxu0 %v1149
    %1248 = vmatpush1.bf16.msra.mxu0 %v1148
    %1249 = vmatprep.subr.bf16.mxu0 %v1145
    %1250 = vmatpush1.bf16.msra.mxu0 %v1144
    %1251 = vmatprep.subr.bf16.mxu0 %v1141
    %1252 = vmatpush1.bf16.msra.mxu0 %v1140
    %1253 = vmatprep.subr.bf16.mxu0 %v1137
    %1254 = vmatpush1.bf16.msra.mxu0 %v1136
    %1255 = vmatprep.subr.bf16.mxu0 0
    %1256 = vmatpush2.bf16.msra.mxu0 0
    %1257 = vmatprep.subr.bf16.mxu0 0
    %1258 = vmatpush2.bf16.msra.mxu0 0
    %1259 = vmatprep.subr.bf16.mxu0 0
    %1260 = vmatpush2.bf16.msra.mxu0 0
    %1261 = vmatprep.subr.bf16.mxu0 0
    %1262 = vmatpush2.bf16.msra.mxu0 0
    %1263 = vmatprep.subr.bf16.mxu0 0
    %1264 = vmatpush2.bf16.msra.mxu0 0
    %1265 = vmatprep.subr.bf16.mxu0 0
    %1266 = vmatpush2.bf16.msra.mxu0 0
    %1267 = vmatprep.subr.bf16.mxu0 0
    %1268 = vmatpush2.bf16.msra.mxu0 0
    %1269 = vmatprep.subr.bf16.mxu0 0
    %1270 = vmatpush2.bf16.msra.mxu0 0
    %1271 = vmatprep.mubr.bf16.mxu0 0
    %1272 = vmatmul.mubr.bf16.gmra.mxu0 %v1005
    %v1273 = vpop.f32.mrf.mxu0
    %v1274 = vadd.f32 0.0, %v1273
    %v1275 = vpop.f32.mrf.mxu0
    %v1276 = vadd.f32 0.0, %v1275
    %v1277 = vpop.f32.mrf.mxu0
    %v1278 = vpop.f32.mrf.mxu0
    %1279 = vdwg.mxu0
    %v1280 = vadd.f32 %v1001, %v1233
    %v1281 = vadd.f32 %v1002, %v1235
    %v1282 = vadd.f32 %v1003, %v1274
    %v1283 = vadd.f32 %v1004, %v1276
    %v1284 = vxor.u32 %v1280, 2147483648
    %v1285 = vmul.f32 %v1284, 1.442695
    %v1286 = vpow.pop %v1285
    %v1287 = vadd.f32 %v1286, 1.0
    %v1288 = vrcp.pop %v1287
    %v1289 = vmul.f32 1.0, %v1288
    %v1290 = vxor.u32 %v1281, 2147483648
    %v1291 = vmul.f32 %v1290, 1.442695
    %v1292 = vpow.pop %v1291
    %v1293 = vadd.f32 %v1292, 1.0
    %v1294 = vrcp.pop %v1293
    %v1295 = vmul.f32 1.0, %v1294
    %v1296 = vtanh.pop %v1282
    %v1297 = vxor.u32 %v1283, 2147483648
    %v1298 = vmul.f32 %v1297, 1.442695
    %v1299 = vpow.pop %v1298
    %v1300 = vadd.f32 %v1299, 1.0
    %v1301 = vrcp.pop %v1300
    %v1302 = vmul.f32 1.0, %v1301
    %v1303 = vmul.f32 %v1295, %v999
    %v1304 = vmul.f32 %v1289, %v1296
    %v1305 = vadd.f32 %v1303, %v1304
    %v1306 = vtanh.pop %v1305
    %v1307 = vmul.f32 %v1302, %v1306
    %1308 = vst [vmem:[#allocation4] sm:$0xff] %v1305
    %1309 = vst [vmem:[#allocation3] sm:$0xff] %v1307
    %s1310 = scalar_lea.vmem [#allocation13], 16
    %1311 = vst [vmem:[%s1310] sm:$0xff] %v1307
    %v1312 = vld [vmem:[#allocation3] sm:$0xff]
    %v1313 = vld [vmem:[#allocation4] sm:$0xff]
    %s1314 = scalar_lea.vmem [#allocation2], 96
    %v1315 = vld [vmem:[%s1314] sm:$0xff]
    %v1316 = vld [vmem:[%s1314 + $0x8] sm:$0xff]
    %v1317 = vld [vmem:[%s1314 + $0x10] sm:$0xff]
    %v1318 = vld [vmem:[%s1314 + $0x18] sm:$0xff]
    %v1319 = vpack.c.bf16 %v1312, %v1312
    %v1320 = vld [vmem:[#allocation11] sm:$0xff]
    %v1321 = vld [vmem:[#allocation11 + $0x8] sm:$0xff]
    %v1322 = vld [vmem:[#allocation11 + $0x10] sm:$0xff]
    %v1323 = vld [vmem:[#allocation11 + $0x18] sm:$0xff]
    %v1324 = vld [vmem:[#allocation11 + $0x20] sm:$0xff]
    %v1325 = vld [vmem:[#allocation11 + $0x28] sm:$0xff]
    %v1326 = vld [vmem:[#allocation11 + $0x30] sm:$0xff]
    %v1327 = vld [vmem:[#allocation11 + $0x38] sm:$0xff]
    %v1328 = vld [vmem:[#allocation11 + $0x40] sm:$0xff]
    %v1329 = vld [vmem:[#allocation11 + $0x48] sm:$0xff]
    %v1330 = vld [vmem:[#allocation11 + $0x50] sm:$0xff]
    %v1331 = vld [vmem:[#allocation11 + $0x58] sm:$0xff]
    %v1332 = vld [vmem:[#allocation11 + $0x60] sm:$0xff]
    %v1333 = vld [vmem:[#allocation11 + $0x68] sm:$0xff]
    %v1334 = vld [vmem:[#allocation11 + $0x70] sm:$0xff]
    %v1335 = vld [vmem:[#allocation11 + $0x78] sm:$0xff]
    %v1336 = vld [vmem:[#allocation11 + $0x80] sm:$0xff]
    %v1337 = vld [vmem:[#allocation11 + $0x88] sm:$0xff]
    %v1338 = vld [vmem:[#allocation11 + $0x90] sm:$0xff]
    %v1339 = vld [vmem:[#allocation11 + $0x98] sm:$0xff]
    %v1340 = vld [vmem:[#allocation11 + $0xa0] sm:$0xff]
    %v1341 = vld [vmem:[#allocation11 + $0xa8] sm:$0xff]
    %v1342 = vld [vmem:[#allocation11 + $0xb0] sm:$0xff]
    %v1343 = vld [vmem:[#allocation11 + $0xb8] sm:$0xff]
    %v1344 = vld [vmem:[#allocation11 + $0xc0] sm:$0xff]
    %v1345 = vld [vmem:[#allocation11 + $0xc8] sm:$0xff]
    %v1346 = vld [vmem:[#allocation11 + $0xd0] sm:$0xff]
    %v1347 = vld [vmem:[#allocation11 + $0xd8] sm:$0xff]
    %v1348 = vld [vmem:[#allocation11 + $0xe0] sm:$0xff]
    %v1349 = vld [vmem:[#allocation11 + $0xe8] sm:$0xff]
    %v1350 = vld [vmem:[#allocation11 + $0xf0] sm:$0xff]
    %v1351 = vld [vmem:[#allocation11 + $0xf8] sm:$0xff]
    %v1384 = vunpack.c.l.b16 %v1320
    %v1385 = vunpack.c.h.b16 %v1320
    %v1386 = vunpack.c.l.b16 %v1321
    %v1387 = vunpack.c.h.b16 %v1321
    %v1388 = vunpack.c.l.b16 %v1322
    %v1389 = vunpack.c.h.b16 %v1322
    %v1390 = vunpack.c.l.b16 %v1323
    %v1391 = vunpack.c.h.b16 %v1323
    %v1392 = vunpack.c.l.b16 %v1324
    %v1393 = vunpack.c.h.b16 %v1324
    %v1394 = vunpack.c.l.b16 %v1325
    %v1395 = vunpack.c.h.b16 %v1325
    %v1396 = vunpack.c.l.b16 %v1326
    %v1397 = vunpack.c.h.b16 %v1326
    %v1398 = vunpack.c.l.b16 %v1327
    %v1399 = vunpack.c.h.b16 %v1327
    %v1400 = vunpack.c.l.b16 %v1328
    %v1401 = vunpack.c.h.b16 %v1328
    %v1402 = vunpack.c.l.b16 %v1329
    %v1403 = vunpack.c.h.b16 %v1329
    %v1404 = vunpack.c.l.b16 %v1330
    %v1405 = vunpack.c.h.b16 %v1330
    %v1406 = vunpack.c.l.b16 %v1331
    %v1407 = vunpack.c.h.b16 %v1331
    %v1408 = vunpack.c.l.b16 %v1332
    %v1409 = vunpack.c.h.b16 %v1332
    %v1410 = vunpack.c.l.b16 %v1333
    %v1411 = vunpack.c.h.b16 %v1333
    %v1412 = vunpack.c.l.b16 %v1334
    %v1413 = vunpack.c.h.b16 %v1334
    %v1414 = vunpack.c.l.b16 %v1335
    %v1415 = vunpack.c.h.b16 %v1335
    %v1416 = vunpack.c.l.b16 %v1336
    %v1417 = vunpack.c.h.b16 %v1336
    %v1418 = vunpack.c.l.b16 %v1337
    %v1419 = vunpack.c.h.b16 %v1337
    %v1420 = vunpack.c.l.b16 %v1338
    %v1421 = vunpack.c.h.b16 %v1338
    %v1422 = vunpack.c.l.b16 %v1339
    %v1423 = vunpack.c.h.b16 %v1339
    %v1424 = vunpack.c.l.b16 %v1340
    %v1425 = vunpack.c.h.b16 %v1340
    %v1426 = vunpack.c.l.b16 %v1341
    %v1427 = vunpack.c.h.b16 %v1341
    %v1428 = vunpack.c.l.b16 %v1342
    %v1429 = vunpack.c.h.b16 %v1342
    %v1430 = vunpack.c.l.b16 %v1343
    %v1431 = vunpack.c.h.b16 %v1343
    %v1432 = vunpack.c.l.b16 %v1344
    %v1433 = vunpack.c.h.b16 %v1344
    %v1434 = vunpack.c.l.b16 %v1345
    %v1435 = vunpack.c.h.b16 %v1345
    %v1436 = vunpack.c.l.b16 %v1346
    %v1437 = vunpack.c.h.b16 %v1346
    %v1438 = vunpack.c.l.b16 %v1347
    %v1439 = vunpack.c.h.b16 %v1347
    %v1440 = vunpack.c.l.b16 %v1348
    %v1441 = vunpack.c.h.b16 %v1348
    %v1442 = vunpack.c.l.b16 %v1349
    %v1443 = vunpack.c.h.b16 %v1349
    %v1444 = vunpack.c.l.b16 %v1350
    %v1445 = vunpack.c.h.b16 %v1350
    %v1446 = vunpack.c.l.b16 %v1351
    %v1447 = vunpack.c.h.b16 %v1351
    %v1448 = vpack.c.b16 %v1388, %v1384
    %v1449 = vpack.c.b16 %v1389, %v1385
    %v1450 = vpack.c.b16 %v1390, %v1386
    %v1451 = vpack.c.b16 %v1391, %v1387
    %v1452 = vpack.c.b16 %v1396, %v1392
    %v1453 = vpack.c.b16 %v1397, %v1393
    %v1454 = vpack.c.b16 %v1398, %v1394
    %v1455 = vpack.c.b16 %v1399, %v1395
    %v1456 = vpack.c.b16 %v1404, %v1400
    %v1457 = vpack.c.b16 %v1405, %v1401
    %v1458 = vpack.c.b16 %v1406, %v1402
    %v1459 = vpack.c.b16 %v1407, %v1403
    %v1460 = vpack.c.b16 %v1412, %v1408
    %v1461 = vpack.c.b16 %v1413, %v1409
    %v1462 = vpack.c.b16 %v1414, %v1410
    %v1463 = vpack.c.b16 %v1415, %v1411
    %v1464 = vpack.c.b16 %v1420, %v1416
    %v1465 = vpack.c.b16 %v1421, %v1417
    %v1466 = vpack.c.b16 %v1422, %v1418
    %v1467 = vpack.c.b16 %v1423, %v1419
    %v1468 = vpack.c.b16 %v1428, %v1424
    %v1469 = vpack.c.b16 %v1429, %v1425
    %v1470 = vpack.c.b16 %v1430, %v1426
    %v1471 = vpack.c.b16 %v1431, %v1427
    %v1472 = vpack.c.b16 %v1436, %v1432
    %v1473 = vpack.c.b16 %v1437, %v1433
    %v1474 = vpack.c.b16 %v1438, %v1434
    %v1475 = vpack.c.b16 %v1439, %v1435
    %v1476 = vpack.c.b16 %v1444, %v1440
    %v1477 = vpack.c.b16 %v1445, %v1441
    %v1478 = vpack.c.b16 %v1446, %v1442
    %v1479 = vpack.c.b16 %v1447, %v1443
    %1512 = vmatprep.subr.bf16.mxu0 %v1477
    %1513 = vmatpush1.bf16.msra.mxu0 %v1476
    %1514 = vmatprep.subr.bf16.mxu0 %v1473
    %1515 = vmatpush1.bf16.msra.mxu0 %v1472
    %1516 = vmatprep.subr.bf16.mxu0 %v1469
    %1517 = vmatpush1.bf16.msra.mxu0 %v1468
    %1518 = vmatprep.subr.bf16.mxu0 %v1465
    %1519 = vmatpush1.bf16.msra.mxu0 %v1464
    %1520 = vmatprep.subr.bf16.mxu0 %v1461
    %1521 = vmatpush1.bf16.msra.mxu0 %v1460
    %1522 = vmatprep.subr.bf16.mxu0 %v1457
    %1523 = vmatpush1.bf16.msra.mxu0 %v1456
    %1524 = vmatprep.subr.bf16.mxu0 %v1453
    %1525 = vmatpush1.bf16.msra.mxu0 %v1452
    %1526 = vmatprep.subr.bf16.mxu0 %v1449
    %1527 = vmatpush1.bf16.msra.mxu0 %v1448
    %1528 = vmatprep.subr.bf16.mxu0 0
    %1529 = vmatpush2.bf16.msra.mxu0 0
    %1530 = vmatprep.subr.bf16.mxu0 0
    %1531 = vmatpush2.bf16.msra.mxu0 0
    %1532 = vmatprep.subr.bf16.mxu0 0
    %1533 = vmatpush2.bf16.msra.mxu0 0
    %1534 = vmatprep.subr.bf16.mxu0 0
    %1535 = vmatpush2.bf16.msra.mxu0 0
    %1536 = vmatprep.subr.bf16.mxu0 0
    %1537 = vmatpush2.bf16.msra.mxu0 0
    %1538 = vmatprep.subr.bf16.mxu0 0
    %1539 = vmatpush2.bf16.msra.mxu0 0
    %1540 = vmatprep.subr.bf16.mxu0 0
    %1541 = vmatpush2.bf16.msra.mxu0 0
    %1542 = vmatprep.subr.bf16.mxu0 0
    %1543 = vmatpush2.bf16.msra.mxu0 0
    %1544 = vmatprep.mubr.bf16.mxu0 0
    %1545 = vmatmul.mubr.bf16.gmra.mxu0 %v1319
    %v1546 = vpop.f32.mrf.mxu0
    %v1547 = vadd.f32 0.0, %v1546
    %v1548 = vpop.f32.mrf.mxu0
    %v1549 = vadd.f32 0.0, %v1548
    %v1550 = vpop.f32.mrf.mxu0
    %v1551 = vpop.f32.mrf.mxu0
    %1552 = vdwg.mxu0
    %1553 = vmatprep.subr.bf16.mxu0 %v1479
    %1554 = vmatpush1.bf16.msra.mxu0 %v1478
    %1555 = vmatprep.subr.bf16.mxu0 %v1475
    %1556 = vmatpush1.bf16.msra.mxu0 %v1474
    %1557 = vmatprep.subr.bf16.mxu0 %v1471
    %1558 = vmatpush1.bf16.msra.mxu0 %v1470
    %1559 = vmatprep.subr.bf16.mxu0 %v1467
    %1560 = vmatpush1.bf16.msra.mxu0 %v1466
    %1561 = vmatprep.subr.bf16.mxu0 %v1463
    %1562 = vmatpush1.bf16.msra.mxu0 %v1462
    %1563 = vmatprep.subr.bf16.mxu0 %v1459
    %1564 = vmatpush1.bf16.msra.mxu0 %v1458
    %1565 = vmatprep.subr.bf16.mxu0 %v1455
    %1566 = vmatpush1.bf16.msra.mxu0 %v1454
    %1567 = vmatprep.subr.bf16.mxu0 %v1451
    %1568 = vmatpush1.bf16.msra.mxu0 %v1450
    %1569 = vmatprep.subr.bf16.mxu0 0
    %1570 = vmatpush2.bf16.msra.mxu0 0
    %1571 = vmatprep.subr.bf16.mxu0 0
    %1572 = vmatpush2.bf16.msra.mxu0 0
    %1573 = vmatprep.subr.bf16.mxu0 0
    %1574 = vmatpush2.bf16.msra.mxu0 0
    %1575 = vmatprep.subr.bf16.mxu0 0
    %1576 = vmatpush2.bf16.msra.mxu0 0
    %1577 = vmatprep.subr.bf16.mxu0 0
    %1578 = vmatpush2.bf16.msra.mxu0 0
    %1579 = vmatprep.subr.bf16.mxu0 0
    %1580 = vmatpush2.bf16.msra.mxu0 0
    %1581 = vmatprep.subr.bf16.mxu0 0
    %1582 = vmatpush2.bf16.msra.mxu0 0
    %1583 = vmatprep.subr.bf16.mxu0 0
    %1584 = vmatpush2.bf16.msra.mxu0 0
    %1585 = vmatprep.mubr.bf16.mxu0 0
    %1586 = vmatmul.mubr.bf16.gmra.mxu0 %v1319
    %v1587 = vpop.f32.mrf.mxu0
    %v1588 = vadd.f32 0.0, %v1587
    %v1589 = vpop.f32.mrf.mxu0
    %v1590 = vadd.f32 0.0, %v1589
    %v1591 = vpop.f32.mrf.mxu0
    %v1592 = vpop.f32.mrf.mxu0
    %1593 = vdwg.mxu0
    %v1594 = vadd.f32 %v1315, %v1547
    %v1595 = vadd.f32 %v1316, %v1549
    %v1596 = vadd.f32 %v1317, %v1588
    %v1597 = vadd.f32 %v1318, %v1590
    %v1598 = vxor.u32 %v1594, 2147483648
    %v1599 = vmul.f32 %v1598, 1.442695
    %v1600 = vpow.pop %v1599
    %v1601 = vadd.f32 %v1600, 1.0
    %v1602 = vrcp.pop %v1601
    %v1603 = vmul.f32 1.0, %v1602
    %v1604 = vxor.u32 %v1595, 2147483648
    %v1605 = vmul.f32 %v1604, 1.442695
    %v1606 = vpow.pop %v1605
    %v1607 = vadd.f32 %v1606, 1.0
    %v1608 = vrcp.pop %v1607
    %v1609 = vmul.f32 1.0, %v1608
    %v1610 = vtanh.pop %v1596
    %v1611 = vxor.u32 %v1597, 2147483648
    %v1612 = vmul.f32 %v1611, 1.442695
    %v1613 = vpow.pop %v1612
    %v1614 = vadd.f32 %v1613, 1.0
    %v1615 = vrcp.pop %v1614
    %v1616 = vmul.f32 1.0, %v1615
    %v1617 = vmul.f32 %v1609, %v1313
    %v1618 = vmul.f32 %v1603, %v1610
    %v1619 = vadd.f32 %v1617, %v1618
    %v1620 = vtanh.pop %v1619
    %v1621 = vmul.f32 %v1616, %v1620
    %1622 = vst [vmem:[#allocation4] sm:$0xff] %v1619
    %1623 = vst [vmem:[#allocation3] sm:$0xff] %v1621
    %s1624 = scalar_lea.vmem [#allocation13], 24
    %1625 = vst [vmem:[%s1624] sm:$0xff] %v1621
    %v1626 = vld [vmem:[#allocation3] sm:$0xff]
    %v1627 = vld [vmem:[#allocation4] sm:$0xff]
    %s1628 = scalar_lea.vmem [#allocation2], 128
    %v1629 = vld [vmem:[%s1628] sm:$0xff]
    %v1630 = vld [vmem:[%s1628 + $0x8] sm:$0xff]
    %v1631 = vld [vmem:[%s1628 + $0x10] sm:$0xff]
    %v1632 = vld [vmem:[%s1628 + $0x18] sm:$0xff]
    %v1633 = vpack.c.bf16 %v1626, %v1626
    %v1634 = vld [vmem:[#allocation11] sm:$0xff]
    %v1635 = vld [vmem:[#allocation11 + $0x8] sm:$0xff]
    %v1636 = vld [vmem:[#allocation11 + $0x10] sm:$0xff]
    %v1637 = vld [vmem:[#allocation11 + $0x18] sm:$0xff]
    %v1638 = vld [vmem:[#allocation11 + $0x20] sm:$0xff]
    %v1639 = vld [vmem:[#allocation11 + $0x28] sm:$0xff]
    %v1640 = vld [vmem:[#allocation11 + $0x30] sm:$0xff]
    %v1641 = vld [vmem:[#allocation11 + $0x38] sm:$0xff]
    %v1642 = vld [vmem:[#allocation11 + $0x40] sm:$0xff]
    %v1643 = vld [vmem:[#allocation11 + $0x48] sm:$0xff]
    %v1644 = vld [vmem:[#allocation11 + $0x50] sm:$0xff]
    %v1645 = vld [vmem:[#allocation11 + $0x58] sm:$0xff]
    %v1646 = vld [vmem:[#allocation11 + $0x60] sm:$0xff]
    %v1647 = vld [vmem:[#allocation11 + $0x68] sm:$0xff]
    %v1648 = vld [vmem:[#allocation11 + $0x70] sm:$0xff]
    %v1649 = vld [vmem:[#allocation11 + $0x78] sm:$0xff]
    %v1650 = vld [vmem:[#allocation11 + $0x80] sm:$0xff]
    %v1651 = vld [vmem:[#allocation11 + $0x88] sm:$0xff]
    %v1652 = vld [vmem:[#allocation11 + $0x90] sm:$0xff]
    %v1653 = vld [vmem:[#allocation11 + $0x98] sm:$0xff]
    %v1654 = vld [vmem:[#allocation11 + $0xa0] sm:$0xff]
    %v1655 = vld [vmem:[#allocation11 + $0xa8] sm:$0xff]
    %v1656 = vld [vmem:[#allocation11 + $0xb0] sm:$0xff]
    %v1657 = vld [vmem:[#allocation11 + $0xb8] sm:$0xff]
    %v1658 = vld [vmem:[#allocation11 + $0xc0] sm:$0xff]
    %v1659 = vld [vmem:[#allocation11 + $0xc8] sm:$0xff]
    %v1660 = vld [vmem:[#allocation11 + $0xd0] sm:$0xff]
    %v1661 = vld [vmem:[#allocation11 + $0xd8] sm:$0xff]
    %v1662 = vld [vmem:[#allocation11 + $0xe0] sm:$0xff]
    %v1663 = vld [vmem:[#allocation11 + $0xe8] sm:$0xff]
    %v1664 = vld [vmem:[#allocation11 + $0xf0] sm:$0xff]
    %v1665 = vld [vmem:[#allocation11 + $0xf8] sm:$0xff]
    %v1698 = vunpack.c.l.b16 %v1634
    %v1699 = vunpack.c.h.b16 %v1634
    %v1700 = vunpack.c.l.b16 %v1635
    %v1701 = vunpack.c.h.b16 %v1635
    %v1702 = vunpack.c.l.b16 %v1636
    %v1703 = vunpack.c.h.b16 %v1636
    %v1704 = vunpack.c.l.b16 %v1637
    %v1705 = vunpack.c.h.b16 %v1637
    %v1706 = vunpack.c.l.b16 %v1638
    %v1707 = vunpack.c.h.b16 %v1638
    %v1708 = vunpack.c.l.b16 %v1639
    %v1709 = vunpack.c.h.b16 %v1639
    %v1710 = vunpack.c.l.b16 %v1640
    %v1711 = vunpack.c.h.b16 %v1640
    %v1712 = vunpack.c.l.b16 %v1641
    %v1713 = vunpack.c.h.b16 %v1641
    %v1714 = vunpack.c.l.b16 %v1642
    %v1715 = vunpack.c.h.b16 %v1642
    %v1716 = vunpack.c.l.b16 %v1643
    %v1717 = vunpack.c.h.b16 %v1643
    %v1718 = vunpack.c.l.b16 %v1644
    %v1719 = vunpack.c.h.b16 %v1644
    %v1720 = vunpack.c.l.b16 %v1645
    %v1721 = vunpack.c.h.b16 %v1645
    %v1722 = vunpack.c.l.b16 %v1646
    %v1723 = vunpack.c.h.b16 %v1646
    %v1724 = vunpack.c.l.b16 %v1647
    %v1725 = vunpack.c.h.b16 %v1647
    %v1726 = vunpack.c.l.b16 %v1648
    %v1727 = vunpack.c.h.b16 %v1648
    %v1728 = vunpack.c.l.b16 %v1649
    %v1729 = vunpack.c.h.b16 %v1649
    %v1730 = vunpack.c.l.b16 %v1650
    %v1731 = vunpack.c.h.b16 %v1650
    %v1732 = vunpack.c.l.b16 %v1651
    %v1733 = vunpack.c.h.b16 %v1651
    %v1734 = vunpack.c.l.b16 %v1652
    %v1735 = vunpack.c.h.b16 %v1652
    %v1736 = vunpack.c.l.b16 %v1653
    %v1737 = vunpack.c.h.b16 %v1653
    %v1738 = vunpack.c.l.b16 %v1654
    %v1739 = vunpack.c.h.b16 %v1654
    %v1740 = vunpack.c.l.b16 %v1655
    %v1741 = vunpack.c.h.b16 %v1655
    %v1742 = vunpack.c.l.b16 %v1656
    %v1743 = vunpack.c.h.b16 %v1656
    %v1744 = vunpack.c.l.b16 %v1657
    %v1745 = vunpack.c.h.b16 %v1657
    %v1746 = vunpack.c.l.b16 %v1658
    %v1747 = vunpack.c.h.b16 %v1658
    %v1748 = vunpack.c.l.b16 %v1659
    %v1749 = vunpack.c.h.b16 %v1659
    %v1750 = vunpack.c.l.b16 %v1660
    %v1751 = vunpack.c.h.b16 %v1660
    %v1752 = vunpack.c.l.b16 %v1661
    %v1753 = vunpack.c.h.b16 %v1661
    %v1754 = vunpack.c.l.b16 %v1662
    %v1755 = vunpack.c.h.b16 %v1662
    %v1756 = vunpack.c.l.b16 %v1663
    %v1757 = vunpack.c.h.b16 %v1663
    %v1758 = vunpack.c.l.b16 %v1664
    %v1759 = vunpack.c.h.b16 %v1664
    %v1760 = vunpack.c.l.b16 %v1665
    %v1761 = vunpack.c.h.b16 %v1665
    %v1762 = vpack.c.b16 %v1702, %v1698
    %v1763 = vpack.c.b16 %v1703, %v1699
    %v1764 = vpack.c.b16 %v1704, %v1700
    %v1765 = vpack.c.b16 %v1705, %v1701
    %v1766 = vpack.c.b16 %v1710, %v1706
    %v1767 = vpack.c.b16 %v1711, %v1707
    %v1768 = vpack.c.b16 %v1712, %v1708
    %v1769 = vpack.c.b16 %v1713, %v1709
    %v1770 = vpack.c.b16 %v1718, %v1714
    %v1771 = vpack.c.b16 %v1719, %v1715
    %v1772 = vpack.c.b16 %v1720, %v1716
    %v1773 = vpack.c.b16 %v1721, %v1717
    %v1774 = vpack.c.b16 %v1726, %v1722
    %v1775 = vpack.c.b16 %v1727, %v1723
    %v1776 = vpack.c.b16 %v1728, %v1724
    %v1777 = vpack.c.b16 %v1729, %v1725
    %v1778 = vpack.c.b16 %v1734, %v1730
    %v1779 = vpack.c.b16 %v1735, %v1731
    %v1780 = vpack.c.b16 %v1736, %v1732
    %v1781 = vpack.c.b16 %v1737, %v1733
    %v1782 = vpack.c.b16 %v1742, %v1738
    %v1783 = vpack.c.b16 %v1743, %v1739
    %v1784 = vpack.c.b16 %v1744, %v1740
    %v1785 = vpack.c.b16 %v1745, %v1741
    %v1786 = vpack.c.b16 %v1750, %v1746
    %v1787 = vpack.c.b16 %v1751, %v1747
    %v1788 = vpack.c.b16 %v1752, %v1748
    %v1789 = vpack.c.b16 %v1753, %v1749
    %v1790 = vpack.c.b16 %v1758, %v1754
    %v1791 = vpack.c.b16 %v1759, %v1755
    %v1792 = vpack.c.b16 %v1760, %v1756
    %v1793 = vpack.c.b16 %v1761, %v1757
    %1826 = vmatprep.subr.bf16.mxu0 %v1791
    %1827 = vmatpush1.bf16.msra.mxu0 %v1790
    %1828 = vmatprep.subr.bf16.mxu0 %v1787
    %1829 = vmatpush1.bf16.msra.mxu0 %v1786
    %1830 = vmatprep.subr.bf16.mxu0 %v1783
    %1831 = vmatpush1.bf16.msra.mxu0 %v1782
    %1832 = vmatprep.subr.bf16.mxu0 %v1779
    %1833 = vmatpush1.bf16.msra.mxu0 %v1778
    %1834 = vmatprep.subr.bf16.mxu0 %v1775
    %1835 = vmatpush1.bf16.msra.mxu0 %v1774
    %1836 = vmatprep.subr.bf16.mxu0 %v1771
    %1837 = vmatpush1.bf16.msra.mxu0 %v1770
    %1838 = vmatprep.subr.bf16.mxu0 %v1767
    %1839 = vmatpush1.bf16.msra.mxu0 %v1766
    %1840 = vmatprep.subr.bf16.mxu0 %v1763
    %1841 = vmatpush1.bf16.msra.mxu0 %v1762
    %1842 = vmatprep.subr.bf16.mxu0 0
    %1843 = vmatpush2.bf16.msra.mxu0 0
    %1844 = vmatprep.subr.bf16.mxu0 0
    %1845 = vmatpush2.bf16.msra.mxu0 0
    %1846 = vmatprep.subr.bf16.mxu0 0
    %1847 = vmatpush2.bf16.msra.mxu0 0
    %1848 = vmatprep.subr.bf16.mxu0 0
    %1849 = vmatpush2.bf16.msra.mxu0 0
    %1850 = vmatprep.subr.bf16.mxu0 0
    %1851 = vmatpush2.bf16.msra.mxu0 0
    %1852 = vmatprep.subr.bf16.mxu0 0
    %1853 = vmatpush2.bf16.msra.mxu0 0
    %1854 = vmatprep.subr.bf16.mxu0 0
    %1855 = vmatpush2.bf16.msra.mxu0 0
    %1856 = vmatprep.subr.bf16.mxu0 0
    %1857 = vmatpush2.bf16.msra.mxu0 0
    %1858 = vmatprep.mubr.bf16.mxu0 0
    %1859 = vmatmul.mubr.bf16.gmra.mxu0 %v1633
    %v1860 = vpop.f32.mrf.mxu0
    %v1861 = vadd.f32 0.0, %v1860
    %v1862 = vpop.f32.mrf.mxu0
    %v1863 = vadd.f32 0.0, %v1862
    %v1864 = vpop.f32.mrf.mxu0
    %v1865 = vpop.f32.mrf.mxu0
    %1866 = vdwg.mxu0
    %1867 = vmatprep.subr.bf16.mxu0 %v1793
    %1868 = vmatpush1.bf16.msra.mxu0 %v1792
    %1869 = vmatprep.subr.bf16.mxu0 %v1789
    %1870 = vmatpush1.bf16.msra.mxu0 %v1788
    %1871 = vmatprep.subr.bf16.mxu0 %v1785
    %1872 = vmatpush1.bf16.msra.mxu0 %v1784
    %1873 = vmatprep.subr.bf16.mxu0 %v1781
    %1874 = vmatpush1.bf16.msra.mxu0 %v1780
    %1875 = vmatprep.subr.bf16.mxu0 %v1777
    %1876 = vmatpush1.bf16.msra.mxu0 %v1776
    %1877 = vmatprep.subr.bf16.mxu0 %v1773
    %1878 = vmatpush1.bf16.msra.mxu0 %v1772
    %1879 = vmatprep.subr.bf16.mxu0 %v1769
    %1880 = vmatpush1.bf16.msra.mxu0 %v1768
    %1881 = vmatprep.subr.bf16.mxu0 %v1765
    %1882 = vmatpush1.bf16.msra.mxu0 %v1764
    %1883 = vmatprep.subr.bf16.mxu0 0
    %1884 = vmatpush2.bf16.msra.mxu0 0
    %1885 = vmatprep.subr.bf16.mxu0 0
    %1886 = vmatpush2.bf16.msra.mxu0 0
    %1887 = vmatprep.subr.bf16.mxu0 0
    %1888 = vmatpush2.bf16.msra.mxu0 0
    %1889 = vmatprep.subr.bf16.mxu0 0
    %1890 = vmatpush2.bf16.msra.mxu0 0
    %1891 = vmatprep.subr.bf16.mxu0 0
    %1892 = vmatpush2.bf16.msra.mxu0 0
    %1893 = vmatprep.subr.bf16.mxu0 0
    %1894 = vmatpush2.bf16.msra.mxu0 0
    %1895 = vmatprep.subr.bf16.mxu0 0
    %1896 = vmatpush2.bf16.msra.mxu0 0
    %1897 = vmatprep.subr.bf16.mxu0 0
    %1898 = vmatpush2.bf16.msra.mxu0 0
    %1899 = vmatprep.mubr.bf16.mxu0 0
    %1900 = vmatmul.mubr.bf16.gmra.mxu0 %v1633
    %v1901 = vpop.f32.mrf.mxu0
    %v1902 = vadd.f32 0.0, %v1901
    %v1903 = vpop.f32.mrf.mxu0
    %v1904 = vadd.f32 0.0, %v1903
    %v1905 = vpop.f32.mrf.mxu0
    %v1906 = vpop.f32.mrf.mxu0
    %1907 = vdwg.mxu0
    %v1908 = vadd.f32 %v1629, %v1861
    %v1909 = vadd.f32 %v1630, %v1863
    %v1910 = vadd.f32 %v1631, %v1902
    %v1911 = vadd.f32 %v1632, %v1904
    %v1912 = vxor.u32 %v1908, 2147483648
    %v1913 = vmul.f32 %v1912, 1.442695
    %v1914 = vpow.pop %v1913
    %v1915 = vadd.f32 %v1914, 1.0
    %v1916 = vrcp.pop %v1915
    %v1917 = vmul.f32 1.0, %v1916
    %v1918 = vxor.u32 %v1909, 2147483648
    %v1919 = vmul.f32 %v1918, 1.442695
    %v1920 = vpow.pop %v1919
    %v1921 = vadd.f32 %v1920, 1.0
    %v1922 = vrcp.pop %v1921
    %v1923 = vmul.f32 1.0, %v1922
    %v1924 = vtanh.pop %v1910
    %v1925 = vxor.u32 %v1911, 2147483648
    %v1926 = vmul.f32 %v1925, 1.442695
    %v1927 = vpow.pop %v1926
    %v1928 = vadd.f32 %v1927, 1.0
    %v1929 = vrcp.pop %v1928
    %v1930 = vmul.f32 1.0, %v1929
    %v1931 = vmul.f32 %v1923, %v1627
    %v1932 = vmul.f32 %v1917, %v1924
    %v1933 = vadd.f32 %v1931, %v1932
    %v1934 = vtanh.pop %v1933
    %v1935 = vmul.f32 %v1930, %v1934
    %1936 = vst [vmem:[#allocation4] sm:$0xff] %v1933
    %1937 = vst [vmem:[#allocation3] sm:$0xff] %v1935
    %s1938 = scalar_lea.vmem [#allocation13], 32
    %1939 = vst [vmem:[%s1938] sm:$0xff] %v1935
    %v1940 = vld [vmem:[#allocation3] sm:$0xff]
    %v1941 = vld [vmem:[#allocation4] sm:$0xff]
    %s1942 = scalar_lea.vmem [#allocation2], 160
    %v1943 = vld [vmem:[%s1942] sm:$0xff]
    %v1944 = vld [vmem:[%s1942 + $0x8] sm:$0xff]
    %v1945 = vld [vmem:[%s1942 + $0x10] sm:$0xff]
    %v1946 = vld [vmem:[%s1942 + $0x18] sm:$0xff]
    %v1947 = vpack.c.bf16 %v1940, %v1940
    %v1948 = vld [vmem:[#allocation11] sm:$0xff]
    %v1949 = vld [vmem:[#allocation11 + $0x8] sm:$0xff]
    %v1950 = vld [vmem:[#allocation11 + $0x10] sm:$0xff]
    %v1951 = vld [vmem:[#allocation11 + $0x18] sm:$0xff]
    %v1952 = vld [vmem:[#allocation11 + $0x20] sm:$0xff]
    %v1953 = vld [vmem:[#allocation11 + $0x28] sm:$0xff]
    %v1954 = vld [vmem:[#allocation11 + $0x30] sm:$0xff]
    %v1955 = vld [vmem:[#allocation11 + $0x38] sm:$0xff]
    %v1956 = vld [vmem:[#allocation11 + $0x40] sm:$0xff]
    %v1957 = vld [vmem:[#allocation11 + $0x48] sm:$0xff]
    %v1958 = vld [vmem:[#allocation11 + $0x50] sm:$0xff]
    %v1959 = vld [vmem:[#allocation11 + $0x58] sm:$0xff]
    %v1960 = vld [vmem:[#allocation11 + $0x60] sm:$0xff]
    %v1961 = vld [vmem:[#allocation11 + $0x68] sm:$0xff]
    %v1962 = vld [vmem:[#allocation11 + $0x70] sm:$0xff]
    %v1963 = vld [vmem:[#allocation11 + $0x78] sm:$0xff]
    %v1964 = vld [vmem:[#allocation11 + $0x80] sm:$0xff]
    %v1965 = vld [vmem:[#allocation11 + $0x88] sm:$0xff]
    %v1966 = vld [vmem:[#allocation11 + $0x90] sm:$0xff]
    %v1967 = vld [vmem:[#allocation11 + $0x98] sm:$0xff]
    %v1968 = vld [vmem:[#allocation11 + $0xa0] sm:$0xff]
    %v1969 = vld [vmem:[#allocation11 + $0xa8] sm:$0xff]
    %v1970 = vld [vmem:[#allocation11 + $0xb0] sm:$0xff]
    %v1971 = vld [vmem:[#allocation11 + $0xb8] sm:$0xff]
    %v1972 = vld [vmem:[#allocation11 + $0xc0] sm:$0xff]
    %v1973 = vld [vmem:[#allocation11 + $0xc8] sm:$0xff]
    %v1974 = vld [vmem:[#allocation11 + $0xd0] sm:$0xff]
    %v1975 = vld [vmem:[#allocation11 + $0xd8] sm:$0xff]
    %v1976 = vld [vmem:[#allocation11 + $0xe0] sm:$0xff]
    %v1977 = vld [vmem:[#allocation11 + $0xe8] sm:$0xff]
    %v1978 = vld [vmem:[#allocation11 + $0xf0] sm:$0xff]
    %v1979 = vld [vmem:[#allocation11 + $0xf8] sm:$0xff]
    %v2012 = vunpack.c.l.b16 %v1948
    %v2013 = vunpack.c.h.b16 %v1948
    %v2014 = vunpack.c.l.b16 %v1949
    %v2015 = vunpack.c.h.b16 %v1949
    %v2016 = vunpack.c.l.b16 %v1950
    %v2017 = vunpack.c.h.b16 %v1950
    %v2018 = vunpack.c.l.b16 %v1951
    %v2019 = vunpack.c.h.b16 %v1951
    %v2020 = vunpack.c.l.b16 %v1952
    %v2021 = vunpack.c.h.b16 %v1952
    %v2022 = vunpack.c.l.b16 %v1953
    %v2023 = vunpack.c.h.b16 %v1953
    %v2024 = vunpack.c.l.b16 %v1954
    %v2025 = vunpack.c.h.b16 %v1954
    %v2026 = vunpack.c.l.b16 %v1955
    %v2027 = vunpack.c.h.b16 %v1955
    %v2028 = vunpack.c.l.b16 %v1956
    %v2029 = vunpack.c.h.b16 %v1956
    %v2030 = vunpack.c.l.b16 %v1957
    %v2031 = vunpack.c.h.b16 %v1957
    %v2032 = vunpack.c.l.b16 %v1958
    %v2033 = vunpack.c.h.b16 %v1958
    %v2034 = vunpack.c.l.b16 %v1959
    %v2035 = vunpack.c.h.b16 %v1959
    %v2036 = vunpack.c.l.b16 %v1960
    %v2037 = vunpack.c.h.b16 %v1960
    %v2038 = vunpack.c.l.b16 %v1961
    %v2039 = vunpack.c.h.b16 %v1961
    %v2040 = vunpack.c.l.b16 %v1962
    %v2041 = vunpack.c.h.b16 %v1962
    %v2042 = vunpack.c.l.b16 %v1963
    %v2043 = vunpack.c.h.b16 %v1963
    %v2044 = vunpack.c.l.b16 %v1964
    %v2045 = vunpack.c.h.b16 %v1964
    %v2046 = vunpack.c.l.b16 %v1965
    %v2047 = vunpack.c.h.b16 %v1965
    %v2048 = vunpack.c.l.b16 %v1966
    %v2049 = vunpack.c.h.b16 %v1966
    %v2050 = vunpack.c.l.b16 %v1967
    %v2051 = vunpack.c.h.b16 %v1967
    %v2052 = vunpack.c.l.b16 %v1968
    %v2053 = vunpack.c.h.b16 %v1968
    %v2054 = vunpack.c.l.b16 %v1969
    %v2055 = vunpack.c.h.b16 %v1969
    %v2056 = vunpack.c.l.b16 %v1970
    %v2057 = vunpack.c.h.b16 %v1970
    %v2058 = vunpack.c.l.b16 %v1971
    %v2059 = vunpack.c.h.b16 %v1971
    %v2060 = vunpack.c.l.b16 %v1972
    %v2061 = vunpack.c.h.b16 %v1972
    %v2062 = vunpack.c.l.b16 %v1973
    %v2063 = vunpack.c.h.b16 %v1973
    %v2064 = vunpack.c.l.b16 %v1974
    %v2065 = vunpack.c.h.b16 %v1974
    %v2066 = vunpack.c.l.b16 %v1975
    %v2067 = vunpack.c.h.b16 %v1975
    %v2068 = vunpack.c.l.b16 %v1976
    %v2069 = vunpack.c.h.b16 %v1976
    %v2070 = vunpack.c.l.b16 %v1977
    %v2071 = vunpack.c.h.b16 %v1977
    %v2072 = vunpack.c.l.b16 %v1978
    %v2073 = vunpack.c.h.b16 %v1978
    %v2074 = vunpack.c.l.b16 %v1979
    %v2075 = vunpack.c.h.b16 %v1979
    %v2076 = vpack.c.b16 %v2016, %v2012
    %v2077 = vpack.c.b16 %v2017, %v2013
    %v2078 = vpack.c.b16 %v2018, %v2014
    %v2079 = vpack.c.b16 %v2019, %v2015
    %v2080 = vpack.c.b16 %v2024, %v2020
    %v2081 = vpack.c.b16 %v2025, %v2021
    %v2082 = vpack.c.b16 %v2026, %v2022
    %v2083 = vpack.c.b16 %v2027, %v2023
    %v2084 = vpack.c.b16 %v2032, %v2028
    %v2085 = vpack.c.b16 %v2033, %v2029
    %v2086 = vpack.c.b16 %v2034, %v2030
    %v2087 = vpack.c.b16 %v2035, %v2031
    %v2088 = vpack.c.b16 %v2040, %v2036
    %v2089 = vpack.c.b16 %v2041, %v2037
    %v2090 = vpack.c.b16 %v2042, %v2038
    %v2091 = vpack.c.b16 %v2043, %v2039
    %v2092 = vpack.c.b16 %v2048, %v2044
    %v2093 = vpack.c.b16 %v2049, %v2045
    %v2094 = vpack.c.b16 %v2050, %v2046
    %v2095 = vpack.c.b16 %v2051, %v2047
    %v2096 = vpack.c.b16 %v2056, %v2052
    %v2097 = vpack.c.b16 %v2057, %v2053
    %v2098 = vpack.c.b16 %v2058, %v2054
    %v2099 = vpack.c.b16 %v2059, %v2055
    %v2100 = vpack.c.b16 %v2064, %v2060
    %v2101 = vpack.c.b16 %v2065, %v2061
    %v2102 = vpack.c.b16 %v2066, %v2062
    %v2103 = vpack.c.b16 %v2067, %v2063
    %v2104 = vpack.c.b16 %v2072, %v2068
    %v2105 = vpack.c.b16 %v2073, %v2069
    %v2106 = vpack.c.b16 %v2074, %v2070
    %v2107 = vpack.c.b16 %v2075, %v2071
    %2140 = vmatprep.subr.bf16.mxu0 %v2105
    %2141 = vmatpush1.bf16.msra.mxu0 %v2104
    %2142 = vmatprep.subr.bf16.mxu0 %v2101
    %2143 = vmatpush1.bf16.msra.mxu0 %v2100
    %2144 = vmatprep.subr.bf16.mxu0 %v2097
    %2145 = vmatpush1.bf16.msra.mxu0 %v2096
    %2146 = vmatprep.subr.bf16.mxu0 %v2093
    %2147 = vmatpush1.bf16.msra.mxu0 %v2092
    %2148 = vmatprep.subr.bf16.mxu0 %v2089
    %2149 = vmatpush1.bf16.msra.mxu0 %v2088
    %2150 = vmatprep.subr.bf16.mxu0 %v2085
    %2151 = vmatpush1.bf16.msra.mxu0 %v2084
    %2152 = vmatprep.subr.bf16.mxu0 %v2081
    %2153 = vmatpush1.bf16.msra.mxu0 %v2080
    %2154 = vmatprep.subr.bf16.mxu0 %v2077
    %2155 = vmatpush1.bf16.msra.mxu0 %v2076
    %2156 = vmatprep.subr.bf16.mxu0 0
    %2157 = vmatpush2.bf16.msra.mxu0 0
    %2158 = vmatprep.subr.bf16.mxu0 0
    %2159 = vmatpush2.bf16.msra.mxu0 0
    %2160 = vmatprep.subr.bf16.mxu0 0
    %2161 = vmatpush2.bf16.msra.mxu0 0
    %2162 = vmatprep.subr.bf16.mxu0 0
    %2163 = vmatpush2.bf16.msra.mxu0 0
    %2164 = vmatprep.subr.bf16.mxu0 0
    %2165 = vmatpush2.bf16.msra.mxu0 0
    %2166 = vmatprep.subr.bf16.mxu0 0
    %2167 = vmatpush2.bf16.msra.mxu0 0
    %2168 = vmatprep.subr.bf16.mxu0 0
    %2169 = vmatpush2.bf16.msra.mxu0 0
    %2170 = vmatprep.subr.bf16.mxu0 0
    %2171 = vmatpush2.bf16.msra.mxu0 0
    %2172 = vmatprep.mubr.bf16.mxu0 0
    %2173 = vmatmul.mubr.bf16.gmra.mxu0 %v1947
    %v2174 = vpop.f32.mrf.mxu0
    %v2175 = vadd.f32 0.0, %v2174
    %v2176 = vpop.f32.mrf.mxu0
    %v2177 = vadd.f32 0.0, %v2176
    %v2178 = vpop.f32.mrf.mxu0
    %v2179 = vpop.f32.mrf.mxu0
    %2180 = vdwg.mxu0
    %2181 = vmatprep.subr.bf16.mxu0 %v2107
    %2182 = vmatpush1.bf16.msra.mxu0 %v2106
    %2183 = vmatprep.subr.bf16.mxu0 %v2103
    %2184 = vmatpush1.bf16.msra.mxu0 %v2102
    %2185 = vmatprep.subr.bf16.mxu0 %v2099
    %2186 = vmatpush1.bf16.msra.mxu0 %v2098
    %2187 = vmatprep.subr.bf16.mxu0 %v2095
    %2188 = vmatpush1.bf16.msra.mxu0 %v2094
    %2189 = vmatprep.subr.bf16.mxu0 %v2091
    %2190 = vmatpush1.bf16.msra.mxu0 %v2090
    %2191 = vmatprep.subr.bf16.mxu0 %v2087
    %2192 = vmatpush1.bf16.msra.mxu0 %v2086
    %2193 = vmatprep.subr.bf16.mxu0 %v2083
    %2194 = vmatpush1.bf16.msra.mxu0 %v2082
    %2195 = vmatprep.subr.bf16.mxu0 %v2079
    %2196 = vmatpush1.bf16.msra.mxu0 %v2078
    %2197 = vmatprep.subr.bf16.mxu0 0
    %2198 = vmatpush2.bf16.msra.mxu0 0
    %2199 = vmatprep.subr.bf16.mxu0 0
    %2200 = vmatpush2.bf16.msra.mxu0 0
    %2201 = vmatprep.subr.bf16.mxu0 0
    %2202 = vmatpush2.bf16.msra.mxu0 0
    %2203 = vmatprep.subr.bf16.mxu0 0
    %2204 = vmatpush2.bf16.msra.mxu0 0
    %2205 = vmatprep.subr.bf16.mxu0 0
    %2206 = vmatpush2.bf16.msra.mxu0 0
    %2207 = vmatprep.subr.bf16.mxu0 0
    %2208 = vmatpush2.bf16.msra.mxu0 0
    %2209 = vmatprep.subr.bf16.mxu0 0
    %2210 = vmatpush2.bf16.msra.mxu0 0
    %2211 = vmatprep.subr.bf16.mxu0 0
    %2212 = vmatpush2.bf16.msra.mxu0 0
    %2213 = vmatprep.mubr.bf16.mxu0 0
    %2214 = vmatmul.mubr.bf16.gmra.mxu0 %v1947
    %v2215 = vpop.f32.mrf.mxu0
    %v2216 = vadd.f32 0.0, %v2215
    %v2217 = vpop.f32.mrf.mxu0
    %v2218 = vadd.f32 0.0, %v2217
    %v2219 = vpop.f32.mrf.mxu0
    %v2220 = vpop.f32.mrf.mxu0
    %2221 = vdwg.mxu0
    %v2222 = vadd.f32 %v1943, %v2175
    %v2223 = vadd.f32 %v1944, %v2177
    %v2224 = vadd.f32 %v1945, %v2216
    %v2225 = vadd.f32 %v1946, %v2218
    %v2226 = vxor.u32 %v2222, 2147483648
    %v2227 = vmul.f32 %v2226, 1.442695
    %v2228 = vpow.pop %v2227
    %v2229 = vadd.f32 %v2228, 1.0
    %v2230 = vrcp.pop %v2229
    %v2231 = vmul.f32 1.0, %v2230
    %v2232 = vxor.u32 %v2223, 2147483648
    %v2233 = vmul.f32 %v2232, 1.442695
    %v2234 = vpow.pop %v2233
    %v2235 = vadd.f32 %v2234, 1.0
    %v2236 = vrcp.pop %v2235
    %v2237 = vmul.f32 1.0, %v2236
    %v2238 = vtanh.pop %v2224
    %v2239 = vxor.u32 %v2225, 2147483648
    %v2240 = vmul.f32 %v2239, 1.442695
    %v2241 = vpow.pop %v2240
    %v2242 = vadd.f32 %v2241, 1.0
    %v2243 = vrcp.pop %v2242
    %v2244 = vmul.f32 1.0, %v2243
    %v2245 = vmul.f32 %v2237, %v1941
    %v2246 = vmul.f32 %v2231, %v2238
    %v2247 = vadd.f32 %v2245, %v2246
    %v2248 = vtanh.pop %v2247
    %v2249 = vmul.f32 %v2244, %v2248
    %2250 = vst [vmem:[#allocation4] sm:$0xff] %v2247
    %2251 = vst [vmem:[#allocation3] sm:$0xff] %v2249
    %s2252 = scalar_lea.vmem [#allocation13], 40
    %2253 = vst [vmem:[%s2252] sm:$0xff] %v2249
    %v2254 = vld [vmem:[#allocation3] sm:$0xff]
    %v2255 = vld [vmem:[#allocation4] sm:$0xff]
    %s2256 = scalar_lea.vmem [#allocation2], 192
    %v2257 = vld [vmem:[%s2256] sm:$0xff]
    %v2258 = vld [vmem:[%s2256 + $0x8] sm:$0xff]
    %v2259 = vld [vmem:[%s2256 + $0x10] sm:$0xff]
    %v2260 = vld [vmem:[%s2256 + $0x18] sm:$0xff]
    %v2261 = vpack.c.bf16 %v2254, %v2254
    %v2262 = vld [vmem:[#allocation11] sm:$0xff]
    %v2263 = vld [vmem:[#allocation11 + $0x8] sm:$0xff]
    %v2264 = vld [vmem:[#allocation11 + $0x10] sm:$0xff]
    %v2265 = vld [vmem:[#allocation11 + $0x18] sm:$0xff]
    %v2266 = vld [vmem:[#allocation11 + $0x20] sm:$0xff]
    %v2267 = vld [vmem:[#allocation11 + $0x28] sm:$0xff]
    %v2268 = vld [vmem:[#allocation11 + $0x30] sm:$0xff]
    %v2269 = vld [vmem:[#allocation11 + $0x38] sm:$0xff]
    %v2270 = vld [vmem:[#allocation11 + $0x40] sm:$0xff]
    %v2271 = vld [vmem:[#allocation11 + $0x48] sm:$0xff]
    %v2272 = vld [vmem:[#allocation11 + $0x50] sm:$0xff]
    %v2273 = vld [vmem:[#allocation11 + $0x58] sm:$0xff]
    %v2274 = vld [vmem:[#allocation11 + $0x60] sm:$0xff]
    %v2275 = vld [vmem:[#allocation11 + $0x68] sm:$0xff]
    %v2276 = vld [vmem:[#allocation11 + $0x70] sm:$0xff]
    %v2277 = vld [vmem:[#allocation11 + $0x78] sm:$0xff]
    %v2278 = vld [vmem:[#allocation11 + $0x80] sm:$0xff]
    %v2279 = vld [vmem:[#allocation11 + $0x88] sm:$0xff]
    %v2280 = vld [vmem:[#allocation11 + $0x90] sm:$0xff]
    %v2281 = vld [vmem:[#allocation11 + $0x98] sm:$0xff]
    %v2282 = vld [vmem:[#allocation11 + $0xa0] sm:$0xff]
    %v2283 = vld [vmem:[#allocation11 + $0xa8] sm:$0xff]
    %v2284 = vld [vmem:[#allocation11 + $0xb0] sm:$0xff]
    %v2285 = vld [vmem:[#allocation11 + $0xb8] sm:$0xff]
    %v2286 = vld [vmem:[#allocation11 + $0xc0] sm:$0xff]
    %v2287 = vld [vmem:[#allocation11 + $0xc8] sm:$0xff]
    %v2288 = vld [vmem:[#allocation11 + $0xd0] sm:$0xff]
    %v2289 = vld [vmem:[#allocation11 + $0xd8] sm:$0xff]
    %v2290 = vld [vmem:[#allocation11 + $0xe0] sm:$0xff]
    %v2291 = vld [vmem:[#allocation11 + $0xe8] sm:$0xff]
    %v2292 = vld [vmem:[#allocation11 + $0xf0] sm:$0xff]
    %v2293 = vld [vmem:[#allocation11 + $0xf8] sm:$0xff]
    %v2326 = vunpack.c.l.b16 %v2262
    %v2327 = vunpack.c.h.b16 %v2262
    %v2328 = vunpack.c.l.b16 %v2263
    %v2329 = vunpack.c.h.b16 %v2263
    %v2330 = vunpack.c.l.b16 %v2264
    %v2331 = vunpack.c.h.b16 %v2264
    %v2332 = vunpack.c.l.b16 %v2265
    %v2333 = vunpack.c.h.b16 %v2265
    %v2334 = vunpack.c.l.b16 %v2266
    %v2335 = vunpack.c.h.b16 %v2266
    %v2336 = vunpack.c.l.b16 %v2267
    %v2337 = vunpack.c.h.b16 %v2267
    %v2338 = vunpack.c.l.b16 %v2268
    %v2339 = vunpack.c.h.b16 %v2268
    %v2340 = vunpack.c.l.b16 %v2269
    %v2341 = vunpack.c.h.b16 %v2269
    %v2342 = vunpack.c.l.b16 %v2270
    %v2343 = vunpack.c.h.b16 %v2270
    %v2344 = vunpack.c.l.b16 %v2271
    %v2345 = vunpack.c.h.b16 %v2271
    %v2346 = vunpack.c.l.b16 %v2272
    %v2347 = vunpack.c.h.b16 %v2272
    %v2348 = vunpack.c.l.b16 %v2273
    %v2349 = vunpack.c.h.b16 %v2273
    %v2350 = vunpack.c.l.b16 %v2274
    %v2351 = vunpack.c.h.b16 %v2274
    %v2352 = vunpack.c.l.b16 %v2275
    %v2353 = vunpack.c.h.b16 %v2275
    %v2354 = vunpack.c.l.b16 %v2276
    %v2355 = vunpack.c.h.b16 %v2276
    %v2356 = vunpack.c.l.b16 %v2277
    %v2357 = vunpack.c.h.b16 %v2277
    %v2358 = vunpack.c.l.b16 %v2278
    %v2359 = vunpack.c.h.b16 %v2278
    %v2360 = vunpack.c.l.b16 %v2279
    %v2361 = vunpack.c.h.b16 %v2279
    %v2362 = vunpack.c.l.b16 %v2280
    %v2363 = vunpack.c.h.b16 %v2280
    %v2364 = vunpack.c.l.b16 %v2281
    %v2365 = vunpack.c.h.b16 %v2281
    %v2366 = vunpack.c.l.b16 %v2282
    %v2367 = vunpack.c.h.b16 %v2282
    %v2368 = vunpack.c.l.b16 %v2283
    %v2369 = vunpack.c.h.b16 %v2283
    %v2370 = vunpack.c.l.b16 %v2284
    %v2371 = vunpack.c.h.b16 %v2284
    %v2372 = vunpack.c.l.b16 %v2285
    %v2373 = vunpack.c.h.b16 %v2285
    %v2374 = vunpack.c.l.b16 %v2286
    %v2375 = vunpack.c.h.b16 %v2286
    %v2376 = vunpack.c.l.b16 %v2287
    %v2377 = vunpack.c.h.b16 %v2287
    %v2378 = vunpack.c.l.b16 %v2288
    %v2379 = vunpack.c.h.b16 %v2288
    %v2380 = vunpack.c.l.b16 %v2289
    %v2381 = vunpack.c.h.b16 %v2289
    %v2382 = vunpack.c.l.b16 %v2290
    %v2383 = vunpack.c.h.b16 %v2290
    %v2384 = vunpack.c.l.b16 %v2291
    %v2385 = vunpack.c.h.b16 %v2291
    %v2386 = vunpack.c.l.b16 %v2292
    %v2387 = vunpack.c.h.b16 %v2292
    %v2388 = vunpack.c.l.b16 %v2293
    %v2389 = vunpack.c.h.b16 %v2293
    %v2390 = vpack.c.b16 %v2330, %v2326
    %v2391 = vpack.c.b16 %v2331, %v2327
    %v2392 = vpack.c.b16 %v2332, %v2328
    %v2393 = vpack.c.b16 %v2333, %v2329
    %v2394 = vpack.c.b16 %v2338, %v2334
    %v2395 = vpack.c.b16 %v2339, %v2335
    %v2396 = vpack.c.b16 %v2340, %v2336
    %v2397 = vpack.c.b16 %v2341, %v2337
    %v2398 = vpack.c.b16 %v2346, %v2342
    %v2399 = vpack.c.b16 %v2347, %v2343
    %v2400 = vpack.c.b16 %v2348, %v2344
    %v2401 = vpack.c.b16 %v2349, %v2345
    %v2402 = vpack.c.b16 %v2354, %v2350
    %v2403 = vpack.c.b16 %v2355, %v2351
    %v2404 = vpack.c.b16 %v2356, %v2352
    %v2405 = vpack.c.b16 %v2357, %v2353
    %v2406 = vpack.c.b16 %v2362, %v2358
    %v2407 = vpack.c.b16 %v2363, %v2359
    %v2408 = vpack.c.b16 %v2364, %v2360
    %v2409 = vpack.c.b16 %v2365, %v2361
    %v2410 = vpack.c.b16 %v2370, %v2366
    %v2411 = vpack.c.b16 %v2371, %v2367
    %v2412 = vpack.c.b16 %v2372, %v2368
    %v2413 = vpack.c.b16 %v2373, %v2369
    %v2414 = vpack.c.b16 %v2378, %v2374
    %v2415 = vpack.c.b16 %v2379, %v2375
    %v2416 = vpack.c.b16 %v2380, %v2376
    %v2417 = vpack.c.b16 %v2381, %v2377
    %v2418 = vpack.c.b16 %v2386, %v2382
    %v2419 = vpack.c.b16 %v2387, %v2383
    %v2420 = vpack.c.b16 %v2388, %v2384
    %v2421 = vpack.c.b16 %v2389, %v2385
    %2454 = vmatprep.subr.bf16.mxu0 %v2419
    %2455 = vmatpush1.bf16.msra.mxu0 %v2418
    %2456 = vmatprep.subr.bf16.mxu0 %v2415
    %2457 = vmatpush1.bf16.msra.mxu0 %v2414
    %2458 = vmatprep.subr.bf16.mxu0 %v2411
    %2459 = vmatpush1.bf16.msra.mxu0 %v2410
    %2460 = vmatprep.subr.bf16.mxu0 %v2407
    %2461 = vmatpush1.bf16.msra.mxu0 %v2406
    %2462 = vmatprep.subr.bf16.mxu0 %v2403
    %2463 = vmatpush1.bf16.msra.mxu0 %v2402
    %2464 = vmatprep.subr.bf16.mxu0 %v2399
    %2465 = vmatpush1.bf16.msra.mxu0 %v2398
    %2466 = vmatprep.subr.bf16.mxu0 %v2395
    %2467 = vmatpush1.bf16.msra.mxu0 %v2394
    %2468 = vmatprep.subr.bf16.mxu0 %v2391
    %2469 = vmatpush1.bf16.msra.mxu0 %v2390
    %2470 = vmatprep.subr.bf16.mxu0 0
    %2471 = vmatpush2.bf16.msra.mxu0 0
    %2472 = vmatprep.subr.bf16.mxu0 0
    %2473 = vmatpush2.bf16.msra.mxu0 0
    %2474 = vmatprep.subr.bf16.mxu0 0
    %2475 = vmatpush2.bf16.msra.mxu0 0
    %2476 = vmatprep.subr.bf16.mxu0 0
    %2477 = vmatpush2.bf16.msra.mxu0 0
    %2478 = vmatprep.subr.bf16.mxu0 0
    %2479 = vmatpush2.bf16.msra.mxu0 0
    %2480 = vmatprep.subr.bf16.mxu0 0
    %2481 = vmatpush2.bf16.msra.mxu0 0
    %2482 = vmatprep.subr.bf16.mxu0 0
    %2483 = vmatpush2.bf16.msra.mxu0 0
    %2484 = vmatprep.subr.bf16.mxu0 0
    %2485 = vmatpush2.bf16.msra.mxu0 0
    %2486 = vmatprep.mubr.bf16.mxu0 0
    %2487 = vmatmul.mubr.bf16.gmra.mxu0 %v2261
    %v2488 = vpop.f32.mrf.mxu0
    %v2489 = vadd.f32 0.0, %v2488
    %v2490 = vpop.f32.mrf.mxu0
    %v2491 = vadd.f32 0.0, %v2490
    %v2492 = vpop.f32.mrf.mxu0
    %v2493 = vpop.f32.mrf.mxu0
    %2494 = vdwg.mxu0
    %2495 = vmatprep.subr.bf16.mxu0 %v2421
    %2496 = vmatpush1.bf16.msra.mxu0 %v2420
    %2497 = vmatprep.subr.bf16.mxu0 %v2417
    %2498 = vmatpush1.bf16.msra.mxu0 %v2416
    %2499 = vmatprep.subr.bf16.mxu0 %v2413
    %2500 = vmatpush1.bf16.msra.mxu0 %v2412
    %2501 = vmatprep.subr.bf16.mxu0 %v2409
    %2502 = vmatpush1.bf16.msra.mxu0 %v2408
    %2503 = vmatprep.subr.bf16.mxu0 %v2405
    %2504 = vmatpush1.bf16.msra.mxu0 %v2404
    %2505 = vmatprep.subr.bf16.mxu0 %v2401
    %2506 = vmatpush1.bf16.msra.mxu0 %v2400
    %2507 = vmatprep.subr.bf16.mxu0 %v2397
    %2508 = vmatpush1.bf16.msra.mxu0 %v2396
    %2509 = vmatprep.subr.bf16.mxu0 %v2393
    %2510 = vmatpush1.bf16.msra.mxu0 %v2392
    %2511 = vmatprep.subr.bf16.mxu0 0
    %2512 = vmatpush2.bf16.msra.mxu0 0
    %2513 = vmatprep.subr.bf16.mxu0 0
    %2514 = vmatpush2.bf16.msra.mxu0 0
    %2515 = vmatprep.subr.bf16.mxu0 0
    %2516 = vmatpush2.bf16.msra.mxu0 0
    %2517 = vmatprep.subr.bf16.mxu0 0
    %2518 = vmatpush2.bf16.msra.mxu0 0
    %2519 = vmatprep.subr.bf16.mxu0 0
    %2520 = vmatpush2.bf16.msra.mxu0 0
    %2521 = vmatprep.subr.bf16.mxu0 0
    %2522 = vmatpush2.bf16.msra.mxu0 0
    %2523 = vmatprep.subr.bf16.mxu0 0
    %2524 = vmatpush2.bf16.msra.mxu0 0
    %2525 = vmatprep.subr.bf16.mxu0 0
    %2526 = vmatpush2.bf16.msra.mxu0 0
    %2527 = vmatprep.mubr.bf16.mxu0 0
    %2528 = vmatmul.mubr.bf16.gmra.mxu0 %v2261
    %v2529 = vpop.f32.mrf.mxu0
    %v2530 = vadd.f32 0.0, %v2529
    %v2531 = vpop.f32.mrf.mxu0
    %v2532 = vadd.f32 0.0, %v2531
    %v2533 = vpop.f32.mrf.mxu0
    %v2534 = vpop.f32.mrf.mxu0
    %2535 = vdwg.mxu0
    %v2536 = vadd.f32 %v2257, %v2489
    %v2537 = vadd.f32 %v2258, %v2491
    %v2538 = vadd.f32 %v2259, %v2530
    %v2539 = vadd.f32 %v2260, %v2532
    %v2540 = vxor.u32 %v2536, 2147483648
    %v2541 = vmul.f32 %v2540, 1.442695
    %v2542 = vpow.pop %v2541
    %v2543 = vadd.f32 %v2542, 1.0
    %v2544 = vrcp.pop %v2543
    %v2545 = vmul.f32 1.0, %v2544
    %v2546 = vxor.u32 %v2537, 2147483648
    %v2547 = vmul.f32 %v2546, 1.442695
    %v2548 = vpow.pop %v2547
    %v2549 = vadd.f32 %v2548, 1.0
    %v2550 = vrcp.pop %v2549
    %v2551 = vmul.f32 1.0, %v2550
    %v2552 = vtanh.pop %v2538
    %v2553 = vxor.u32 %v2539, 2147483648
    %v2554 = vmul.f32 %v2553, 1.442695
    %v2555 = vpow.pop %v2554
    %v2556 = vadd.f32 %v2555, 1.0
    %v2557 = vrcp.pop %v2556
    %v2558 = vmul.f32 1.0, %v2557
    %v2559 = vmul.f32 %v2551, %v2255
    %v2560 = vmul.f32 %v2545, %v2552
    %v2561 = vadd.f32 %v2559, %v2560
    %v2562 = vtanh.pop %v2561
    %v2563 = vmul.f32 %v2558, %v2562
    %2564 = vst [vmem:[#allocation4] sm:$0xff] %v2561
    %2565 = vst [vmem:[#allocation3] sm:$0xff] %v2563
    %s2566 = scalar_lea.vmem [#allocation13], 48
    %2567 = vst [vmem:[%s2566] sm:$0xff] %v2563
    %v2568 = vld [vmem:[#allocation3] sm:$0xff]
    %v2569 = vld [vmem:[#allocation4] sm:$0xff]
    %s2570 = scalar_lea.vmem [#allocation2], 224
    %v2571 = vld [vmem:[%s2570] sm:$0xff]
    %v2572 = vld [vmem:[%s2570 + $0x8] sm:$0xff]
    %v2573 = vld [vmem:[%s2570 + $0x10] sm:$0xff]
    %v2574 = vld [vmem:[%s2570 + $0x18] sm:$0xff]
    %v2575 = vpack.c.bf16 %v2568, %v2568
    %v2576 = vld [vmem:[#allocation11] sm:$0xff]
    %v2577 = vld [vmem:[#allocation11 + $0x8] sm:$0xff]
    %v2578 = vld [vmem:[#allocation11 + $0x10] sm:$0xff]
    %v2579 = vld [vmem:[#allocation11 + $0x18] sm:$0xff]
    %v2580 = vld [vmem:[#allocation11 + $0x20] sm:$0xff]
    %v2581 = vld [vmem:[#allocation11 + $0x28] sm:$0xff]
    %v2582 = vld [vmem:[#allocation11 + $0x30] sm:$0xff]
    %v2583 = vld [vmem:[#allocation11 + $0x38] sm:$0xff]
    %v2584 = vld [vmem:[#allocation11 + $0x40] sm:$0xff]
    %v2585 = vld [vmem:[#allocation11 + $0x48] sm:$0xff]
    %v2586 = vld [vmem:[#allocation11 + $0x50] sm:$0xff]
    %v2587 = vld [vmem:[#allocation11 + $0x58] sm:$0xff]
    %v2588 = vld [vmem:[#allocation11 + $0x60] sm:$0xff]
    %v2589 = vld [vmem:[#allocation11 + $0x68] sm:$0xff]
    %v2590 = vld [vmem:[#allocation11 + $0x70] sm:$0xff]
    %v2591 = vld [vmem:[#allocation11 + $0x78] sm:$0xff]
    %v2592 = vld [vmem:[#allocation11 + $0x80] sm:$0xff]
    %v2593 = vld [vmem:[#allocation11 + $0x88] sm:$0xff]
    %v2594 = vld [vmem:[#allocation11 + $0x90] sm:$0xff]
    %v2595 = vld [vmem:[#allocation11 + $0x98] sm:$0xff]
    %v2596 = vld [vmem:[#allocation11 + $0xa0] sm:$0xff]
    %v2597 = vld [vmem:[#allocation11 + $0xa8] sm:$0xff]
    %v2598 = vld [vmem:[#allocation11 + $0xb0] sm:$0xff]
    %v2599 = vld [vmem:[#allocation11 + $0xb8] sm:$0xff]
    %v2600 = vld [vmem:[#allocation11 + $0xc0] sm:$0xff]
    %v2601 = vld [vmem:[#allocation11 + $0xc8] sm:$0xff]
    %v2602 = vld [vmem:[#allocation11 + $0xd0] sm:$0xff]
    %v2603 = vld [vmem:[#allocation11 + $0xd8] sm:$0xff]
    %v2604 = vld [vmem:[#allocation11 + $0xe0] sm:$0xff]
    %v2605 = vld [vmem:[#allocation11 + $0xe8] sm:$0xff]
    %v2606 = vld [vmem:[#allocation11 + $0xf0] sm:$0xff]
    %v2607 = vld [vmem:[#allocation11 + $0xf8] sm:$0xff]
    %v2640 = vunpack.c.l.b16 %v2576
    %v2641 = vunpack.c.h.b16 %v2576
    %v2642 = vunpack.c.l.b16 %v2577
    %v2643 = vunpack.c.h.b16 %v2577
    %v2644 = vunpack.c.l.b16 %v2578
    %v2645 = vunpack.c.h.b16 %v2578
    %v2646 = vunpack.c.l.b16 %v2579
    %v2647 = vunpack.c.h.b16 %v2579
    %v2648 = vunpack.c.l.b16 %v2580
    %v2649 = vunpack.c.h.b16 %v2580
    %v2650 = vunpack.c.l.b16 %v2581
    %v2651 = vunpack.c.h.b16 %v2581
    %v2652 = vunpack.c.l.b16 %v2582
    %v2653 = vunpack.c.h.b16 %v2582
    %v2654 = vunpack.c.l.b16 %v2583
    %v2655 = vunpack.c.h.b16 %v2583
    %v2656 = vunpack.c.l.b16 %v2584
    %v2657 = vunpack.c.h.b16 %v2584
    %v2658 = vunpack.c.l.b16 %v2585
    %v2659 = vunpack.c.h.b16 %v2585
    %v2660 = vunpack.c.l.b16 %v2586
    %v2661 = vunpack.c.h.b16 %v2586
    %v2662 = vunpack.c.l.b16 %v2587
    %v2663 = vunpack.c.h.b16 %v2587
    %v2664 = vunpack.c.l.b16 %v2588
    %v2665 = vunpack.c.h.b16 %v2588
    %v2666 = vunpack.c.l.b16 %v2589
    %v2667 = vunpack.c.h.b16 %v2589
    %v2668 = vunpack.c.l.b16 %v2590
    %v2669 = vunpack.c.h.b16 %v2590
    %v2670 = vunpack.c.l.b16 %v2591
    %v2671 = vunpack.c.h.b16 %v2591
    %v2672 = vunpack.c.l.b16 %v2592
    %v2673 = vunpack.c.h.b16 %v2592
    %v2674 = vunpack.c.l.b16 %v2593
    %v2675 = vunpack.c.h.b16 %v2593
    %v2676 = vunpack.c.l.b16 %v2594
    %v2677 = vunpack.c.h.b16 %v2594
    %v2678 = vunpack.c.l.b16 %v2595
    %v2679 = vunpack.c.h.b16 %v2595
    %v2680 = vunpack.c.l.b16 %v2596
    %v2681 = vunpack.c.h.b16 %v2596
    %v2682 = vunpack.c.l.b16 %v2597
    %v2683 = vunpack.c.h.b16 %v2597
    %v2684 = vunpack.c.l.b16 %v2598
    %v2685 = vunpack.c.h.b16 %v2598
    %v2686 = vunpack.c.l.b16 %v2599
    %v2687 = vunpack.c.h.b16 %v2599
    %v2688 = vunpack.c.l.b16 %v2600
    %v2689 = vunpack.c.h.b16 %v2600
    %v2690 = vunpack.c.l.b16 %v2601
    %v2691 = vunpack.c.h.b16 %v2601
    %v2692 = vunpack.c.l.b16 %v2602
    %v2693 = vunpack.c.h.b16 %v2602
    %v2694 = vunpack.c.l.b16 %v2603
    %v2695 = vunpack.c.h.b16 %v2603
    %v2696 = vunpack.c.l.b16 %v2604
    %v2697 = vunpack.c.h.b16 %v2604
    %v2698 = vunpack.c.l.b16 %v2605
    %v2699 = vunpack.c.h.b16 %v2605
    %v2700 = vunpack.c.l.b16 %v2606
    %v2701 = vunpack.c.h.b16 %v2606
    %v2702 = vunpack.c.l.b16 %v2607
    %v2703 = vunpack.c.h.b16 %v2607
    %v2704 = vpack.c.b16 %v2644, %v2640
    %v2705 = vpack.c.b16 %v2645, %v2641
    %v2706 = vpack.c.b16 %v2646, %v2642
    %v2707 = vpack.c.b16 %v2647, %v2643
    %v2708 = vpack.c.b16 %v2652, %v2648
    %v2709 = vpack.c.b16 %v2653, %v2649
    %v2710 = vpack.c.b16 %v2654, %v2650
    %v2711 = vpack.c.b16 %v2655, %v2651
    %v2712 = vpack.c.b16 %v2660, %v2656
    %v2713 = vpack.c.b16 %v2661, %v2657
    %v2714 = vpack.c.b16 %v2662, %v2658
    %v2715 = vpack.c.b16 %v2663, %v2659
    %v2716 = vpack.c.b16 %v2668, %v2664
    %v2717 = vpack.c.b16 %v2669, %v2665
    %v2718 = vpack.c.b16 %v2670, %v2666
    %v2719 = vpack.c.b16 %v2671, %v2667
    %v2720 = vpack.c.b16 %v2676, %v2672
    %v2721 = vpack.c.b16 %v2677, %v2673
    %v2722 = vpack.c.b16 %v2678, %v2674
    %v2723 = vpack.c.b16 %v2679, %v2675
    %v2724 = vpack.c.b16 %v2684, %v2680
    %v2725 = vpack.c.b16 %v2685, %v2681
    %v2726 = vpack.c.b16 %v2686, %v2682
    %v2727 = vpack.c.b16 %v2687, %v2683
    %v2728 = vpack.c.b16 %v2692, %v2688
    %v2729 = vpack.c.b16 %v2693, %v2689
    %v2730 = vpack.c.b16 %v2694, %v2690
    %v2731 = vpack.c.b16 %v2695, %v2691
    %v2732 = vpack.c.b16 %v2700, %v2696
    %v2733 = vpack.c.b16 %v2701, %v2697
    %v2734 = vpack.c.b16 %v2702, %v2698
    %v2735 = vpack.c.b16 %v2703, %v2699
    %2768 = vmatprep.subr.bf16.mxu0 %v2733
    %2769 = vmatpush1.bf16.msra.mxu0 %v2732
    %2770 = vmatprep.subr.bf16.mxu0 %v2729
    %2771 = vmatpush1.bf16.msra.mxu0 %v2728
    %2772 = vmatprep.subr.bf16.mxu0 %v2725
    %2773 = vmatpush1.bf16.msra.mxu0 %v2724
    %2774 = vmatprep.subr.bf16.mxu0 %v2721
    %2775 = vmatpush1.bf16.msra.mxu0 %v2720
    %2776 = vmatprep.subr.bf16.mxu0 %v2717
    %2777 = vmatpush1.bf16.msra.mxu0 %v2716
    %2778 = vmatprep.subr.bf16.mxu0 %v2713
    %2779 = vmatpush1.bf16.msra.mxu0 %v2712
    %2780 = vmatprep.subr.bf16.mxu0 %v2709
    %2781 = vmatpush1.bf16.msra.mxu0 %v2708
    %2782 = vmatprep.subr.bf16.mxu0 %v2705
    %2783 = vmatpush1.bf16.msra.mxu0 %v2704
    %2784 = vmatprep.subr.bf16.mxu0 0
    %2785 = vmatpush2.bf16.msra.mxu0 0
    %2786 = vmatprep.subr.bf16.mxu0 0
    %2787 = vmatpush2.bf16.msra.mxu0 0
    %2788 = vmatprep.subr.bf16.mxu0 0
    %2789 = vmatpush2.bf16.msra.mxu0 0
    %2790 = vmatprep.subr.bf16.mxu0 0
    %2791 = vmatpush2.bf16.msra.mxu0 0
    %2792 = vmatprep.subr.bf16.mxu0 0
    %2793 = vmatpush2.bf16.msra.mxu0 0
    %2794 = vmatprep.subr.bf16.mxu0 0
    %2795 = vmatpush2.bf16.msra.mxu0 0
    %2796 = vmatprep.subr.bf16.mxu0 0
    %2797 = vmatpush2.bf16.msra.mxu0 0
    %2798 = vmatprep.subr.bf16.mxu0 0
    %2799 = vmatpush2.bf16.msra.mxu0 0
    %2800 = vmatprep.mubr.bf16.mxu0 0
    %2801 = vmatmul.mubr.bf16.gmra.mxu0 %v2575
    %v2802 = vpop.f32.mrf.mxu0
    %v2803 = vadd.f32 0.0, %v2802
    %v2804 = vpop.f32.mrf.mxu0
    %v2805 = vadd.f32 0.0, %v2804
    %v2806 = vpop.f32.mrf.mxu0
    %v2807 = vpop.f32.mrf.mxu0
    %2808 = vdwg.mxu0
    %2809 = vmatprep.subr.bf16.mxu0 %v2735
    %2810 = vmatpush1.bf16.msra.mxu0 %v2734
    %2811 = vmatprep.subr.bf16.mxu0 %v2731
    %2812 = vmatpush1.bf16.msra.mxu0 %v2730
    %2813 = vmatprep.subr.bf16.mxu0 %v2727
    %2814 = vmatpush1.bf16.msra.mxu0 %v2726
    %2815 = vmatprep.subr.bf16.mxu0 %v2723
    %2816 = vmatpush1.bf16.msra.mxu0 %v2722
    %2817 = vmatprep.subr.bf16.mxu0 %v2719
    %2818 = vmatpush1.bf16.msra.mxu0 %v2718
    %2819 = vmatprep.subr.bf16.mxu0 %v2715
    %2820 = vmatpush1.bf16.msra.mxu0 %v2714
    %2821 = vmatprep.subr.bf16.mxu0 %v2711
    %2822 = vmatpush1.bf16.msra.mxu0 %v2710
    %2823 = vmatprep.subr.bf16.mxu0 %v2707
    %2824 = vmatpush1.bf16.msra.mxu0 %v2706
    %2825 = vmatprep.subr.bf16.mxu0 0
    %2826 = vmatpush2.bf16.msra.mxu0 0
    %2827 = vmatprep.subr.bf16.mxu0 0
    %2828 = vmatpush2.bf16.msra.mxu0 0
    %2829 = vmatprep.subr.bf16.mxu0 0
    %2830 = vmatpush2.bf16.msra.mxu0 0
    %2831 = vmatprep.subr.bf16.mxu0 0
    %2832 = vmatpush2.bf16.msra.mxu0 0
    %2833 = vmatprep.subr.bf16.mxu0 0
    %2834 = vmatpush2.bf16.msra.mxu0 0
    %2835 = vmatprep.subr.bf16.mxu0 0
    %2836 = vmatpush2.bf16.msra.mxu0 0
    %2837 = vmatprep.subr.bf16.mxu0 0
    %2838 = vmatpush2.bf16.msra.mxu0 0
    %2839 = vmatprep.subr.bf16.mxu0 0
    %2840 = vmatpush2.bf16.msra.mxu0 0
    %2841 = vmatprep.mubr.bf16.mxu0 0
    %2842 = vmatmul.mubr.bf16.gmra.mxu0 %v2575
    %v2843 = vpop.f32.mrf.mxu0
    %v2844 = vadd.f32 0.0, %v2843
    %v2845 = vpop.f32.mrf.mxu0
    %v2846 = vadd.f32 0.0, %v2845
    %v2847 = vpop.f32.mrf.mxu0
    %v2848 = vpop.f32.mrf.mxu0
    %2849 = vdwg.mxu0
    %v2850 = vadd.f32 %v2571, %v2803
    %v2851 = vadd.f32 %v2572, %v2805
    %v2852 = vadd.f32 %v2573, %v2844
    %v2853 = vadd.f32 %v2574, %v2846
    %v2854 = vxor.u32 %v2850, 2147483648
    %v2855 = vmul.f32 %v2854, 1.442695
    %v2856 = vpow.pop %v2855
    %v2857 = vadd.f32 %v2856, 1.0
    %v2858 = vrcp.pop %v2857
    %v2859 = vmul.f32 1.0, %v2858
    %v2860 = vxor.u32 %v2851, 2147483648
    %v2861 = vmul.f32 %v2860, 1.442695
    %v2862 = vpow.pop %v2861
    %v2863 = vadd.f32 %v2862, 1.0
    %v2864 = vrcp.pop %v2863
    %v2865 = vmul.f32 1.0, %v2864
    %v2866 = vtanh.pop %v2852
    %v2867 = vxor.u32 %v2853, 2147483648
    %v2868 = vmul.f32 %v2867, 1.442695
    %v2869 = vpow.pop %v2868
    %v2870 = vadd.f32 %v2869, 1.0
    %v2871 = vrcp.pop %v2870
    %v2872 = vmul.f32 1.0, %v2871
    %v2873 = vmul.f32 %v2865, %v2569
    %v2874 = vmul.f32 %v2859, %v2866
    %v2875 = vadd.f32 %v2873, %v2874
    %v2876 = vtanh.pop %v2875
    %v2877 = vmul.f32 %v2872, %v2876
    %2878 = vst [vmem:[#allocation4] sm:$0xff] %v2875
    %2879 = vst [vmem:[#allocation3] sm:$0xff] %v2877
    %s2880 = scalar_lea.vmem [#allocation13], 56
    %2881 = vst [vmem:[%s2880] sm:$0xff] %v2877
    %v2882 = vld [vmem:[#allocation3] sm:$0xff]
    %v2883 = vld [vmem:[#allocation4] sm:$0xff]
    %s2884 = scalar_lea.vmem [#allocation2], 256
    %v2885 = vld [vmem:[%s2884] sm:$0xff]
    %v2886 = vld [vmem:[%s2884 + $0x8] sm:$0xff]
    %v2887 = vld [vmem:[%s2884 + $0x10] sm:$0xff]
    %v2888 = vld [vmem:[%s2884 + $0x18] sm:$0xff]
    %v2889 = vpack.c.bf16 %v2882, %v2882
    %v2890 = vld [vmem:[#allocation11] sm:$0xff]
    %v2891 = vld [vmem:[#allocation11 + $0x8] sm:$0xff]
    %v2892 = vld [vmem:[#allocation11 + $0x10] sm:$0xff]
    %v2893 = vld [vmem:[#allocation11 + $0x18] sm:$0xff]
    %v2894 = vld [vmem:[#allocation11 + $0x20] sm:$0xff]
    %v2895 = vld [vmem:[#allocation11 + $0x28] sm:$0xff]
    %v2896 = vld [vmem:[#allocation11 + $0x30] sm:$0xff]
    %v2897 = vld [vmem:[#allocation11 + $0x38] sm:$0xff]
    %v2898 = vld [vmem:[#allocation11 + $0x40] sm:$0xff]
    %v2899 = vld [vmem:[#allocation11 + $0x48] sm:$0xff]
    %v2900 = vld [vmem:[#allocation11 + $0x50] sm:$0xff]
    %v2901 = vld [vmem:[#allocation11 + $0x58] sm:$0xff]
    %v2902 = vld [vmem:[#allocation11 + $0x60] sm:$0xff]
    %v2903 = vld [vmem:[#allocation11 + $0x68] sm:$0xff]
    %v2904 = vld [vmem:[#allocation11 + $0x70] sm:$0xff]
    %v2905 = vld [vmem:[#allocation11 + $0x78] sm:$0xff]
    %v2906 = vld [vmem:[#allocation11 + $0x80] sm:$0xff]
    %v2907 = vld [vmem:[#allocation11 + $0x88] sm:$0xff]
    %v2908 = vld [vmem:[#allocation11 + $0x90] sm:$0xff]
    %v2909 = vld [vmem:[#allocation11 + $0x98] sm:$0xff]
    %v2910 = vld [vmem:[#allocation11 + $0xa0] sm:$0xff]
    %v2911 = vld [vmem:[#allocation11 + $0xa8] sm:$0xff]
    %v2912 = vld [vmem:[#allocation11 + $0xb0] sm:$0xff]
    %v2913 = vld [vmem:[#allocation11 + $0xb8] sm:$0xff]
    %v2914 = vld [vmem:[#allocation11 + $0xc0] sm:$0xff]
    %v2915 = vld [vmem:[#allocation11 + $0xc8] sm:$0xff]
    %v2916 = vld [vmem:[#allocation11 + $0xd0] sm:$0xff]
    %v2917 = vld [vmem:[#allocation11 + $0xd8] sm:$0xff]
    %v2918 = vld [vmem:[#allocation11 + $0xe0] sm:$0xff]
    %v2919 = vld [vmem:[#allocation11 + $0xe8] sm:$0xff]
    %v2920 = vld [vmem:[#allocation11 + $0xf0] sm:$0xff]
    %v2921 = vld [vmem:[#allocation11 + $0xf8] sm:$0xff]
    %v2954 = vunpack.c.l.b16 %v2890
    %v2955 = vunpack.c.h.b16 %v2890
    %v2956 = vunpack.c.l.b16 %v2891
    %v2957 = vunpack.c.h.b16 %v2891
    %v2958 = vunpack.c.l.b16 %v2892
    %v2959 = vunpack.c.h.b16 %v2892
    %v2960 = vunpack.c.l.b16 %v2893
    %v2961 = vunpack.c.h.b16 %v2893
    %v2962 = vunpack.c.l.b16 %v2894
    %v2963 = vunpack.c.h.b16 %v2894
    %v2964 = vunpack.c.l.b16 %v2895
    %v2965 = vunpack.c.h.b16 %v2895
    %v2966 = vunpack.c.l.b16 %v2896
    %v2967 = vunpack.c.h.b16 %v2896
    %v2968 = vunpack.c.l.b16 %v2897
    %v2969 = vunpack.c.h.b16 %v2897
    %v2970 = vunpack.c.l.b16 %v2898
    %v2971 = vunpack.c.h.b16 %v2898
    %v2972 = vunpack.c.l.b16 %v2899
    %v2973 = vunpack.c.h.b16 %v2899
    %v2974 = vunpack.c.l.b16 %v2900
    %v2975 = vunpack.c.h.b16 %v2900
    %v2976 = vunpack.c.l.b16 %v2901
    %v2977 = vunpack.c.h.b16 %v2901
    %v2978 = vunpack.c.l.b16 %v2902
    %v2979 = vunpack.c.h.b16 %v2902
    %v2980 = vunpack.c.l.b16 %v2903
    %v2981 = vunpack.c.h.b16 %v2903
    %v2982 = vunpack.c.l.b16 %v2904
    %v2983 = vunpack.c.h.b16 %v2904
    %v2984 = vunpack.c.l.b16 %v2905
    %v2985 = vunpack.c.h.b16 %v2905
    %v2986 = vunpack.c.l.b16 %v2906
    %v2987 = vunpack.c.h.b16 %v2906
    %v2988 = vunpack.c.l.b16 %v2907
    %v2989 = vunpack.c.h.b16 %v2907
    %v2990 = vunpack.c.l.b16 %v2908
    %v2991 = vunpack.c.h.b16 %v2908
    %v2992 = vunpack.c.l.b16 %v2909
    %v2993 = vunpack.c.h.b16 %v2909
    %v2994 = vunpack.c.l.b16 %v2910
    %v2995 = vunpack.c.h.b16 %v2910
    %v2996 = vunpack.c.l.b16 %v2911
    %v2997 = vunpack.c.h.b16 %v2911
    %v2998 = vunpack.c.l.b16 %v2912
    %v2999 = vunpack.c.h.b16 %v2912
    %v3000 = vunpack.c.l.b16 %v2913
    %v3001 = vunpack.c.h.b16 %v2913
    %v3002 = vunpack.c.l.b16 %v2914
    %v3003 = vunpack.c.h.b16 %v2914
    %v3004 = vunpack.c.l.b16 %v2915
    %v3005 = vunpack.c.h.b16 %v2915
    %v3006 = vunpack.c.l.b16 %v2916
    %v3007 = vunpack.c.h.b16 %v2916
    %v3008 = vunpack.c.l.b16 %v2917
    %v3009 = vunpack.c.h.b16 %v2917
    %v3010 = vunpack.c.l.b16 %v2918
    %v3011 = vunpack.c.h.b16 %v2918
    %v3012 = vunpack.c.l.b16 %v2919
    %v3013 = vunpack.c.h.b16 %v2919
    %v3014 = vunpack.c.l.b16 %v2920
    %v3015 = vunpack.c.h.b16 %v2920
    %v3016 = vunpack.c.l.b16 %v2921
    %v3017 = vunpack.c.h.b16 %v2921
    %v3018 = vpack.c.b16 %v2958, %v2954
    %v3019 = vpack.c.b16 %v2959, %v2955
    %v3020 = vpack.c.b16 %v2960, %v2956
    %v3021 = vpack.c.b16 %v2961, %v2957
    %v3022 = vpack.c.b16 %v2966, %v2962
    %v3023 = vpack.c.b16 %v2967, %v2963
    %v3024 = vpack.c.b16 %v2968, %v2964
    %v3025 = vpack.c.b16 %v2969, %v2965
    %v3026 = vpack.c.b16 %v2974, %v2970
    %v3027 = vpack.c.b16 %v2975, %v2971
    %v3028 = vpack.c.b16 %v2976, %v2972
    %v3029 = vpack.c.b16 %v2977, %v2973
    %v3030 = vpack.c.b16 %v2982, %v2978
    %v3031 = vpack.c.b16 %v2983, %v2979
    %v3032 = vpack.c.b16 %v2984, %v2980
    %v3033 = vpack.c.b16 %v2985, %v2981
    %v3034 = vpack.c.b16 %v2990, %v2986
    %v3035 = vpack.c.b16 %v2991, %v2987
    %v3036 = vpack.c.b16 %v2992, %v2988
    %v3037 = vpack.c.b16 %v2993, %v2989
    %v3038 = vpack.c.b16 %v2998, %v2994
    %v3039 = vpack.c.b16 %v2999, %v2995
    %v3040 = vpack.c.b16 %v3000, %v2996
    %v3041 = vpack.c.b16 %v3001, %v2997
    %v3042 = vpack.c.b16 %v3006, %v3002
    %v3043 = vpack.c.b16 %v3007, %v3003
    %v3044 = vpack.c.b16 %v3008, %v3004
    %v3045 = vpack.c.b16 %v3009, %v3005
    %v3046 = vpack.c.b16 %v3014, %v3010
    %v3047 = vpack.c.b16 %v3015, %v3011
    %v3048 = vpack.c.b16 %v3016, %v3012
    %v3049 = vpack.c.b16 %v3017, %v3013
    %3082 = vmatprep.subr.bf16.mxu0 %v3047
    %3083 = vmatpush1.bf16.msra.mxu0 %v3046
    %3084 = vmatprep.subr.bf16.mxu0 %v3043
    %3085 = vmatpush1.bf16.msra.mxu0 %v3042
    %3086 = vmatprep.subr.bf16.mxu0 %v3039
    %3087 = vmatpush1.bf16.msra.mxu0 %v3038
    %3088 = vmatprep.subr.bf16.mxu0 %v3035
    %3089 = vmatpush1.bf16.msra.mxu0 %v3034
    %3090 = vmatprep.subr.bf16.mxu0 %v3031
    %3091 = vmatpush1.bf16.msra.mxu0 %v3030
    %3092 = vmatprep.subr.bf16.mxu0 %v3027
    %3093 = vmatpush1.bf16.msra.mxu0 %v3026
    %3094 = vmatprep.subr.bf16.mxu0 %v3023
    %3095 = vmatpush1.bf16.msra.mxu0 %v3022
    %3096 = vmatprep.subr.bf16.mxu0 %v3019
    %3097 = vmatpush1.bf16.msra.mxu0 %v3018
    %3098 = vmatprep.subr.bf16.mxu0 0
    %3099 = vmatpush2.bf16.msra.mxu0 0
    %3100 = vmatprep.subr.bf16.mxu0 0
    %3101 = vmatpush2.bf16.msra.mxu0 0
    %3102 = vmatprep.subr.bf16.mxu0 0
    %3103 = vmatpush2.bf16.msra.mxu0 0
    %3104 = vmatprep.subr.bf16.mxu0 0
    %3105 = vmatpush2.bf16.msra.mxu0 0
    %3106 = vmatprep.subr.bf16.mxu0 0
    %3107 = vmatpush2.bf16.msra.mxu0 0
    %3108 = vmatprep.subr.bf16.mxu0 0
    %3109 = vmatpush2.bf16.msra.mxu0 0
    %3110 = vmatprep.subr.bf16.mxu0 0
    %3111 = vmatpush2.bf16.msra.mxu0 0
    %3112 = vmatprep.subr.bf16.mxu0 0
    %3113 = vmatpush2.bf16.msra.mxu0 0
    %3114 = vmatprep.mubr.bf16.mxu0 0
    %3115 = vmatmul.mubr.bf16.gmra.mxu0 %v2889
    %v3116 = vpop.f32.mrf.mxu0
    %v3117 = vadd.f32 0.0, %v3116
    %v3118 = vpop.f32.mrf.mxu0
    %v3119 = vadd.f32 0.0, %v3118
    %v3120 = vpop.f32.mrf.mxu0
    %v3121 = vpop.f32.mrf.mxu0
    %3122 = vdwg.mxu0
    %3123 = vmatprep.subr.bf16.mxu0 %v3049
    %3124 = vmatpush1.bf16.msra.mxu0 %v3048
    %3125 = vmatprep.subr.bf16.mxu0 %v3045
    %3126 = vmatpush1.bf16.msra.mxu0 %v3044
    %3127 = vmatprep.subr.bf16.mxu0 %v3041
    %3128 = vmatpush1.bf16.msra.mxu0 %v3040
    %3129 = vmatprep.subr.bf16.mxu0 %v3037
    %3130 = vmatpush1.bf16.msra.mxu0 %v3036
    %3131 = vmatprep.subr.bf16.mxu0 %v3033
    %3132 = vmatpush1.bf16.msra.mxu0 %v3032
    %3133 = vmatprep.subr.bf16.mxu0 %v3029
    %3134 = vmatpush1.bf16.msra.mxu0 %v3028
    %3135 = vmatprep.subr.bf16.mxu0 %v3025
    %3136 = vmatpush1.bf16.msra.mxu0 %v3024
    %3137 = vmatprep.subr.bf16.mxu0 %v3021
    %3138 = vmatpush1.bf16.msra.mxu0 %v3020
    %3139 = vmatprep.subr.bf16.mxu0 0
    %3140 = vmatpush2.bf16.msra.mxu0 0
    %3141 = vmatprep.subr.bf16.mxu0 0
    %3142 = vmatpush2.bf16.msra.mxu0 0
    %3143 = vmatprep.subr.bf16.mxu0 0
    %3144 = vmatpush2.bf16.msra.mxu0 0
    %3145 = vmatprep.subr.bf16.mxu0 0
    %3146 = vmatpush2.bf16.msra.mxu0 0
    %3147 = vmatprep.subr.bf16.mxu0 0
    %3148 = vmatpush2.bf16.msra.mxu0 0
    %3149 = vmatprep.subr.bf16.mxu0 0
    %3150 = vmatpush2.bf16.msra.mxu0 0
    %3151 = vmatprep.subr.bf16.mxu0 0
    %3152 = vmatpush2.bf16.msra.mxu0 0
    %3153 = vmatprep.subr.bf16.mxu0 0
    %3154 = vmatpush2.bf16.msra.mxu0 0
    %3155 = vmatprep.mubr.bf16.mxu0 0
    %3156 = vmatmul.mubr.bf16.gmra.mxu0 %v2889
    %v3157 = vpop.f32.mrf.mxu0
    %v3158 = vadd.f32 0.0, %v3157
    %v3159 = vpop.f32.mrf.mxu0
    %v3160 = vadd.f32 0.0, %v3159
    %v3161 = vpop.f32.mrf.mxu0
    %v3162 = vpop.f32.mrf.mxu0
    %3163 = vdwg.mxu0
    %v3164 = vadd.f32 %v2885, %v3117
    %v3165 = vadd.f32 %v2886, %v3119
    %v3166 = vadd.f32 %v2887, %v3158
    %v3167 = vadd.f32 %v2888, %v3160
    %v3168 = vxor.u32 %v3164, 2147483648
    %v3169 = vmul.f32 %v3168, 1.442695
    %v3170 = vpow.pop %v3169
    %v3171 = vadd.f32 %v3170, 1.0
    %v3172 = vrcp.pop %v3171
    %v3173 = vmul.f32 1.0, %v3172
    %v3174 = vxor.u32 %v3165, 2147483648
    %v3175 = vmul.f32 %v3174, 1.442695
    %v3176 = vpow.pop %v3175
    %v3177 = vadd.f32 %v3176, 1.0
    %v3178 = vrcp.pop %v3177
    %v3179 = vmul.f32 1.0, %v3178
    %v3180 = vtanh.pop %v3166
    %v3181 = vxor.u32 %v3167, 2147483648
    %v3182 = vmul.f32 %v3181, 1.442695
    %v3183 = vpow.pop %v3182
    %v3184 = vadd.f32 %v3183, 1.0
    %v3185 = vrcp.pop %v3184
    %v3186 = vmul.f32 1.0, %v3185
    %v3187 = vmul.f32 %v3179, %v2883
    %v3188 = vmul.f32 %v3173, %v3180
    %v3189 = vadd.f32 %v3187, %v3188
    %v3190 = vtanh.pop %v3189
    %v3191 = vmul.f32 %v3186, %v3190
    %3192 = vst [vmem:[#allocation4] sm:$0xff] %v3189
    %3193 = vst [vmem:[#allocation3] sm:$0xff] %v3191
    %s3194 = scalar_lea.vmem [#allocation13], 64
    %3195 = vst [vmem:[%s3194] sm:$0xff] %v3191
    // Predicated region
    $region34: #{tpu_custom_call.1} parent=1 // pred_check
      _
    $region35: #{tpu_custom_call.1} parent=1 // pred_check_branch
      %3197 = sbr.rel (0) target = $region37
    $region36: #{tpu_custom_call.1} parent=1 // pred_region
      %s3199 = ssub.s32 1152, 1152
      %3200 = vsyncadd [#allocation7], %s3199
      %s3201 = sshll.u32 [#allocation13], 4
      %s3202 = int_to_ptr.vmem [resolvable:$true] %s3201
      %3207 = dma.vmem_to_hbm [thread:$0]  %s3202, 1152, %s4, [#allocation7], 128, 128, 8
    $region37: #{tpu_custom_call.1} parent=1 // pred_fallthru
      _
    // Predicated region
    $region38: #{tpu_custom_call.1} parent=1 // pred_check
      _
    $region39: #{tpu_custom_call.1} parent=1 // pred_check_branch
      %3209 = sbr.rel (0) target = $region41
    $region40: #{tpu_custom_call.1} parent=1 // pred_region
      %3210 = dma.done [#allocation7], 1152
    $region41: #{tpu_custom_call.1} parent=1 // pred_fallthru
      _
    %3211 = vsyncpa [#allocation6], 1
    %3212 = vsyncpa [#allocation9], 1
    %3213 = vsyncpa [#allocation12], 1
    %3214 = vsyncpa [#allocation7], 1

</llo_original>
